<compile_context>
chip_gen: v7x
topology: tpu7x:2x2x1
jax: 0.10.0
libtpu: 0.0.40
codegen_flags: <defaults>
</compile_context>

<pallas_src>
import functools

import jax
import jax.numpy as jnp
import numpy as np
from jax.experimental import pallas as pl
from jax.experimental.pallas import tpu as pltpu

LN_EPS = 1e-5  # torch.nn.LayerNorm default


def _layernorm(x, gamma, beta):
    # x: (M, D); gamma/beta: (1, D)
    mu = jnp.mean(x, axis=-1, keepdims=True)
    xc = x - mu
    var = jnp.mean(xc * xc, axis=-1, keepdims=True)
    return xc * jax.lax.rsqrt(var + LN_EPS) * gamma + beta


def _policy_forward_kernel(
    # data
    pc_ref, state_ref, eps_ref,
    # PointNet per-point MLP params (Linear + LayerNorm per block)
    w1_ref, b1_ref, g1_ref, t1_ref,
    w2_ref, b2_ref, g2_ref, t2_ref,
    w3_ref, b3_ref, g3_ref, t3_ref,
    # PointNet final projection: Linear(256 -> 64) + LayerNorm(64)
    wp_ref, bp_ref, gp_ref, tp_ref,
    # policy MLP params + logstd
    pw1_ref, pb1_ref, pw2_ref, pb2_ref, pw3_ref, pb3_ref, logstd_ref,
    # output
    act_ref,
    *, batch, num_points, obs_dim,
):
    f32 = jnp.float32

    # ---- PointNet encoder: per-point MLP over all B*P points at once ----
    x = pc_ref[...]                                                  # (B*P, 8)
    h = jnp.dot(x, w1_ref[...], preferred_element_type=f32) + b1_ref[...]
    h = jnp.maximum(_layernorm(h, g1_ref[...], t1_ref[...]), 0.0)    # (B*P, 64)
    h = jnp.dot(h, w2_ref[...], preferred_element_type=f32) + b2_ref[...]
    h = jnp.maximum(_layernorm(h, g2_ref[...], t2_ref[...]), 0.0)    # (B*P, 128)
    h = jnp.dot(h, w3_ref[...], preferred_element_type=f32) + b3_ref[...]
    h = jnp.maximum(_layernorm(h, g3_ref[...], t3_ref[...]), 0.0)    # (B*P, 256)

    # Per-sample max over points (torch.max(x, 1)[0]).  The reshape only splits
    # the leading (sublane) dim into tile-aligned chunks -> no data movement.
    feat = jnp.max(h.reshape(batch, num_points, -1), axis=1)         # (B, 256)

    # Final projection: Linear(256 -> 64) + LayerNorm(64)
    pc_feat = jnp.dot(feat, wp_ref[...], preferred_element_type=f32) + bp_ref[...]
    pc_feat = _layernorm(pc_feat, gp_ref[...], tp_ref[...])          # (B, 64)

    # ---- policy MLP on concat([state, pc_feat]) via split first-layer weight ----
    w1_state = pw1_ref[:obs_dim, :]
    w1_pc = pw1_ref[obs_dim:, :]
    h1 = (jnp.dot(state_ref[...], w1_state, preferred_element_type=f32)
          + jnp.dot(pc_feat, w1_pc, preferred_element_type=f32)
          + pb1_ref[...])
    h1 = jnp.maximum(h1, 0.0)
    h2 = jnp.maximum(
        jnp.dot(h1, pw2_ref[...], preferred_element_type=f32) + pb2_ref[...], 0.0)
    mean = jnp.dot(h2, pw3_ref[...], preferred_element_type=f32) + pb3_ref[...]

    # rsample: actions = mean + exp(logstd) * eps,  eps ~ N(0, 1)
    std = jnp.exp(logstd_ref[...])                                    # (1, act_dim)
    act_ref[...] = (mean + std * eps_ref[...]).astype(act_ref.dtype)


def diag_gaussian_mlp_v_policy_forward(params, state, pc, eps):
    """Fused forward of DiagGaussianMLPVPolicy (sample=True) as one pallas_call."""
    B, P, cin = pc.shape
    obs_dim = state.shape[-1]
    act_dim = params["pb3"].shape[-1]

    # Flatten points and zero-pad xyz channels 3 -> 8 for a clean TPU layout.
    cin_pad = 8
    pc_flat = jnp.zeros((B * P, cin_pad), pc.dtype).at[:, :cin].set(
        pc.reshape(B * P, cin))
    w1_pad = jnp.zeros((cin_pad, params["w1"].shape[-1]),
                       params["w1"].dtype).at[:cin, :].set(params["w1"])

    kernel = functools.partial(
        _policy_forward_kernel, batch=B, num_points=P, obs_dim=obs_dim)

    return pl.pallas_call(
        kernel,
        out_shape=jax.ShapeDtypeStruct((B, act_dim), state.dtype),
        compiler_params=pltpu.CompilerParams(vmem_limit_bytes=32 * 1024 * 1024),
    )(
        pc_flat, state, eps,
        w1_pad, params["b1"], params["g1"], params["t1"],
        params["w2"], params["b2"], params["g2"], params["t2"],
        params["w3"], params["b3"], params["g3"], params["t3"],
        params["wp"], params["bp"], params["gp"], params["tp"],
        params["pw1"], params["pb1"], params["pw2"], params["pb2"],
        params["pw3"], params["pb3"], params["logstd"],
    )


def _init_params(key, obs_dim, act_dim, hidden):
    """Random parameters matching the module's layer shapes (f32, (in,out))."""
    enc_ch = [3, 64, 128, 256]
    enc_out = 64  # PointNetEncoderXYZ(out_channels=64)
    ks = iter(jax.random.split(key, 12))

    def lin(k, din, dout):
        kw, kb = jax.random.split(k)
        w = jax.random.normal(kw, (din, dout), jnp.float32) / np.sqrt(din)
        b = 0.1 * jax.random.normal(kb, (1, dout), jnp.float32)
        return w, b

    def ln(k, d):
        kg, kb = jax.random.split(k)
        g = 1.0 + 0.1 * jax.random.normal(kg, (1, d), jnp.float32)
        t = 0.1 * jax.random.normal(kb, (1, d), jnp.float32)
        return g, t

    p = {}
    p["w1"], p["b1"] = lin(next(ks), enc_ch[0], enc_ch[1])
    p["g1"], p["t1"] = ln(next(ks), enc_ch[1])
    p["w2"], p["b2"] = lin(next(ks), enc_ch[1], enc_ch[2])
    p["g2"], p["t2"] = ln(next(ks), enc_ch[2])
    p["w3"], p["b3"] = lin(next(ks), enc_ch[2], enc_ch[3])
    p["g3"], p["t3"] = ln(next(ks), enc_ch[3])
    p["wp"], p["bp"] = lin(next(ks), enc_ch[3], enc_out)
    p["gp"], p["tp"] = ln(next(ks), enc_out)
    p["pw1"], p["pb1"] = lin(next(ks), obs_dim + enc_out, hidden)
    p["pw2"], p["pb2"] = lin(next(ks), hidden, hidden)
    p["pw3"], p["pb3"] = lin(next(ks), hidden, act_dim)
    p["logstd"] = jnp.zeros((1, act_dim), jnp.float32)  # init_log_std = 0.0
    return p


def _reference_forward(params, state, pc, eps):
    """Pure-JAX reference of the PyTorch forward (sample=True)."""
    hi = jax.lax.Precision.HIGHEST

    def mm(a, b):
        return jnp.matmul(a, b, precision=hi)

    def ln(x, g, t):
        mu = x.mean(-1, keepdims=True)
        var = ((x - mu) ** 2).mean(-1, keepdims=True)
        return (x - mu) / jnp.sqrt(var + LN_EPS) * g + t

    h = jax.nn.relu(ln(mm(pc, params["w1"]) + params["b1"], params["g1"], params["t1"]))
    h = jax.nn.relu(ln(mm(h, params["w2"]) + params["b2"], params["g2"], params["t2"]))
    h = jax.nn.relu(ln(mm(h, params["w3"]) + params["b3"], params["g3"], params["t3"]))
    feat = h.max(axis=1)                                                # (B, 256)
    pc_feat = ln(mm(feat, params["wp"]) + params["bp"], params["gp"], params["tp"])
    hcat = jnp.concatenate([state, pc_feat], axis=-1)
    h1 = jax.nn.relu(mm(hcat, params["pw1"]) + params["pb1"])
    h2 = jax.nn.relu(mm(h1, params["pw2"]) + params["pb2"])
    mean = mm(h2, params["pw3"]) + params["pb3"]
    return mean + jnp.exp(params["logstd"]) * eps


if __name__ == "__main__":
    # Small shapes consistent with the module: PointNet 3->64->128->256 ->
    # max over points -> 64; policy MLP (obs_dim + 64) -> hidden -> hidden -> act_dim.
    B, P = 2, 128                 # batch, points per cloud
    obs_dim, act_dim, hidden = 32, 8, 128

    key = jax.random.PRNGKey(0)
    k_param, k_pc, k_state, k_eps = jax.random.split(key, 4)
    params = _init_params(k_param, obs_dim, act_dim, hidden)
    pc = jax.random.normal(k_pc, (B, P, 3), jnp.float32)
    state = jax.random.normal(k_state, (B, obs_dim), jnp.float32)
    eps = jax.random.normal(k_eps, (B, act_dim), jnp.float32)   # rsample noise

    actions = diag_gaussian_mlp_v_policy_forward(params, state, pc, eps)
    actions = jax.block_until_ready(actions)

    ref = _reference_forward(params, state, pc, eps)
    np.testing.assert_allclose(np.asarray(actions), np.asarray(ref),
                               rtol=2e-2, atol=2e-2)

    print("KERNEL_OK")
</pallas_src>

<mosaic_0001>
module attributes {stable_mosaic.version = 11 : i64} {
  func.func @_policy_forward_kernel(%arg0: memref<256x8xf32, #tpu.memory_space<vmem>>, %arg1: memref<2x32xf32, #tpu.memory_space<vmem>>, %arg2: memref<2x8xf32, #tpu.memory_space<vmem>>, %arg3: memref<8x64xf32, #tpu.memory_space<vmem>>, %arg4: memref<1x64xf32, #tpu.memory_space<vmem>>, %arg5: memref<1x64xf32, #tpu.memory_space<vmem>>, %arg6: memref<1x64xf32, #tpu.memory_space<vmem>>, %arg7: memref<64x128xf32, #tpu.memory_space<vmem>>, %arg8: memref<1x128xf32, #tpu.memory_space<vmem>>, %arg9: memref<1x128xf32, #tpu.memory_space<vmem>>, %arg10: memref<1x128xf32, #tpu.memory_space<vmem>>, %arg11: memref<128x256xf32, #tpu.memory_space<vmem>>, %arg12: memref<1x256xf32, #tpu.memory_space<vmem>>, %arg13: memref<1x256xf32, #tpu.memory_space<vmem>>, %arg14: memref<1x256xf32, #tpu.memory_space<vmem>>, %arg15: memref<256x64xf32, #tpu.memory_space<vmem>>, %arg16: memref<1x64xf32, #tpu.memory_space<vmem>>, %arg17: memref<1x64xf32, #tpu.memory_space<vmem>>, %arg18: memref<1x64xf32, #tpu.memory_space<vmem>>, %arg19: memref<96x128xf32, #tpu.memory_space<vmem>>, %arg20: memref<1x128xf32, #tpu.memory_space<vmem>>, %arg21: memref<128x128xf32, #tpu.memory_space<vmem>>, %arg22: memref<1x128xf32, #tpu.memory_space<vmem>>, %arg23: memref<128x8xf32, #tpu.memory_space<vmem>>, %arg24: memref<1x8xf32, #tpu.memory_space<vmem>>, %arg25: memref<1x8xf32, #tpu.memory_space<vmem>>, %arg26: memref<2x8xf32, #tpu.memory_space<vmem>>) attributes {dimension_semantics = [], scalar_prefetch = 0 : i64, scratch_operands = 0 : i64, tpu.core_type = #tpu.core_type<tc>} {
    %c0 = arith.constant 0 : index
    %c0_0 = arith.constant 0 : index
    %0 = vector.load %arg0[%c0, %c0_0] : memref<256x8xf32, #tpu.memory_space<vmem>>, vector<256x8xf32>
    %c0_1 = arith.constant 0 : index
    %c0_2 = arith.constant 0 : index
    %1 = vector.load %arg3[%c0_1, %c0_2] : memref<8x64xf32, #tpu.memory_space<vmem>>, vector<8x64xf32>
    %cst = arith.constant dense<0.000000e+00> : vector<256x64xf32>
    %2 = tpu.matmul %0, %1, %cst {dimension_numbers = #tpu.dot_dimension_numbers<[1], [0], [0], [1], [0, 0, 1, 1], [], []>} : vector<256x8xf32>, vector<8x64xf32>, vector<256x64xf32> -> vector<256x64xf32>
    %c0_3 = arith.constant 0 : index
    %c0_4 = arith.constant 0 : index
    %3 = vector.load %arg4[%c0_3, %c0_4] : memref<1x64xf32, #tpu.memory_space<vmem>>, vector<1x64xf32>
    %4 = vector.broadcast %3 : vector<1x64xf32> to vector<256x64xf32>
    %5 = arith.addf %2, %4 : vector<256x64xf32>
    %c0_5 = arith.constant 0 : index
    %c0_6 = arith.constant 0 : index
    %6 = vector.load %arg5[%c0_5, %c0_6] : memref<1x64xf32, #tpu.memory_space<vmem>>, vector<1x64xf32>
    %c0_7 = arith.constant 0 : index
    %c0_8 = arith.constant 0 : index
    %7 = vector.load %arg6[%c0_7, %c0_8] : memref<1x64xf32, #tpu.memory_space<vmem>>, vector<1x64xf32>
    %cst_9 = arith.constant dense<0.000000e+00> : vector<256xf32>
    %8 = vector.multi_reduction <add>, %5, %cst_9 [1] : vector<256x64xf32> to vector<256xf32>
    %9 = vector.shape_cast %8 : vector<256xf32> to vector<256x1xf32>
    %cst_10 = arith.constant 6.400000e+01 : f32
    %10 = vector.broadcast %cst_10 : f32 to vector<256x1xf32>
    %11 = arith.divf %9, %10 : vector<256x1xf32>
    %12 = vector.broadcast %11 : vector<256x1xf32> to vector<256x64xf32>
    %13 = arith.subf %5, %12 : vector<256x64xf32>
    %14 = arith.mulf %13, %13 : vector<256x64xf32>
    %cst_11 = arith.constant dense<0.000000e+00> : vector<256xf32>
    %15 = vector.multi_reduction <add>, %14, %cst_11 [1] : vector<256x64xf32> to vector<256xf32>
    %16 = vector.shape_cast %15 : vector<256xf32> to vector<256x1xf32>
    %cst_12 = arith.constant 6.400000e+01 : f32
    %17 = vector.broadcast %cst_12 : f32 to vector<256x1xf32>
    %18 = arith.divf %16, %17 : vector<256x1xf32>
    %cst_13 = arith.constant 9.99999974E-6 : f32
    %19 = vector.broadcast %cst_13 : f32 to vector<256x1xf32>
    %20 = arith.addf %18, %19 : vector<256x1xf32>
    %21 = math.rsqrt %20 : vector<256x1xf32>
    %22 = vector.broadcast %21 : vector<256x1xf32> to vector<256x64xf32>
    %23 = arith.mulf %13, %22 : vector<256x64xf32>
    %24 = vector.broadcast %6 : vector<1x64xf32> to vector<256x64xf32>
    %25 = arith.mulf %23, %24 : vector<256x64xf32>
    %26 = vector.broadcast %7 : vector<1x64xf32> to vector<256x64xf32>
    %27 = arith.addf %25, %26 : vector<256x64xf32>
    %cst_14 = arith.constant 0.000000e+00 : f32
    %28 = vector.broadcast %cst_14 : f32 to vector<256x64xf32>
    %29 = arith.maximumf %27, %28 : vector<256x64xf32>
    %c0_15 = arith.constant 0 : index
    %c0_16 = arith.constant 0 : index
    %30 = vector.load %arg7[%c0_15, %c0_16] : memref<64x128xf32, #tpu.memory_space<vmem>>, vector<64x128xf32>
    %cst_17 = arith.constant dense<0.000000e+00> : vector<256x128xf32>
    %31 = tpu.matmul %29, %30, %cst_17 {dimension_numbers = #tpu.dot_dimension_numbers<[1], [0], [0], [1], [0, 0, 1, 1], [], []>} : vector<256x64xf32>, vector<64x128xf32>, vector<256x128xf32> -> vector<256x128xf32>
    %c0_18 = arith.constant 0 : index
    %c0_19 = arith.constant 0 : index
    %32 = vector.load %arg8[%c0_18, %c0_19] : memref<1x128xf32, #tpu.memory_space<vmem>>, vector<1x128xf32>
    %33 = vector.broadcast %32 : vector<1x128xf32> to vector<256x128xf32>
    %34 = arith.addf %31, %33 : vector<256x128xf32>
    %c0_20 = arith.constant 0 : index
    %c0_21 = arith.constant 0 : index
    %35 = vector.load %arg9[%c0_20, %c0_21] : memref<1x128xf32, #tpu.memory_space<vmem>>, vector<1x128xf32>
    %c0_22 = arith.constant 0 : index
    %c0_23 = arith.constant 0 : index
    %36 = vector.load %arg10[%c0_22, %c0_23] : memref<1x128xf32, #tpu.memory_space<vmem>>, vector<1x128xf32>
    %cst_24 = arith.constant dense<0.000000e+00> : vector<256xf32>
    %37 = vector.multi_reduction <add>, %34, %cst_24 [1] : vector<256x128xf32> to vector<256xf32>
    %38 = vector.shape_cast %37 : vector<256xf32> to vector<256x1xf32>
    %cst_25 = arith.constant 1.280000e+02 : f32
    %39 = vector.broadcast %cst_25 : f32 to vector<256x1xf32>
    %40 = arith.divf %38, %39 : vector<256x1xf32>
    %41 = vector.broadcast %40 : vector<256x1xf32> to vector<256x128xf32>
    %42 = arith.subf %34, %41 : vector<256x128xf32>
    %43 = arith.mulf %42, %42 : vector<256x128xf32>
    %cst_26 = arith.constant dense<0.000000e+00> : vector<256xf32>
    %44 = vector.multi_reduction <add>, %43, %cst_26 [1] : vector<256x128xf32> to vector<256xf32>
    %45 = vector.shape_cast %44 : vector<256xf32> to vector<256x1xf32>
    %cst_27 = arith.constant 1.280000e+02 : f32
    %46 = vector.broadcast %cst_27 : f32 to vector<256x1xf32>
    %47 = arith.divf %45, %46 : vector<256x1xf32>
    %cst_28 = arith.constant 9.99999974E-6 : f32
    %48 = vector.broadcast %cst_28 : f32 to vector<256x1xf32>
    %49 = arith.addf %47, %48 : vector<256x1xf32>
    %50 = math.rsqrt %49 : vector<256x1xf32>
    %51 = vector.broadcast %50 : vector<256x1xf32> to vector<256x128xf32>
    %52 = arith.mulf %42, %51 : vector<256x128xf32>
    %53 = vector.broadcast %35 : vector<1x128xf32> to vector<256x128xf32>
    %54 = arith.mulf %52, %53 : vector<256x128xf32>
    %55 = vector.broadcast %36 : vector<1x128xf32> to vector<256x128xf32>
    %56 = arith.addf %54, %55 : vector<256x128xf32>
    %cst_29 = arith.constant 0.000000e+00 : f32
    %57 = vector.broadcast %cst_29 : f32 to vector<256x128xf32>
    %58 = arith.maximumf %56, %57 : vector<256x128xf32>
    %c0_30 = arith.constant 0 : index
    %c0_31 = arith.constant 0 : index
    %59 = vector.load %arg11[%c0_30, %c0_31] : memref<128x256xf32, #tpu.memory_space<vmem>>, vector<128x256xf32>
    %cst_32 = arith.constant dense<0.000000e+00> : vector<256x256xf32>
    %60 = tpu.matmul %58, %59, %cst_32 {dimension_numbers = #tpu.dot_dimension_numbers<[1], [0], [0], [1], [0, 0, 1, 1], [], []>} : vector<256x128xf32>, vector<128x256xf32>, vector<256x256xf32> -> vector<256x256xf32>
    %c0_33 = arith.constant 0 : index
    %c0_34 = arith.constant 0 : index
    %61 = vector.load %arg12[%c0_33, %c0_34] : memref<1x256xf32, #tpu.memory_space<vmem>>, vector<1x256xf32>
    %62 = vector.broadcast %61 : vector<1x256xf32> to vector<256x256xf32>
    %63 = arith.addf %60, %62 : vector<256x256xf32>
    %c0_35 = arith.constant 0 : index
    %c0_36 = arith.constant 0 : index
    %64 = vector.load %arg13[%c0_35, %c0_36] : memref<1x256xf32, #tpu.memory_space<vmem>>, vector<1x256xf32>
    %c0_37 = arith.constant 0 : index
    %c0_38 = arith.constant 0 : index
    %65 = vector.load %arg14[%c0_37, %c0_38] : memref<1x256xf32, #tpu.memory_space<vmem>>, vector<1x256xf32>
    %cst_39 = arith.constant dense<0.000000e+00> : vector<256xf32>
    %66 = vector.multi_reduction <add>, %63, %cst_39 [1] : vector<256x256xf32> to vector<256xf32>
    %67 = vector.shape_cast %66 : vector<256xf32> to vector<256x1xf32>
    %cst_40 = arith.constant 2.560000e+02 : f32
    %68 = vector.broadcast %cst_40 : f32 to vector<256x1xf32>
    %69 = arith.divf %67, %68 : vector<256x1xf32>
    %70 = vector.broadcast %69 : vector<256x1xf32> to vector<256x256xf32>
    %71 = arith.subf %63, %70 : vector<256x256xf32>
    %72 = arith.mulf %71, %71 : vector<256x256xf32>
    %cst_41 = arith.constant dense<0.000000e+00> : vector<256xf32>
    %73 = vector.multi_reduction <add>, %72, %cst_41 [1] : vector<256x256xf32> to vector<256xf32>
    %74 = vector.shape_cast %73 : vector<256xf32> to vector<256x1xf32>
    %cst_42 = arith.constant 2.560000e+02 : f32
    %75 = vector.broadcast %cst_42 : f32 to vector<256x1xf32>
    %76 = arith.divf %74, %75 : vector<256x1xf32>
    %cst_43 = arith.constant 9.99999974E-6 : f32
    %77 = vector.broadcast %cst_43 : f32 to vector<256x1xf32>
    %78 = arith.addf %76, %77 : vector<256x1xf32>
    %79 = math.rsqrt %78 : vector<256x1xf32>
    %80 = vector.broadcast %79 : vector<256x1xf32> to vector<256x256xf32>
    %81 = arith.mulf %71, %80 : vector<256x256xf32>
    %82 = vector.broadcast %64 : vector<1x256xf32> to vector<256x256xf32>
    %83 = arith.mulf %81, %82 : vector<256x256xf32>
    %84 = vector.broadcast %65 : vector<1x256xf32> to vector<256x256xf32>
    %85 = arith.addf %83, %84 : vector<256x256xf32>
    %cst_44 = arith.constant 0.000000e+00 : f32
    %86 = vector.broadcast %cst_44 : f32 to vector<256x256xf32>
    %87 = arith.maximumf %85, %86 : vector<256x256xf32>
    %88 = vector.shape_cast %87 : vector<256x256xf32> to vector<2x128x256xf32>
    %cst_45 = arith.constant dense<0xFF800000> : vector<2x256xf32>
    %89 = vector.multi_reduction <maximumf>, %88, %cst_45 [1] : vector<2x128x256xf32> to vector<2x256xf32>
    %c0_46 = arith.constant 0 : index
    %c0_47 = arith.constant 0 : index
    %90 = vector.load %arg15[%c0_46, %c0_47] : memref<256x64xf32, #tpu.memory_space<vmem>>, vector<256x64xf32>
    %cst_48 = arith.constant dense<0.000000e+00> : vector<2x64xf32>
    %91 = tpu.matmul %89, %90, %cst_48 {dimension_numbers = #tpu.dot_dimension_numbers<[1], [0], [0], [1], [0, 0, 1, 1], [], []>} : vector<2x256xf32>, vector<256x64xf32>, vector<2x64xf32> -> vector<2x64xf32>
    %c0_49 = arith.constant 0 : index
    %c0_50 = arith.constant 0 : index
    %92 = vector.load %arg16[%c0_49, %c0_50] : memref<1x64xf32, #tpu.memory_space<vmem>>, vector<1x64xf32>
    %93 = vector.broadcast %92 : vector<1x64xf32> to vector<2x64xf32>
    %94 = arith.addf %91, %93 : vector<2x64xf32>
    %c0_51 = arith.constant 0 : index
    %c0_52 = arith.constant 0 : index
    %95 = vector.load %arg17[%c0_51, %c0_52] : memref<1x64xf32, #tpu.memory_space<vmem>>, vector<1x64xf32>
    %c0_53 = arith.constant 0 : index
    %c0_54 = arith.constant 0 : index
    %96 = vector.load %arg18[%c0_53, %c0_54] : memref<1x64xf32, #tpu.memory_space<vmem>>, vector<1x64xf32>
    %cst_55 = arith.constant dense<0.000000e+00> : vector<2xf32>
    %97 = vector.multi_reduction <add>, %94, %cst_55 [1] : vector<2x64xf32> to vector<2xf32>
    %98 = vector.shape_cast %97 : vector<2xf32> to vector<2x1xf32>
    %cst_56 = arith.constant 6.400000e+01 : f32
    %99 = vector.broadcast %cst_56 : f32 to vector<2x1xf32>
    %100 = arith.divf %98, %99 : vector<2x1xf32>
    %101 = vector.broadcast %100 : vector<2x1xf32> to vector<2x64xf32>
    %102 = arith.subf %94, %101 : vector<2x64xf32>
    %103 = arith.mulf %102, %102 : vector<2x64xf32>
    %cst_57 = arith.constant dense<0.000000e+00> : vector<2xf32>
    %104 = vector.multi_reduction <add>, %103, %cst_57 [1] : vector<2x64xf32> to vector<2xf32>
    %105 = vector.shape_cast %104 : vector<2xf32> to vector<2x1xf32>
    %cst_58 = arith.constant 6.400000e+01 : f32
    %106 = vector.broadcast %cst_58 : f32 to vector<2x1xf32>
    %107 = arith.divf %105, %106 : vector<2x1xf32>
    %cst_59 = arith.constant 9.99999974E-6 : f32
    %108 = vector.broadcast %cst_59 : f32 to vector<2x1xf32>
    %109 = arith.addf %107, %108 : vector<2x1xf32>
    %110 = math.rsqrt %109 : vector<2x1xf32>
    %111 = vector.broadcast %110 : vector<2x1xf32> to vector<2x64xf32>
    %112 = arith.mulf %102, %111 : vector<2x64xf32>
    %113 = vector.broadcast %95 : vector<1x64xf32> to vector<2x64xf32>
    %114 = arith.mulf %112, %113 : vector<2x64xf32>
    %115 = vector.broadcast %96 : vector<1x64xf32> to vector<2x64xf32>
    %116 = arith.addf %114, %115 : vector<2x64xf32>
    %c0_60 = arith.constant 0 : index
    %c0_61 = arith.constant 0 : index
    %117 = vector.load %arg19[%c0_60, %c0_61] : memref<96x128xf32, #tpu.memory_space<vmem>>, vector<32x128xf32>
    %c32 = arith.constant 32 : index
    %c0_62 = arith.constant 0 : index
    %118 = vector.load %arg19[%c32, %c0_62] : memref<96x128xf32, #tpu.memory_space<vmem>>, vector<64x128xf32>
    %c0_63 = arith.constant 0 : index
    %c0_64 = arith.constant 0 : index
    %119 = vector.load %arg1[%c0_63, %c0_64] : memref<2x32xf32, #tpu.memory_space<vmem>>, vector<2x32xf32>
    %cst_65 = arith.constant dense<0.000000e+00> : vector<2x128xf32>
    %120 = tpu.matmul %119, %117, %cst_65 {dimension_numbers = #tpu.dot_dimension_numbers<[1], [0], [0], [1], [0, 0, 1, 1], [], []>} : vector<2x32xf32>, vector<32x128xf32>, vector<2x128xf32> -> vector<2x128xf32>
    %cst_66 = arith.constant dense<0.000000e+00> : vector<2x128xf32>
    %121 = tpu.matmul %116, %118, %cst_66 {dimension_numbers = #tpu.dot_dimension_numbers<[1], [0], [0], [1], [0, 0, 1, 1], [], []>} : vector<2x64xf32>, vector<64x128xf32>, vector<2x128xf32> -> vector<2x128xf32>
    %122 = arith.addf %120, %121 : vector<2x128xf32>
    %c0_67 = arith.constant 0 : index
    %c0_68 = arith.constant 0 : index
    %123 = vector.load %arg20[%c0_67, %c0_68] : memref<1x128xf32, #tpu.memory_space<vmem>>, vector<1x128xf32>
    %124 = vector.broadcast %123 : vector<1x128xf32> to vector<2x128xf32>
    %125 = arith.addf %122, %124 : vector<2x128xf32>
    %cst_69 = arith.constant 0.000000e+00 : f32
    %126 = vector.broadcast %cst_69 : f32 to vector<2x128xf32>
    %127 = arith.maximumf %125, %126 : vector<2x128xf32>
    %c0_70 = arith.constant 0 : index
    %c0_71 = arith.constant 0 : index
    %128 = vector.load %arg21[%c0_70, %c0_71] : memref<128x128xf32, #tpu.memory_space<vmem>>, vector<128x128xf32>
    %cst_72 = arith.constant dense<0.000000e+00> : vector<2x128xf32>
    %129 = tpu.matmul %127, %128, %cst_72 {dimension_numbers = #tpu.dot_dimension_numbers<[1], [0], [0], [1], [0, 0, 1, 1], [], []>} : vector<2x128xf32>, vector<128x128xf32>, vector<2x128xf32> -> vector<2x128xf32>
    %c0_73 = arith.constant 0 : index
    %c0_74 = arith.constant 0 : index
    %130 = vector.load %arg22[%c0_73, %c0_74] : memref<1x128xf32, #tpu.memory_space<vmem>>, vector<1x128xf32>
    %131 = vector.broadcast %130 : vector<1x128xf32> to vector<2x128xf32>
    %132 = arith.addf %129, %131 : vector<2x128xf32>
    %cst_75 = arith.constant 0.000000e+00 : f32
    %133 = vector.broadcast %cst_75 : f32 to vector<2x128xf32>
    %134 = arith.maximumf %132, %133 : vector<2x128xf32>
    %c0_76 = arith.constant 0 : index
    %c0_77 = arith.constant 0 : index
    %135 = vector.load %arg23[%c0_76, %c0_77] : memref<128x8xf32, #tpu.memory_space<vmem>>, vector<128x8xf32>
    %cst_78 = arith.constant dense<0.000000e+00> : vector<2x8xf32>
    %136 = tpu.matmul %134, %135, %cst_78 {dimension_numbers = #tpu.dot_dimension_numbers<[1], [0], [0], [1], [0, 0, 1, 1], [], []>} : vector<2x128xf32>, vector<128x8xf32>, vector<2x8xf32> -> vector<2x8xf32>
    %c0_79 = arith.constant 0 : index
    %c0_80 = arith.constant 0 : index
    %137 = vector.load %arg24[%c0_79, %c0_80] : memref<1x8xf32, #tpu.memory_space<vmem>>, vector<1x8xf32>
    %138 = vector.broadcast %137 : vector<1x8xf32> to vector<2x8xf32>
    %139 = arith.addf %136, %138 : vector<2x8xf32>
    %c0_81 = arith.constant 0 : index
    %c0_82 = arith.constant 0 : index
    %140 = vector.load %arg25[%c0_81, %c0_82] : memref<1x8xf32, #tpu.memory_space<vmem>>, vector<1x8xf32>
    %141 = math.exp %140 : vector<1x8xf32>
    %c0_83 = arith.constant 0 : index
    %c0_84 = arith.constant 0 : index
    %142 = vector.load %arg2[%c0_83, %c0_84] : memref<2x8xf32, #tpu.memory_space<vmem>>, vector<2x8xf32>
    %143 = vector.broadcast %141 : vector<1x8xf32> to vector<2x8xf32>
    %144 = arith.mulf %143, %142 : vector<2x8xf32>
    %145 = arith.addf %139, %144 : vector<2x8xf32>
    %c0_85 = arith.constant 0 : index
    %c0_86 = arith.constant 0 : index
    %146 = vector.load %arg26[%c0_85, %c0_86] : memref<2x8xf32, #tpu.memory_space<vmem>>, vector<2x8xf32>
    tpu.vector_store %arg26[%c0_85, %c0_86], %145 {strides = array<i32>} : memref<2x8xf32, #tpu.memory_space<vmem>>, vector<2x8xf32>,
    return
  }
}

</mosaic_0001>

<llo_original>
// kernel: tpu_custom_call.1
$region0: #{tpu_custom_call.1}
  #allocation0 [shape = 'u32[]', space=smem, size = 0x4, offset = 0x4, fixed_abs, tag = 'smem constant byte address 0x4 - core index']
  #allocation1 [shape = 'u32[144,128]{1,0:T(1,128)}', space=vmem, size = 0x12000, scoped, tag = 'internal scratch']
  %s0 = inlined_call_operand.vmem [shape: f32[256,8], index: 0, kind: input, shape index: {}]
  %s1 = inlined_call_operand.vmem [shape: f32[2,32], index: 1, kind: input, shape index: {}]
  %s2 = inlined_call_operand.vmem [shape: f32[2,8], index: 2, kind: input, shape index: {}]
  %s3 = inlined_call_operand.vmem [shape: f32[8,64], index: 3, kind: input, shape index: {}]
  %s4 = inlined_call_operand.vmem [shape: f32[1,64], index: 4, kind: input, shape index: {}]
  %s5 = inlined_call_operand.vmem [shape: f32[1,64], index: 5, kind: input, shape index: {}]
  %s6 = inlined_call_operand.vmem [shape: f32[1,64], index: 6, kind: input, shape index: {}]
  %s7 = inlined_call_operand.vmem [shape: f32[64,128], index: 7, kind: input, shape index: {}]
  %s8 = inlined_call_operand.vmem [shape: f32[1,128], index: 8, kind: input, shape index: {}]
  %s9 = inlined_call_operand.vmem [shape: f32[1,128], index: 9, kind: input, shape index: {}]
  %s10 = inlined_call_operand.vmem [shape: f32[1,128], index: 10, kind: input, shape index: {}]
  %s11 = inlined_call_operand.vmem [shape: f32[128,256], index: 11, kind: input, shape index: {}]
  %s12 = inlined_call_operand.vmem [shape: f32[1,256], index: 12, kind: input, shape index: {}]
  %s13 = inlined_call_operand.vmem [shape: f32[1,256], index: 13, kind: input, shape index: {}]
  %s14 = inlined_call_operand.vmem [shape: f32[1,256], index: 14, kind: input, shape index: {}]
  %s15 = inlined_call_operand.vmem [shape: f32[256,64], index: 15, kind: input, shape index: {}]
  %s16 = inlined_call_operand.vmem [shape: f32[1,64], index: 16, kind: input, shape index: {}]
  %s17 = inlined_call_operand.vmem [shape: f32[1,64], index: 17, kind: input, shape index: {}]
  %s18 = inlined_call_operand.vmem [shape: f32[1,64], index: 18, kind: input, shape index: {}]
  %s19 = inlined_call_operand.vmem [shape: f32[96,128], index: 19, kind: input, shape index: {}]
  %s20 = inlined_call_operand.vmem [shape: f32[1,128], index: 20, kind: input, shape index: {}]
  %s21 = inlined_call_operand.vmem [shape: f32[128,128], index: 21, kind: input, shape index: {}]
  %s22 = inlined_call_operand.vmem [shape: f32[1,128], index: 22, kind: input, shape index: {}]
  %s23 = inlined_call_operand.vmem [shape: f32[128,8], index: 23, kind: input, shape index: {}]
  %s24 = inlined_call_operand.vmem [shape: f32[1,8], index: 24, kind: input, shape index: {}]
  %s25 = inlined_call_operand.vmem [shape: f32[1,8], index: 25, kind: input, shape index: {}]
  %s26 = inlined_call_operand.hbm [shape: f32[2,8], index: 26, kind: output, shape index: {}]
  %s27 = sld [smem:[#allocation0]]
  $region114: #{tpu_custom_call.1} parent=0
    _
  %s29 = ssub.s32 1, %s27
  %s30 = scalar_select 0, %s29, %s27
  $region1: #{tpu_custom_call.1} parent=0
    #allocation2 [shape = 'u8[1024]{0}', space=vmem, size = 0x400, scoped, tag = 'output window, operand 0, single buffered']
    #allocation3 [shape = 's32[1]{0}', space=sflag, size = 0x4, scoped, tag = 'scoped memory for tpu_custom_call.1']
    %31 = vsyncpa [#allocation3], 0
    // Predicated region
    $region2: #{tpu_custom_call.1} parent=1 // pred_check
      _
    $region3: #{tpu_custom_call.1} parent=1 // pred_check_branch
      %33 = sbr.rel (0) target = $region5
    $region4: #{tpu_custom_call.1} parent=1 // pred_region
      _
    $region5: #{tpu_custom_call.1} parent=1 // pred_fallthru
      _
    // Predicated region
    $region6: #{tpu_custom_call.1} parent=1 // pred_check
      _
    $region7: #{tpu_custom_call.1} parent=1 // pred_check_branch
      %35 = sbr.rel (0) target = $region9
    $region8: #{tpu_custom_call.1} parent=1 // pred_region
      _
    $region9: #{tpu_custom_call.1} parent=1 // pred_fallthru
      _
    // Predicated region
    $region10: #{tpu_custom_call.1} parent=1 // pred_check
      _
    $region11: #{tpu_custom_call.1} parent=1 // pred_check_branch
      %37 = sbr.rel (0) target = $region13
    $region12: #{tpu_custom_call.1} parent=1 // pred_region
      _
    $region13: #{tpu_custom_call.1} parent=1 // pred_fallthru
      _
    // Predicated region
    $region14: #{tpu_custom_call.1} parent=1 // pred_check
      _
    $region15: #{tpu_custom_call.1} parent=1 // pred_check_branch
      %39 = sbr.rel (0) target = $region17
    $region16: #{tpu_custom_call.1} parent=1 // pred_region
      _
    $region17: #{tpu_custom_call.1} parent=1 // pred_fallthru
      _
    // Predicated region
    $region18: #{tpu_custom_call.1} parent=1 // pred_check
      _
    $region19: #{tpu_custom_call.1} parent=1 // pred_check_branch
      %41 = sbr.rel (0) target = $region21
    $region20: #{tpu_custom_call.1} parent=1 // pred_region
      _
    $region21: #{tpu_custom_call.1} parent=1 // pred_fallthru
      _
    // Predicated region
    $region22: #{tpu_custom_call.1} parent=1 // pred_check
      _
    $region23: #{tpu_custom_call.1} parent=1 // pred_check_branch
      %43 = sbr.rel (0) target = $region25
    $region24: #{tpu_custom_call.1} parent=1 // pred_region
      _
    $region25: #{tpu_custom_call.1} parent=1 // pred_fallthru
      _
    // Predicated region
    $region26: #{tpu_custom_call.1} parent=1 // pred_check
      _
    $region27: #{tpu_custom_call.1} parent=1 // pred_check_branch
      %45 = sbr.rel (0) target = $region29
    $region28: #{tpu_custom_call.1} parent=1 // pred_region
      _
    $region29: #{tpu_custom_call.1} parent=1 // pred_fallthru
      _
    // Predicated region
    $region30: #{tpu_custom_call.1} parent=1 // pred_check
      _
    $region31: #{tpu_custom_call.1} parent=1 // pred_check_branch
      %47 = sbr.rel (0) target = $region33
    $region32: #{tpu_custom_call.1} parent=1 // pred_region
      _
    $region33: #{tpu_custom_call.1} parent=1 // pred_fallthru
      _
    // Predicated region
    $region34: #{tpu_custom_call.1} parent=1 // pred_check
      _
    $region35: #{tpu_custom_call.1} parent=1 // pred_check_branch
      %49 = sbr.rel (0) target = $region37
    $region36: #{tpu_custom_call.1} parent=1 // pred_region
      _
    $region37: #{tpu_custom_call.1} parent=1 // pred_fallthru
      _
    // Predicated region
    $region38: #{tpu_custom_call.1} parent=1 // pred_check
      _
    $region39: #{tpu_custom_call.1} parent=1 // pred_check_branch
      %51 = sbr.rel (0) target = $region41
    $region40: #{tpu_custom_call.1} parent=1 // pred_region
      _
    $region41: #{tpu_custom_call.1} parent=1 // pred_fallthru
      _
    // Predicated region
    $region42: #{tpu_custom_call.1} parent=1 // pred_check
      _
    $region43: #{tpu_custom_call.1} parent=1 // pred_check_branch
      %53 = sbr.rel (0) target = $region45
    $region44: #{tpu_custom_call.1} parent=1 // pred_region
      _
    $region45: #{tpu_custom_call.1} parent=1 // pred_fallthru
      _
    // Predicated region
    $region46: #{tpu_custom_call.1} parent=1 // pred_check
      _
    $region47: #{tpu_custom_call.1} parent=1 // pred_check_branch
      %55 = sbr.rel (0) target = $region49
    $region48: #{tpu_custom_call.1} parent=1 // pred_region
      _
    $region49: #{tpu_custom_call.1} parent=1 // pred_fallthru
      _
    // Predicated region
    $region50: #{tpu_custom_call.1} parent=1 // pred_check
      _
    $region51: #{tpu_custom_call.1} parent=1 // pred_check_branch
      %57 = sbr.rel (0) target = $region53
    $region52: #{tpu_custom_call.1} parent=1 // pred_region
      _
    $region53: #{tpu_custom_call.1} parent=1 // pred_fallthru
      _
    // Predicated region
    $region54: #{tpu_custom_call.1} parent=1 // pred_check
      _
    $region55: #{tpu_custom_call.1} parent=1 // pred_check_branch
      %59 = sbr.rel (0) target = $region57
    $region56: #{tpu_custom_call.1} parent=1 // pred_region
      _
    $region57: #{tpu_custom_call.1} parent=1 // pred_fallthru
      _
    // Predicated region
    $region58: #{tpu_custom_call.1} parent=1 // pred_check
      _
    $region59: #{tpu_custom_call.1} parent=1 // pred_check_branch
      %61 = sbr.rel (0) target = $region61
    $region60: #{tpu_custom_call.1} parent=1 // pred_region
      _
    $region61: #{tpu_custom_call.1} parent=1 // pred_fallthru
      _
    // Predicated region
    $region62: #{tpu_custom_call.1} parent=1 // pred_check
      _
    $region63: #{tpu_custom_call.1} parent=1 // pred_check_branch
      %63 = sbr.rel (0) target = $region65
    $region64: #{tpu_custom_call.1} parent=1 // pred_region
      _
    $region65: #{tpu_custom_call.1} parent=1 // pred_fallthru
      _
    // Predicated region
    $region66: #{tpu_custom_call.1} parent=1 // pred_check
      _
    $region67: #{tpu_custom_call.1} parent=1 // pred_check_branch
      %65 = sbr.rel (0) target = $region69
    $region68: #{tpu_custom_call.1} parent=1 // pred_region
      _
    $region69: #{tpu_custom_call.1} parent=1 // pred_fallthru
      _
    // Predicated region
    $region70: #{tpu_custom_call.1} parent=1 // pred_check
      _
    $region71: #{tpu_custom_call.1} parent=1 // pred_check_branch
      %67 = sbr.rel (0) target = $region73
    $region72: #{tpu_custom_call.1} parent=1 // pred_region
      _
    $region73: #{tpu_custom_call.1} parent=1 // pred_fallthru
      _
    // Predicated region
    $region74: #{tpu_custom_call.1} parent=1 // pred_check
      _
    $region75: #{tpu_custom_call.1} parent=1 // pred_check_branch
      %69 = sbr.rel (0) target = $region77
    $region76: #{tpu_custom_call.1} parent=1 // pred_region
      _
    $region77: #{tpu_custom_call.1} parent=1 // pred_fallthru
      _
    // Predicated region
    $region78: #{tpu_custom_call.1} parent=1 // pred_check
      _
    $region79: #{tpu_custom_call.1} parent=1 // pred_check_branch
      %71 = sbr.rel (0) target = $region81
    $region80: #{tpu_custom_call.1} parent=1 // pred_region
      _
    $region81: #{tpu_custom_call.1} parent=1 // pred_fallthru
      _
    // Predicated region
    $region82: #{tpu_custom_call.1} parent=1 // pred_check
      _
    $region83: #{tpu_custom_call.1} parent=1 // pred_check_branch
      %73 = sbr.rel (0) target = $region85
    $region84: #{tpu_custom_call.1} parent=1 // pred_region
      _
    $region85: #{tpu_custom_call.1} parent=1 // pred_fallthru
      _
    // Predicated region
    $region86: #{tpu_custom_call.1} parent=1 // pred_check
      _
    $region87: #{tpu_custom_call.1} parent=1 // pred_check_branch
      %75 = sbr.rel (0) target = $region89
    $region88: #{tpu_custom_call.1} parent=1 // pred_region
      _
    $region89: #{tpu_custom_call.1} parent=1 // pred_fallthru
      _
    // Predicated region
    $region90: #{tpu_custom_call.1} parent=1 // pred_check
      _
    $region91: #{tpu_custom_call.1} parent=1 // pred_check_branch
      %77 = sbr.rel (0) target = $region93
    $region92: #{tpu_custom_call.1} parent=1 // pred_region
      _
    $region93: #{tpu_custom_call.1} parent=1 // pred_fallthru
      _
    // Predicated region
    $region94: #{tpu_custom_call.1} parent=1 // pred_check
      _
    $region95: #{tpu_custom_call.1} parent=1 // pred_check_branch
      %79 = sbr.rel (0) target = $region97
    $region96: #{tpu_custom_call.1} parent=1 // pred_region
      _
    $region97: #{tpu_custom_call.1} parent=1 // pred_fallthru
      _
    // Predicated region
    $region98: #{tpu_custom_call.1} parent=1 // pred_check
      _
    $region99: #{tpu_custom_call.1} parent=1 // pred_check_branch
      %81 = sbr.rel (0) target = $region101
    $region100: #{tpu_custom_call.1} parent=1 // pred_region
      _
    $region101: #{tpu_custom_call.1} parent=1 // pred_fallthru
      _
    // Predicated region
    $region102: #{tpu_custom_call.1} parent=1 // pred_check
      _
    $region103: #{tpu_custom_call.1} parent=1 // pred_check_branch
      %83 = sbr.rel (0) target = $region105
    $region104: #{tpu_custom_call.1} parent=1 // pred_region
      _
    $region105: #{tpu_custom_call.1} parent=1 // pred_fallthru
      _
    %v84 = vld [vmem:[%s0] sm:$0xff]
    %v85 = vld [vmem:[%s0 + $0x8] sm:$0xff]
    %v86 = vld [vmem:[%s0 + $0x10] sm:$0xff]
    %v87 = vld [vmem:[%s0 + $0x18] sm:$0xff]
    %v88 = vld [vmem:[%s0 + $0x20] sm:$0xff]
    %v89 = vld [vmem:[%s0 + $0x28] sm:$0xff]
    %v90 = vld [vmem:[%s0 + $0x30] sm:$0xff]
    %v91 = vld [vmem:[%s0 + $0x38] sm:$0xff]
    %v92 = vld [vmem:[%s0 + $0x40] sm:$0xff]
    %v93 = vld [vmem:[%s0 + $0x48] sm:$0xff]
    %v94 = vld [vmem:[%s0 + $0x50] sm:$0xff]
    %v95 = vld [vmem:[%s0 + $0x58] sm:$0xff]
    %v96 = vld [vmem:[%s0 + $0x60] sm:$0xff]
    %v97 = vld [vmem:[%s0 + $0x68] sm:$0xff]
    %v98 = vld [vmem:[%s0 + $0x70] sm:$0xff]
    %v99 = vld [vmem:[%s0 + $0x78] sm:$0xff]
    %v100 = vld [vmem:[%s0 + $0x80] sm:$0xff]
    %v101 = vld [vmem:[%s0 + $0x88] sm:$0xff]
    %v102 = vld [vmem:[%s0 + $0x90] sm:$0xff]
    %v103 = vld [vmem:[%s0 + $0x98] sm:$0xff]
    %v104 = vld [vmem:[%s0 + $0xa0] sm:$0xff]
    %v105 = vld [vmem:[%s0 + $0xa8] sm:$0xff]
    %v106 = vld [vmem:[%s0 + $0xb0] sm:$0xff]
    %v107 = vld [vmem:[%s0 + $0xb8] sm:$0xff]
    %v108 = vld [vmem:[%s0 + $0xc0] sm:$0xff]
    %v109 = vld [vmem:[%s0 + $0xc8] sm:$0xff]
    %v110 = vld [vmem:[%s0 + $0xd0] sm:$0xff]
    %v111 = vld [vmem:[%s0 + $0xd8] sm:$0xff]
    %v112 = vld [vmem:[%s0 + $0xe0] sm:$0xff]
    %v113 = vld [vmem:[%s0 + $0xe8] sm:$0xff]
    %v114 = vld [vmem:[%s0 + $0xf0] sm:$0xff]
    %v115 = vld [vmem:[%s0 + $0xf8] sm:$0xff]
    %v116 = vld [vmem:[%s3] sm:$0xff]
    %v117 = vld [vmem:[%s4] sm:$0x1]
    %v119 = vlaneseq
    %v120 = vshrl.u32 %v119, 7
    %v121 = vsub.s32 0, %v120
    %v122 = vrot.slane %v117, %v121
    %vm124 = vcmask 64512
    %v126 = vsel %vm124, %v84, 0
    %v129 = vsel %vm124, %v85, 0
    %v132 = vsel %vm124, %v86, 0
    %v135 = vsel %vm124, %v87, 0
    %v138 = vsel %vm124, %v88, 0
    %v141 = vsel %vm124, %v89, 0
    %v144 = vsel %vm124, %v90, 0
    %v147 = vsel %vm124, %v91, 0
    %v150 = vsel %vm124, %v92, 0
    %v153 = vsel %vm124, %v93, 0
    %v156 = vsel %vm124, %v94, 0
    %v159 = vsel %vm124, %v95, 0
    %v162 = vsel %vm124, %v96, 0
    %v165 = vsel %vm124, %v97, 0
    %v168 = vsel %vm124, %v98, 0
    %v171 = vsel %vm124, %v99, 0
    %v174 = vsel %vm124, %v100, 0
    %v177 = vsel %vm124, %v101, 0
    %v180 = vsel %vm124, %v102, 0
    %v183 = vsel %vm124, %v103, 0
    %v186 = vsel %vm124, %v104, 0
    %v189 = vsel %vm124, %v105, 0
    %v192 = vsel %vm124, %v106, 0
    %v195 = vsel %vm124, %v107, 0
    %v198 = vsel %vm124, %v108, 0
    %v201 = vsel %vm124, %v109, 0
    %v204 = vsel %vm124, %v110, 0
    %v207 = vsel %vm124, %v111, 0
    %v210 = vsel %vm124, %v112, 0
    %v213 = vsel %vm124, %v113, 0
    %v216 = vsel %vm124, %v114, 0
    %v219 = vsel %vm124, %v115, 0
    %221 = vmatprep.subr.mxu0 0.0
    %222 = vmatpush1.msra.mxu0 %v116
    %223 = vmatprep.subr.mxu0 0.0
    %224 = vmatpush1.msra.mxu0 0.0
    %225 = vmatprep.subr.mxu0 0.0
    %226 = vmatpush1.msra.mxu0 0.0
    %227 = vmatprep.subr.mxu0 0.0
    %228 = vmatpush1.msra.mxu0 0.0
    %229 = vmatprep.subr.mxu0 0.0
    %230 = vmatpush1.msra.mxu0 0.0
    %231 = vmatprep.subr.mxu0 0.0
    %232 = vmatpush1.msra.mxu0 0.0
    %233 = vmatprep.subr.mxu0 0.0
    %234 = vmatpush1.msra.mxu0 0.0
    %235 = vmatprep.subr.mxu0 0.0
    %236 = vmatpush1.msra.mxu0 0.0
    %237 = vmatprep.subr.mxu0 0.0
    %238 = vmatpush1.msra.mxu0 0.0
    %239 = vmatprep.subr.mxu0 0.0
    %240 = vmatpush1.msra.mxu0 0.0
    %241 = vmatprep.subr.mxu0 0.0
    %242 = vmatpush1.msra.mxu0 0.0
    %243 = vmatprep.subr.mxu0 0.0
    %244 = vmatpush1.msra.mxu0 0.0
    %245 = vmatprep.subr.mxu0 0.0
    %246 = vmatpush1.msra.mxu0 0.0
    %247 = vmatprep.subr.mxu0 0.0
    %248 = vmatpush1.msra.mxu0 0.0
    %249 = vmatprep.subr.mxu0 0.0
    %250 = vmatpush1.msra.mxu0 0.0
    %251 = vmatprep.subr.mxu0 0.0
    %252 = vmatpush1.msra.mxu0 0.0
    %253 = vmatprep.subr.mxu0 0.0
    %254 = vmatpush1.msra.mxu0 0.0
    %255 = vmatprep.subr.mxu0 0.0
    %256 = vmatpush1.msra.mxu0 0.0
    %257 = vmatprep.subr.mxu0 0.0
    %258 = vmatpush1.msra.mxu0 0.0
    %259 = vmatprep.subr.mxu0 0.0
    %260 = vmatpush1.msra.mxu0 0.0
    %261 = vmatprep.subr.mxu0 0.0
    %262 = vmatpush1.msra.mxu0 0.0
    %263 = vmatprep.subr.mxu0 0.0
    %264 = vmatpush1.msra.mxu0 0.0
    %265 = vmatprep.subr.mxu0 0.0
    %266 = vmatpush1.msra.mxu0 0.0
    %267 = vmatprep.subr.mxu0 0.0
    %268 = vmatpush1.msra.mxu0 0.0
    %269 = vmatprep.subr.mxu0 0.0
    %270 = vmatpush1.msra.mxu0 0.0
    %271 = vmatprep.subr.mxu0 0.0
    %272 = vmatpush1.msra.mxu0 0.0
    %273 = vmatprep.subr.mxu0 0.0
    %274 = vmatpush1.msra.mxu0 0.0
    %275 = vmatprep.subr.mxu0 0.0
    %276 = vmatpush1.msra.mxu0 0.0
    %277 = vmatprep.subr.mxu0 0.0
    %278 = vmatpush1.msra.mxu0 0.0
    %279 = vmatprep.subr.mxu0 0.0
    %280 = vmatpush1.msra.mxu0 0.0
    %281 = vmatprep.subr.mxu0 0.0
    %282 = vmatpush1.msra.mxu0 0.0
    %283 = vmatprep.subr.mxu0 0.0
    %284 = vmatpush1.msra.mxu0 0.0
    %285 = vmatprep.mubr.f32.mxu0 0.0
    %286 = vmatmul.mubr.f32.gmra.mrb[0].mxu0 %v126
    %v287 = vpop.f32.mrb[0].mxu0
    %v288 = vadd.f32 %v122, %v287
    %v289 = vpop.f32.mrb[0].mxu0
    %290 = vmatprep.mubr.f32.mxu0 0.0
    %291 = vmatmul.mubr.f32.gmra.mrb[0].mxu0 %v129
    %v292 = vpop.f32.mrb[0].mxu0
    %v293 = vadd.f32 %v122, %v292
    %v294 = vpop.f32.mrb[0].mxu0
    %295 = vmatprep.mubr.f32.mxu0 0.0
    %296 = vmatmul.mubr.f32.gmra.mrb[0].mxu0 %v132
    %v297 = vpop.f32.mrb[0].mxu0
    %v298 = vadd.f32 %v122, %v297
    %v299 = vpop.f32.mrb[0].mxu0
    %300 = vmatprep.mubr.f32.mxu0 0.0
    %301 = vmatmul.mubr.f32.gmra.mrb[0].mxu0 %v135
    %v302 = vpop.f32.mrb[0].mxu0
    %v303 = vadd.f32 %v122, %v302
    %v304 = vpop.f32.mrb[0].mxu0
    %305 = vmatprep.mubr.f32.mxu0 0.0
    %306 = vmatmul.mubr.f32.gmra.mrb[0].mxu0 %v138
    %v307 = vpop.f32.mrb[0].mxu0
    %v308 = vadd.f32 %v122, %v307
    %v309 = vpop.f32.mrb[0].mxu0
    %310 = vmatprep.mubr.f32.mxu0 0.0
    %311 = vmatmul.mubr.f32.gmra.mrb[0].mxu0 %v141
    %v312 = vpop.f32.mrb[0].mxu0
    %v313 = vadd.f32 %v122, %v312
    %v314 = vpop.f32.mrb[0].mxu0
    %315 = vmatprep.mubr.f32.mxu0 0.0
    %316 = vmatmul.mubr.f32.gmra.mrb[0].mxu0 %v144
    %v317 = vpop.f32.mrb[0].mxu0
    %v318 = vadd.f32 %v122, %v317
    %v319 = vpop.f32.mrb[0].mxu0
    %320 = vmatprep.mubr.f32.mxu0 0.0
    %321 = vmatmul.mubr.f32.gmra.mrb[0].mxu0 %v147
    %v322 = vpop.f32.mrb[0].mxu0
    %v323 = vadd.f32 %v122, %v322
    %v324 = vpop.f32.mrb[0].mxu0
    %325 = vmatprep.mubr.f32.mxu0 0.0
    %326 = vmatmul.mubr.f32.gmra.mrb[0].mxu0 %v150
    %v327 = vpop.f32.mrb[0].mxu0
    %v328 = vadd.f32 %v122, %v327
    %v329 = vpop.f32.mrb[0].mxu0
    %330 = vmatprep.mubr.f32.mxu0 0.0
    %331 = vmatmul.mubr.f32.gmra.mrb[0].mxu0 %v153
    %v332 = vpop.f32.mrb[0].mxu0
    %v333 = vadd.f32 %v122, %v332
    %v334 = vpop.f32.mrb[0].mxu0
    %335 = vmatprep.mubr.f32.mxu0 0.0
    %336 = vmatmul.mubr.f32.gmra.mrb[0].mxu0 %v156
    %v337 = vpop.f32.mrb[0].mxu0
    %v338 = vadd.f32 %v122, %v337
    %v339 = vpop.f32.mrb[0].mxu0
    %340 = vmatprep.mubr.f32.mxu0 0.0
    %341 = vmatmul.mubr.f32.gmra.mrb[0].mxu0 %v159
    %v342 = vpop.f32.mrb[0].mxu0
    %v343 = vadd.f32 %v122, %v342
    %v344 = vpop.f32.mrb[0].mxu0
    %345 = vmatprep.mubr.f32.mxu0 0.0
    %346 = vmatmul.mubr.f32.gmra.mrb[0].mxu0 %v162
    %v347 = vpop.f32.mrb[0].mxu0
    %v348 = vadd.f32 %v122, %v347
    %v349 = vpop.f32.mrb[0].mxu0
    %350 = vmatprep.mubr.f32.mxu0 0.0
    %351 = vmatmul.mubr.f32.gmra.mrb[0].mxu0 %v165
    %v352 = vpop.f32.mrb[0].mxu0
    %v353 = vadd.f32 %v122, %v352
    %v354 = vpop.f32.mrb[0].mxu0
    %355 = vmatprep.mubr.f32.mxu0 0.0
    %356 = vmatmul.mubr.f32.gmra.mrb[0].mxu0 %v168
    %v357 = vpop.f32.mrb[0].mxu0
    %v358 = vadd.f32 %v122, %v357
    %v359 = vpop.f32.mrb[0].mxu0
    %360 = vmatprep.mubr.f32.mxu0 0.0
    %361 = vmatmul.mubr.f32.gmra.mrb[0].mxu0 %v171
    %v362 = vpop.f32.mrb[0].mxu0
    %v363 = vadd.f32 %v122, %v362
    %v364 = vpop.f32.mrb[0].mxu0
    %365 = vmatprep.mubr.f32.mxu0 0.0
    %366 = vmatmul.mubr.f32.gmra.mrb[0].mxu0 %v174
    %v367 = vpop.f32.mrb[0].mxu0
    %v368 = vadd.f32 %v122, %v367
    %v369 = vpop.f32.mrb[0].mxu0
    %370 = vmatprep.mubr.f32.mxu0 0.0
    %371 = vmatmul.mubr.f32.gmra.mrb[0].mxu0 %v177
    %v372 = vpop.f32.mrb[0].mxu0
    %v373 = vadd.f32 %v122, %v372
    %v374 = vpop.f32.mrb[0].mxu0
    %375 = vmatprep.mubr.f32.mxu0 0.0
    %376 = vmatmul.mubr.f32.gmra.mrb[0].mxu0 %v180
    %v377 = vpop.f32.mrb[0].mxu0
    %v378 = vadd.f32 %v122, %v377
    %v379 = vpop.f32.mrb[0].mxu0
    %380 = vmatprep.mubr.f32.mxu0 0.0
    %381 = vmatmul.mubr.f32.gmra.mrb[0].mxu0 %v183
    %v382 = vpop.f32.mrb[0].mxu0
    %v383 = vadd.f32 %v122, %v382
    %v384 = vpop.f32.mrb[0].mxu0
    %385 = vmatprep.mubr.f32.mxu0 0.0
    %386 = vmatmul.mubr.f32.gmra.mrb[0].mxu0 %v186
    %v387 = vpop.f32.mrb[0].mxu0
    %v388 = vadd.f32 %v122, %v387
    %v389 = vpop.f32.mrb[0].mxu0
    %390 = vmatprep.mubr.f32.mxu0 0.0
    %391 = vmatmul.mubr.f32.gmra.mrb[0].mxu0 %v189
    %v392 = vpop.f32.mrb[0].mxu0
    %v393 = vadd.f32 %v122, %v392
    %v394 = vpop.f32.mrb[0].mxu0
    %395 = vmatprep.mubr.f32.mxu0 0.0
    %396 = vmatmul.mubr.f32.gmra.mrb[0].mxu0 %v192
    %v397 = vpop.f32.mrb[0].mxu0
    %v398 = vadd.f32 %v122, %v397
    %v399 = vpop.f32.mrb[0].mxu0
    %400 = vmatprep.mubr.f32.mxu0 0.0
    %401 = vmatmul.mubr.f32.gmra.mrb[0].mxu0 %v195
    %v402 = vpop.f32.mrb[0].mxu0
    %v403 = vadd.f32 %v122, %v402
    %v404 = vpop.f32.mrb[0].mxu0
    %405 = vmatprep.mubr.f32.mxu0 0.0
    %406 = vmatmul.mubr.f32.gmra.mrb[0].mxu0 %v198
    %v407 = vpop.f32.mrb[0].mxu0
    %v408 = vadd.f32 %v122, %v407
    %v409 = vpop.f32.mrb[0].mxu0
    %410 = vmatprep.mubr.f32.mxu0 0.0
    %411 = vmatmul.mubr.f32.gmra.mrb[0].mxu0 %v201
    %v412 = vpop.f32.mrb[0].mxu0
    %v413 = vadd.f32 %v122, %v412
    %v414 = vpop.f32.mrb[0].mxu0
    %415 = vmatprep.mubr.f32.mxu0 0.0
    %416 = vmatmul.mubr.f32.gmra.mrb[0].mxu0 %v204
    %v417 = vpop.f32.mrb[0].mxu0
    %v418 = vadd.f32 %v122, %v417
    %v419 = vpop.f32.mrb[0].mxu0
    %420 = vmatprep.mubr.f32.mxu0 0.0
    %421 = vmatmul.mubr.f32.gmra.mrb[0].mxu0 %v207
    %v422 = vpop.f32.mrb[0].mxu0
    %v423 = vadd.f32 %v122, %v422
    %v424 = vpop.f32.mrb[0].mxu0
    %425 = vmatprep.mubr.f32.mxu0 0.0
    %426 = vmatmul.mubr.f32.gmra.mrb[0].mxu0 %v210
    %v427 = vpop.f32.mrb[0].mxu0
    %v428 = vadd.f32 %v122, %v427
    %v429 = vpop.f32.mrb[0].mxu0
    %430 = vmatprep.mubr.f32.mxu0 0.0
    %431 = vmatmul.mubr.f32.gmra.mrb[0].mxu0 %v213
    %v432 = vpop.f32.mrb[0].mxu0
    %v433 = vadd.f32 %v122, %v432
    %v434 = vpop.f32.mrb[0].mxu0
    %435 = vmatprep.mubr.f32.mxu0 0.0
    %436 = vmatmul.mubr.f32.gmra.mrb[0].mxu0 %v216
    %v437 = vpop.f32.mrb[0].mxu0
    %v438 = vadd.f32 %v122, %v437
    %v439 = vpop.f32.mrb[0].mxu0
    %440 = vmatprep.mubr.f32.mxu0 0.0
    %441 = vmatmul.mubr.f32.gmra.mrb[0].mxu0 %v219
    %v442 = vpop.f32.mrb[0].mxu0
    %v443 = vadd.f32 %v122, %v442
    %v444 = vpop.f32.mrb[0].mxu0
    %445 = vdwg.mxu0
    %v446 = vld [vmem:[%s5] sm:$0x1]
    %v447 = vld [vmem:[%s6] sm:$0x1]
    %vm448 = vcmask 523264
    %v449 = vsel %vm448, %v288, 0.0
    %450 = vadd.xlane.f32.xlu0 %v449
    %v451 = vpop.xlane.xlu0 %450
    %v452 = vsel %vm448, %v293, 0.0
    %453 = vadd.xlane.f32.xlu0 %v452
    %v454 = vpop.xlane.xlu0 %453
    %v455 = vsel %vm448, %v298, 0.0
    %456 = vadd.xlane.f32.xlu0 %v455
    %v457 = vpop.xlane.xlu0 %456
    %v458 = vsel %vm448, %v303, 0.0
    %459 = vadd.xlane.f32.xlu0 %v458
    %v460 = vpop.xlane.xlu0 %459
    %v461 = vsel %vm448, %v308, 0.0
    %462 = vadd.xlane.f32.xlu0 %v461
    %v463 = vpop.xlane.xlu0 %462
    %v464 = vsel %vm448, %v313, 0.0
    %465 = vadd.xlane.f32.xlu0 %v464
    %v466 = vpop.xlane.xlu0 %465
    %v467 = vsel %vm448, %v318, 0.0
    %468 = vadd.xlane.f32.xlu0 %v467
    %v469 = vpop.xlane.xlu0 %468
    %v470 = vsel %vm448, %v323, 0.0
    %471 = vadd.xlane.f32.xlu0 %v470
    %v472 = vpop.xlane.xlu0 %471
    %v473 = vsel %vm448, %v328, 0.0
    %474 = vadd.xlane.f32.xlu0 %v473
    %v475 = vpop.xlane.xlu0 %474
    %v476 = vsel %vm448, %v333, 0.0
    %477 = vadd.xlane.f32.xlu0 %v476
    %v478 = vpop.xlane.xlu0 %477
    %v479 = vsel %vm448, %v338, 0.0
    %480 = vadd.xlane.f32.xlu0 %v479
    %v481 = vpop.xlane.xlu0 %480
    %v482 = vsel %vm448, %v343, 0.0
    %483 = vadd.xlane.f32.xlu0 %v482
    %v484 = vpop.xlane.xlu0 %483
    %v485 = vsel %vm448, %v348, 0.0
    %486 = vadd.xlane.f32.xlu0 %v485
    %v487 = vpop.xlane.xlu0 %486
    %v488 = vsel %vm448, %v353, 0.0
    %489 = vadd.xlane.f32.xlu0 %v488
    %v490 = vpop.xlane.xlu0 %489
    %v491 = vsel %vm448, %v358, 0.0
    %492 = vadd.xlane.f32.xlu0 %v491
    %v493 = vpop.xlane.xlu0 %492
    %v494 = vsel %vm448, %v363, 0.0
    %495 = vadd.xlane.f32.xlu0 %v494
    %v496 = vpop.xlane.xlu0 %495
    %v497 = vsel %vm448, %v368, 0.0
    %498 = vadd.xlane.f32.xlu0 %v497
    %v499 = vpop.xlane.xlu0 %498
    %v500 = vsel %vm448, %v373, 0.0
    %501 = vadd.xlane.f32.xlu0 %v500
    %v502 = vpop.xlane.xlu0 %501
    %v503 = vsel %vm448, %v378, 0.0
    %504 = vadd.xlane.f32.xlu0 %v503
    %v505 = vpop.xlane.xlu0 %504
    %v506 = vsel %vm448, %v383, 0.0
    %507 = vadd.xlane.f32.xlu0 %v506
    %v508 = vpop.xlane.xlu0 %507
    %v509 = vsel %vm448, %v388, 0.0
    %510 = vadd.xlane.f32.xlu0 %v509
    %v511 = vpop.xlane.xlu0 %510
    %v512 = vsel %vm448, %v393, 0.0
    %513 = vadd.xlane.f32.xlu0 %v512
    %v514 = vpop.xlane.xlu0 %513
    %v515 = vsel %vm448, %v398, 0.0
    %516 = vadd.xlane.f32.xlu0 %v515
    %v517 = vpop.xlane.xlu0 %516
    %v518 = vsel %vm448, %v403, 0.0
    %519 = vadd.xlane.f32.xlu0 %v518
    %v520 = vpop.xlane.xlu0 %519
    %v521 = vsel %vm448, %v408, 0.0
    %522 = vadd.xlane.f32.xlu0 %v521
    %v523 = vpop.xlane.xlu0 %522
    %v524 = vsel %vm448, %v413, 0.0
    %525 = vadd.xlane.f32.xlu0 %v524
    %v526 = vpop.xlane.xlu0 %525
    %v527 = vsel %vm448, %v418, 0.0
    %528 = vadd.xlane.f32.xlu0 %v527
    %v529 = vpop.xlane.xlu0 %528
    %v530 = vsel %vm448, %v423, 0.0
    %531 = vadd.xlane.f32.xlu0 %v530
    %v532 = vpop.xlane.xlu0 %531
    %v533 = vsel %vm448, %v428, 0.0
    %534 = vadd.xlane.f32.xlu0 %v533
    %v535 = vpop.xlane.xlu0 %534
    %v536 = vsel %vm448, %v433, 0.0
    %537 = vadd.xlane.f32.xlu0 %v536
    %v538 = vpop.xlane.xlu0 %537
    %v539 = vsel %vm448, %v438, 0.0
    %540 = vadd.xlane.f32.xlu0 %v539
    %v541 = vpop.xlane.xlu0 %540
    %v542 = vsel %vm448, %v443, 0.0
    %543 = vadd.xlane.f32.xlu0 %v542
    %v544 = vpop.xlane.xlu0 %543
    %v545 = vrcp.pop 64.0
    %v546 = vmul.f32 %v451, %v545
    %v547 = vmul.f32 %v454, %v545
    %v548 = vmul.f32 %v457, %v545
    %v549 = vmul.f32 %v460, %v545
    %v550 = vmul.f32 %v463, %v545
    %v551 = vmul.f32 %v466, %v545
    %v552 = vmul.f32 %v469, %v545
    %v553 = vmul.f32 %v472, %v545
    %v554 = vmul.f32 %v475, %v545
    %v555 = vmul.f32 %v478, %v545
    %v556 = vmul.f32 %v481, %v545
    %v557 = vmul.f32 %v484, %v545
    %v558 = vmul.f32 %v487, %v545
    %v559 = vmul.f32 %v490, %v545
    %v560 = vmul.f32 %v493, %v545
    %v561 = vmul.f32 %v496, %v545
    %v562 = vmul.f32 %v499, %v545
    %v563 = vmul.f32 %v502, %v545
    %v564 = vmul.f32 %v505, %v545
    %v565 = vmul.f32 %v508, %v545
    %v566 = vmul.f32 %v511, %v545
    %v567 = vmul.f32 %v514, %v545
    %v568 = vmul.f32 %v517, %v545
    %v569 = vmul.f32 %v520, %v545
    %v570 = vmul.f32 %v523, %v545
    %v571 = vmul.f32 %v526, %v545
    %v572 = vmul.f32 %v529, %v545
    %v573 = vmul.f32 %v532, %v545
    %v574 = vmul.f32 %v535, %v545
    %v575 = vmul.f32 %v538, %v545
    %v576 = vmul.f32 %v541, %v545
    %v577 = vmul.f32 %v544, %v545
    %v578 = vsub.f32 %v288, %v546
    %v579 = vsub.f32 %v293, %v547
    %v580 = vsub.f32 %v298, %v548
    %v581 = vsub.f32 %v303, %v549
    %v582 = vsub.f32 %v308, %v550
    %v583 = vsub.f32 %v313, %v551
    %v584 = vsub.f32 %v318, %v552
    %v585 = vsub.f32 %v323, %v553
    %v586 = vsub.f32 %v328, %v554
    %v587 = vsub.f32 %v333, %v555
    %v588 = vsub.f32 %v338, %v556
    %v589 = vsub.f32 %v343, %v557
    %v590 = vsub.f32 %v348, %v558
    %v591 = vsub.f32 %v353, %v559
    %v592 = vsub.f32 %v358, %v560
    %v593 = vsub.f32 %v363, %v561
    %v594 = vsub.f32 %v368, %v562
    %v595 = vsub.f32 %v373, %v563
    %v596 = vsub.f32 %v378, %v564
    %v597 = vsub.f32 %v383, %v565
    %v598 = vsub.f32 %v388, %v566
    %v599 = vsub.f32 %v393, %v567
    %v600 = vsub.f32 %v398, %v568
    %v601 = vsub.f32 %v403, %v569
    %v602 = vsub.f32 %v408, %v570
    %v603 = vsub.f32 %v413, %v571
    %v604 = vsub.f32 %v418, %v572
    %v605 = vsub.f32 %v423, %v573
    %v606 = vsub.f32 %v428, %v574
    %v607 = vsub.f32 %v433, %v575
    %v608 = vsub.f32 %v438, %v576
    %v609 = vsub.f32 %v443, %v577
    %v610 = vmul.f32 %v578, %v578
    %v611 = vmul.f32 %v579, %v579
    %v612 = vmul.f32 %v580, %v580
    %v613 = vmul.f32 %v581, %v581
    %v614 = vmul.f32 %v582, %v582
    %v615 = vmul.f32 %v583, %v583
    %v616 = vmul.f32 %v584, %v584
    %v617 = vmul.f32 %v585, %v585
    %v618 = vmul.f32 %v586, %v586
    %v619 = vmul.f32 %v587, %v587
    %v620 = vmul.f32 %v588, %v588
    %v621 = vmul.f32 %v589, %v589
    %v622 = vmul.f32 %v590, %v590
    %v623 = vmul.f32 %v591, %v591
    %v624 = vmul.f32 %v592, %v592
    %v625 = vmul.f32 %v593, %v593
    %v626 = vmul.f32 %v594, %v594
    %v627 = vmul.f32 %v595, %v595
    %v628 = vmul.f32 %v596, %v596
    %v629 = vmul.f32 %v597, %v597
    %v630 = vmul.f32 %v598, %v598
    %v631 = vmul.f32 %v599, %v599
    %v632 = vmul.f32 %v600, %v600
    %v633 = vmul.f32 %v601, %v601
    %v634 = vmul.f32 %v602, %v602
    %v635 = vmul.f32 %v603, %v603
    %v636 = vmul.f32 %v604, %v604
    %v637 = vmul.f32 %v605, %v605
    %v638 = vmul.f32 %v606, %v606
    %v639 = vmul.f32 %v607, %v607
    %v640 = vmul.f32 %v608, %v608
    %v641 = vmul.f32 %v609, %v609
    %v642 = vsel %vm448, %v610, 0.0
    %643 = vadd.xlane.f32.xlu0 %v642
    %v644 = vpop.xlane.xlu0 %643
    %v645 = vsel %vm448, %v611, 0.0
    %646 = vadd.xlane.f32.xlu0 %v645
    %v647 = vpop.xlane.xlu0 %646
    %v648 = vsel %vm448, %v612, 0.0
    %649 = vadd.xlane.f32.xlu0 %v648
    %v650 = vpop.xlane.xlu0 %649
    %v651 = vsel %vm448, %v613, 0.0
    %652 = vadd.xlane.f32.xlu0 %v651
    %v653 = vpop.xlane.xlu0 %652
    %v654 = vsel %vm448, %v614, 0.0
    %655 = vadd.xlane.f32.xlu0 %v654
    %v656 = vpop.xlane.xlu0 %655
    %v657 = vsel %vm448, %v615, 0.0
    %658 = vadd.xlane.f32.xlu0 %v657
    %v659 = vpop.xlane.xlu0 %658
    %v660 = vsel %vm448, %v616, 0.0
    %661 = vadd.xlane.f32.xlu0 %v660
    %v662 = vpop.xlane.xlu0 %661
    %v663 = vsel %vm448, %v617, 0.0
    %664 = vadd.xlane.f32.xlu0 %v663
    %v665 = vpop.xlane.xlu0 %664
    %v666 = vsel %vm448, %v618, 0.0
    %667 = vadd.xlane.f32.xlu0 %v666
    %v668 = vpop.xlane.xlu0 %667
    %v669 = vsel %vm448, %v619, 0.0
    %670 = vadd.xlane.f32.xlu0 %v669
    %v671 = vpop.xlane.xlu0 %670
    %v672 = vsel %vm448, %v620, 0.0
    %673 = vadd.xlane.f32.xlu0 %v672
    %v674 = vpop.xlane.xlu0 %673
    %v675 = vsel %vm448, %v621, 0.0
    %676 = vadd.xlane.f32.xlu0 %v675
    %v677 = vpop.xlane.xlu0 %676
    %v678 = vsel %vm448, %v622, 0.0
    %679 = vadd.xlane.f32.xlu0 %v678
    %v680 = vpop.xlane.xlu0 %679
    %v681 = vsel %vm448, %v623, 0.0
    %682 = vadd.xlane.f32.xlu0 %v681
    %v683 = vpop.xlane.xlu0 %682
    %v684 = vsel %vm448, %v624, 0.0
    %685 = vadd.xlane.f32.xlu0 %v684
    %v686 = vpop.xlane.xlu0 %685
    %v687 = vsel %vm448, %v625, 0.0
    %688 = vadd.xlane.f32.xlu0 %v687
    %v689 = vpop.xlane.xlu0 %688
    %v690 = vsel %vm448, %v626, 0.0
    %691 = vadd.xlane.f32.xlu0 %v690
    %v692 = vpop.xlane.xlu0 %691
    %v693 = vsel %vm448, %v627, 0.0
    %694 = vadd.xlane.f32.xlu0 %v693
    %v695 = vpop.xlane.xlu0 %694
    %v696 = vsel %vm448, %v628, 0.0
    %697 = vadd.xlane.f32.xlu0 %v696
    %v698 = vpop.xlane.xlu0 %697
    %v699 = vsel %vm448, %v629, 0.0
    %700 = vadd.xlane.f32.xlu0 %v699
    %v701 = vpop.xlane.xlu0 %700
    %v702 = vsel %vm448, %v630, 0.0
    %703 = vadd.xlane.f32.xlu0 %v702
    %v704 = vpop.xlane.xlu0 %703
    %v705 = vsel %vm448, %v631, 0.0
    %706 = vadd.xlane.f32.xlu0 %v705
    %v707 = vpop.xlane.xlu0 %706
    %v708 = vsel %vm448, %v632, 0.0
    %709 = vadd.xlane.f32.xlu0 %v708
    %v710 = vpop.xlane.xlu0 %709
    %v711 = vsel %vm448, %v633, 0.0
    %712 = vadd.xlane.f32.xlu0 %v711
    %v713 = vpop.xlane.xlu0 %712
    %v714 = vsel %vm448, %v634, 0.0
    %715 = vadd.xlane.f32.xlu0 %v714
    %v716 = vpop.xlane.xlu0 %715
    %v717 = vsel %vm448, %v635, 0.0
    %718 = vadd.xlane.f32.xlu0 %v717
    %v719 = vpop.xlane.xlu0 %718
    %v720 = vsel %vm448, %v636, 0.0
    %721 = vadd.xlane.f32.xlu0 %v720
    %v722 = vpop.xlane.xlu0 %721
    %v723 = vsel %vm448, %v637, 0.0
    %724 = vadd.xlane.f32.xlu0 %v723
    %v725 = vpop.xlane.xlu0 %724
    %v726 = vsel %vm448, %v638, 0.0
    %727 = vadd.xlane.f32.xlu0 %v726
    %v728 = vpop.xlane.xlu0 %727
    %v729 = vsel %vm448, %v639, 0.0
    %730 = vadd.xlane.f32.xlu0 %v729
    %v731 = vpop.xlane.xlu0 %730
    %v732 = vsel %vm448, %v640, 0.0
    %733 = vadd.xlane.f32.xlu0 %v732
    %v734 = vpop.xlane.xlu0 %733
    %v735 = vsel %vm448, %v641, 0.0
    %736 = vadd.xlane.f32.xlu0 %v735
    %v737 = vpop.xlane.xlu0 %736
    %v738 = vmul.f32 %v644, %v545
    %v739 = vmul.f32 %v647, %v545
    %v740 = vmul.f32 %v650, %v545
    %v741 = vmul.f32 %v653, %v545
    %v742 = vmul.f32 %v656, %v545
    %v743 = vmul.f32 %v659, %v545
    %v744 = vmul.f32 %v662, %v545
    %v745 = vmul.f32 %v665, %v545
    %v746 = vmul.f32 %v668, %v545
    %v747 = vmul.f32 %v671, %v545
    %v748 = vmul.f32 %v674, %v545
    %v749 = vmul.f32 %v677, %v545
    %v750 = vmul.f32 %v680, %v545
    %v751 = vmul.f32 %v683, %v545
    %v752 = vmul.f32 %v686, %v545
    %v753 = vmul.f32 %v689, %v545
    %v754 = vmul.f32 %v692, %v545
    %v755 = vmul.f32 %v695, %v545
    %v756 = vmul.f32 %v698, %v545
    %v757 = vmul.f32 %v701, %v545
    %v758 = vmul.f32 %v704, %v545
    %v759 = vmul.f32 %v707, %v545
    %v760 = vmul.f32 %v710, %v545
    %v761 = vmul.f32 %v713, %v545
    %v762 = vmul.f32 %v716, %v545
    %v763 = vmul.f32 %v719, %v545
    %v764 = vmul.f32 %v722, %v545
    %v765 = vmul.f32 %v725, %v545
    %v766 = vmul.f32 %v728, %v545
    %v767 = vmul.f32 %v731, %v545
    %v768 = vmul.f32 %v734, %v545
    %v769 = vmul.f32 %v737, %v545
    %v770 = vadd.f32 %v738, 1e-05
    %v771 = vadd.f32 %v739, 1e-05
    %v772 = vadd.f32 %v740, 1e-05
    %v773 = vadd.f32 %v741, 1e-05
    %v774 = vadd.f32 %v742, 1e-05
    %v775 = vadd.f32 %v743, 1e-05
    %v776 = vadd.f32 %v744, 1e-05
    %v777 = vadd.f32 %v745, 1e-05
    %v778 = vadd.f32 %v746, 1e-05
    %v779 = vadd.f32 %v747, 1e-05
    %v780 = vadd.f32 %v748, 1e-05
    %v781 = vadd.f32 %v749, 1e-05
    %v782 = vadd.f32 %v750, 1e-05
    %v783 = vadd.f32 %v751, 1e-05
    %v784 = vadd.f32 %v752, 1e-05
    %v785 = vadd.f32 %v753, 1e-05
    %v786 = vadd.f32 %v754, 1e-05
    %v787 = vadd.f32 %v755, 1e-05
    %v788 = vadd.f32 %v756, 1e-05
    %v789 = vadd.f32 %v757, 1e-05
    %v790 = vadd.f32 %v758, 1e-05
    %v791 = vadd.f32 %v759, 1e-05
    %v792 = vadd.f32 %v760, 1e-05
    %v793 = vadd.f32 %v761, 1e-05
    %v794 = vadd.f32 %v762, 1e-05
    %v795 = vadd.f32 %v763, 1e-05
    %v796 = vadd.f32 %v764, 1e-05
    %v797 = vadd.f32 %v765, 1e-05
    %v798 = vadd.f32 %v766, 1e-05
    %v799 = vadd.f32 %v767, 1e-05
    %v800 = vadd.f32 %v768, 1e-05
    %v801 = vadd.f32 %v769, 1e-05
    %v802 = vrsqrt.pop %v770
    %v803 = vrsqrt.pop %v771
    %v804 = vrsqrt.pop %v772
    %v805 = vrsqrt.pop %v773
    %v806 = vrsqrt.pop %v774
    %v807 = vrsqrt.pop %v775
    %v808 = vrsqrt.pop %v776
    %v809 = vrsqrt.pop %v777
    %v810 = vrsqrt.pop %v778
    %v811 = vrsqrt.pop %v779
    %v812 = vrsqrt.pop %v780
    %v813 = vrsqrt.pop %v781
    %v814 = vrsqrt.pop %v782
    %v815 = vrsqrt.pop %v783
    %v816 = vrsqrt.pop %v784
    %v817 = vrsqrt.pop %v785
    %v818 = vrsqrt.pop %v786
    %v819 = vrsqrt.pop %v787
    %v820 = vrsqrt.pop %v788
    %v821 = vrsqrt.pop %v789
    %v822 = vrsqrt.pop %v790
    %v823 = vrsqrt.pop %v791
    %v824 = vrsqrt.pop %v792
    %v825 = vrsqrt.pop %v793
    %v826 = vrsqrt.pop %v794
    %v827 = vrsqrt.pop %v795
    %v828 = vrsqrt.pop %v796
    %v829 = vrsqrt.pop %v797
    %v830 = vrsqrt.pop %v798
    %v831 = vrsqrt.pop %v799
    %v832 = vrsqrt.pop %v800
    %v833 = vrsqrt.pop %v801
    %v834 = vmul.f32 %v578, %v802
    %v835 = vmul.f32 %v579, %v803
    %v836 = vmul.f32 %v580, %v804
    %v837 = vmul.f32 %v581, %v805
    %v838 = vmul.f32 %v582, %v806
    %v839 = vmul.f32 %v583, %v807
    %v840 = vmul.f32 %v584, %v808
    %v841 = vmul.f32 %v585, %v809
    %v842 = vmul.f32 %v586, %v810
    %v843 = vmul.f32 %v587, %v811
    %v844 = vmul.f32 %v588, %v812
    %v845 = vmul.f32 %v589, %v813
    %v846 = vmul.f32 %v590, %v814
    %v847 = vmul.f32 %v591, %v815
    %v848 = vmul.f32 %v592, %v816
    %v849 = vmul.f32 %v593, %v817
    %v850 = vmul.f32 %v594, %v818
    %v851 = vmul.f32 %v595, %v819
    %v852 = vmul.f32 %v596, %v820
    %v853 = vmul.f32 %v597, %v821
    %v854 = vmul.f32 %v598, %v822
    %v855 = vmul.f32 %v599, %v823
    %v856 = vmul.f32 %v600, %v824
    %v857 = vmul.f32 %v601, %v825
    %v858 = vmul.f32 %v602, %v826
    %v859 = vmul.f32 %v603, %v827
    %v860 = vmul.f32 %v604, %v828
    %v861 = vmul.f32 %v605, %v829
    %v862 = vmul.f32 %v606, %v830
    %v863 = vmul.f32 %v607, %v831
    %v864 = vmul.f32 %v608, %v832
    %v865 = vmul.f32 %v609, %v833
    %v867 = vlaneseq
    %v868 = vshrl.u32 %v867, 7
    %v869 = vsub.s32 0, %v868
    %v870 = vrot.slane %v446, %v869
    %v872 = vmul.f32 %v834, %v870
    %v873 = vmul.f32 %v835, %v870
    %v874 = vmul.f32 %v836, %v870
    %v875 = vmul.f32 %v837, %v870
    %v876 = vmul.f32 %v838, %v870
    %v877 = vmul.f32 %v839, %v870
    %v878 = vmul.f32 %v840, %v870
    %v879 = vmul.f32 %v841, %v870
    %v880 = vmul.f32 %v842, %v870
    %v881 = vmul.f32 %v843, %v870
    %v882 = vmul.f32 %v844, %v870
    %v883 = vmul.f32 %v845, %v870
    %v884 = vmul.f32 %v846, %v870
    %v885 = vmul.f32 %v847, %v870
    %v886 = vmul.f32 %v848, %v870
    %v887 = vmul.f32 %v849, %v870
    %v888 = vmul.f32 %v850, %v870
    %v889 = vmul.f32 %v851, %v870
    %v890 = vmul.f32 %v852, %v870
    %v891 = vmul.f32 %v853, %v870
    %v892 = vmul.f32 %v854, %v870
    %v893 = vmul.f32 %v855, %v870
    %v894 = vmul.f32 %v856, %v870
    %v895 = vmul.f32 %v857, %v870
    %v896 = vmul.f32 %v858, %v870
    %v897 = vmul.f32 %v859, %v870
    %v898 = vmul.f32 %v860, %v870
    %v899 = vmul.f32 %v861, %v870
    %v900 = vmul.f32 %v862, %v870
    %v901 = vmul.f32 %v863, %v870
    %v902 = vmul.f32 %v864, %v870
    %v903 = vmul.f32 %v865, %v870
    %v905 = vlaneseq
    %v906 = vshrl.u32 %v905, 7
    %v907 = vsub.s32 0, %v906
    %v908 = vrot.slane %v447, %v907
    %v910 = vadd.f32 %v872, %v908
    %v911 = vadd.f32 %v873, %v908
    %v912 = vadd.f32 %v874, %v908
    %v913 = vadd.f32 %v875, %v908
    %v914 = vadd.f32 %v876, %v908
    %v915 = vadd.f32 %v877, %v908
    %v916 = vadd.f32 %v878, %v908
    %v917 = vadd.f32 %v879, %v908
    %v918 = vadd.f32 %v880, %v908
    %v919 = vadd.f32 %v881, %v908
    %v920 = vadd.f32 %v882, %v908
    %v921 = vadd.f32 %v883, %v908
    %v922 = vadd.f32 %v884, %v908
    %v923 = vadd.f32 %v885, %v908
    %v924 = vadd.f32 %v886, %v908
    %v925 = vadd.f32 %v887, %v908
    %v926 = vadd.f32 %v888, %v908
    %v927 = vadd.f32 %v889, %v908
    %v928 = vadd.f32 %v890, %v908
    %v929 = vadd.f32 %v891, %v908
    %v930 = vadd.f32 %v892, %v908
    %v931 = vadd.f32 %v893, %v908
    %v932 = vadd.f32 %v894, %v908
    %v933 = vadd.f32 %v895, %v908
    %v934 = vadd.f32 %v896, %v908
    %v935 = vadd.f32 %v897, %v908
    %v936 = vadd.f32 %v898, %v908
    %v937 = vadd.f32 %v899, %v908
    %v938 = vadd.f32 %v900, %v908
    %v939 = vadd.f32 %v901, %v908
    %v940 = vadd.f32 %v902, %v908
    %v941 = vadd.f32 %v903, %v908
    %v942 = vmax.f32 %v910, 0.0
    %v943 = vmax.f32 %v911, 0.0
    %v944 = vmax.f32 %v912, 0.0
    %v945 = vmax.f32 %v913, 0.0
    %v946 = vmax.f32 %v914, 0.0
    %v947 = vmax.f32 %v915, 0.0
    %v948 = vmax.f32 %v916, 0.0
    %v949 = vmax.f32 %v917, 0.0
    %v950 = vmax.f32 %v918, 0.0
    %v951 = vmax.f32 %v919, 0.0
    %v952 = vmax.f32 %v920, 0.0
    %v953 = vmax.f32 %v921, 0.0
    %v954 = vmax.f32 %v922, 0.0
    %v955 = vmax.f32 %v923, 0.0
    %v956 = vmax.f32 %v924, 0.0
    %v957 = vmax.f32 %v925, 0.0
    %v958 = vmax.f32 %v926, 0.0
    %v959 = vmax.f32 %v927, 0.0
    %v960 = vmax.f32 %v928, 0.0
    %v961 = vmax.f32 %v929, 0.0
    %v962 = vmax.f32 %v930, 0.0
    %v963 = vmax.f32 %v931, 0.0
    %v964 = vmax.f32 %v932, 0.0
    %v965 = vmax.f32 %v933, 0.0
    %v966 = vmax.f32 %v934, 0.0
    %v967 = vmax.f32 %v935, 0.0
    %v968 = vmax.f32 %v936, 0.0
    %v969 = vmax.f32 %v937, 0.0
    %v970 = vmax.f32 %v938, 0.0
    %v971 = vmax.f32 %v939, 0.0
    %v972 = vmax.f32 %v940, 0.0
    %v973 = vmax.f32 %v941, 0.0
    %v974 = vld [vmem:[%s7] sm:$0xff]
    %v975 = vld [vmem:[%s7 + $0x8] sm:$0xff]
    %v976 = vld [vmem:[%s7 + $0x10] sm:$0xff]
    %v977 = vld [vmem:[%s7 + $0x18] sm:$0xff]
    %v978 = vld [vmem:[%s7 + $0x20] sm:$0xff]
    %v979 = vld [vmem:[%s7 + $0x28] sm:$0xff]
    %v980 = vld [vmem:[%s7 + $0x30] sm:$0xff]
    %v981 = vld [vmem:[%s7 + $0x38] sm:$0xff]
    %v982 = vld [vmem:[%s8] sm:$0x1]
    %v984 = vlaneseq
    %v985 = vshrl.u32 %v984, 7
    %v986 = vsub.s32 0, %v985
    %v987 = vrot.slane %v982, %v986
    %v990 = vsel %vm448, %v942, 0
    %v993 = vsel %vm448, %v943, 0
    %v996 = vsel %vm448, %v944, 0
    %v999 = vsel %vm448, %v945, 0
    %v1002 = vsel %vm448, %v946, 0
    %v1005 = vsel %vm448, %v947, 0
    %v1008 = vsel %vm448, %v948, 0
    %v1011 = vsel %vm448, %v949, 0
    %v1014 = vsel %vm448, %v950, 0
    %v1017 = vsel %vm448, %v951, 0
    %v1020 = vsel %vm448, %v952, 0
    %v1023 = vsel %vm448, %v953, 0
    %v1026 = vsel %vm448, %v954, 0
    %v1029 = vsel %vm448, %v955, 0
    %v1032 = vsel %vm448, %v956, 0
    %v1035 = vsel %vm448, %v957, 0
    %v1038 = vsel %vm448, %v958, 0
    %v1041 = vsel %vm448, %v959, 0
    %v1044 = vsel %vm448, %v960, 0
    %v1047 = vsel %vm448, %v961, 0
    %v1050 = vsel %vm448, %v962, 0
    %v1053 = vsel %vm448, %v963, 0
    %v1056 = vsel %vm448, %v964, 0
    %v1059 = vsel %vm448, %v965, 0
    %v1062 = vsel %vm448, %v966, 0
    %v1065 = vsel %vm448, %v967, 0
    %v1068 = vsel %vm448, %v968, 0
    %v1071 = vsel %vm448, %v969, 0
    %v1074 = vsel %vm448, %v970, 0
    %v1077 = vsel %vm448, %v971, 0
    %v1080 = vsel %vm448, %v972, 0
    %v1083 = vsel %vm448, %v973, 0
    %1085 = vmatprep.subr.mxu0 0.0
    %1086 = vmatpush1.msra.mxu0 %v974
    %1087 = vmatprep.subr.mxu0 0.0
    %1088 = vmatpush1.msra.mxu0 %v975
    %1089 = vmatprep.subr.mxu0 0.0
    %1090 = vmatpush1.msra.mxu0 %v976
    %1091 = vmatprep.subr.mxu0 0.0
    %1092 = vmatpush1.msra.mxu0 %v977
    %1093 = vmatprep.subr.mxu0 0.0
    %1094 = vmatpush1.msra.mxu0 %v978
    %1095 = vmatprep.subr.mxu0 0.0
    %1096 = vmatpush1.msra.mxu0 %v979
    %1097 = vmatprep.subr.mxu0 0.0
    %1098 = vmatpush1.msra.mxu0 %v980
    %1099 = vmatprep.subr.mxu0 0.0
    %1100 = vmatpush1.msra.mxu0 %v981
    %1101 = vmatprep.subr.mxu0 0.0
    %1102 = vmatpush1.msra.mxu0 0.0
    %1103 = vmatprep.subr.mxu0 0.0
    %1104 = vmatpush1.msra.mxu0 0.0
    %1105 = vmatprep.subr.mxu0 0.0
    %1106 = vmatpush1.msra.mxu0 0.0
    %1107 = vmatprep.subr.mxu0 0.0
    %1108 = vmatpush1.msra.mxu0 0.0
    %1109 = vmatprep.subr.mxu0 0.0
    %1110 = vmatpush1.msra.mxu0 0.0
    %1111 = vmatprep.subr.mxu0 0.0
    %1112 = vmatpush1.msra.mxu0 0.0
    %1113 = vmatprep.subr.mxu0 0.0
    %1114 = vmatpush1.msra.mxu0 0.0
    %1115 = vmatprep.subr.mxu0 0.0
    %1116 = vmatpush1.msra.mxu0 0.0
    %1117 = vmatprep.subr.mxu0 0.0
    %1118 = vmatpush1.msra.mxu0 0.0
    %1119 = vmatprep.subr.mxu0 0.0
    %1120 = vmatpush1.msra.mxu0 0.0
    %1121 = vmatprep.subr.mxu0 0.0
    %1122 = vmatpush1.msra.mxu0 0.0
    %1123 = vmatprep.subr.mxu0 0.0
    %1124 = vmatpush1.msra.mxu0 0.0
    %1125 = vmatprep.subr.mxu0 0.0
    %1126 = vmatpush1.msra.mxu0 0.0
    %1127 = vmatprep.subr.mxu0 0.0
    %1128 = vmatpush1.msra.mxu0 0.0
    %1129 = vmatprep.subr.mxu0 0.0
    %1130 = vmatpush1.msra.mxu0 0.0
    %1131 = vmatprep.subr.mxu0 0.0
    %1132 = vmatpush1.msra.mxu0 0.0
    %1133 = vmatprep.subr.mxu0 0.0
    %1134 = vmatpush1.msra.mxu0 0.0
    %1135 = vmatprep.subr.mxu0 0.0
    %1136 = vmatpush1.msra.mxu0 0.0
    %1137 = vmatprep.subr.mxu0 0.0
    %1138 = vmatpush1.msra.mxu0 0.0
    %1139 = vmatprep.subr.mxu0 0.0
    %1140 = vmatpush1.msra.mxu0 0.0
    %1141 = vmatprep.subr.mxu0 0.0
    %1142 = vmatpush1.msra.mxu0 0.0
    %1143 = vmatprep.subr.mxu0 0.0
    %1144 = vmatpush1.msra.mxu0 0.0
    %1145 = vmatprep.subr.mxu0 0.0
    %1146 = vmatpush1.msra.mxu0 0.0
    %1147 = vmatprep.subr.mxu0 0.0
    %1148 = vmatpush1.msra.mxu0 0.0
    %1149 = vmatprep.mubr.f32.mxu0 0.0
    %1150 = vmatmul.mubr.f32.gmra.mrb[0].mxu0 %v990
    %v1151 = vpop.f32.mrb[0].mxu0
    %v1152 = vadd.f32 %v987, %v1151
    %v1153 = vpop.f32.mrb[0].mxu0
    %1154 = vmatprep.mubr.f32.mxu0 0.0
    %1155 = vmatmul.mubr.f32.gmra.mrb[0].mxu0 %v993
    %v1156 = vpop.f32.mrb[0].mxu0
    %v1157 = vadd.f32 %v987, %v1156
    %v1158 = vpop.f32.mrb[0].mxu0
    %1159 = vmatprep.mubr.f32.mxu0 0.0
    %1160 = vmatmul.mubr.f32.gmra.mrb[0].mxu0 %v996
    %v1161 = vpop.f32.mrb[0].mxu0
    %v1162 = vadd.f32 %v987, %v1161
    %v1163 = vpop.f32.mrb[0].mxu0
    %1164 = vmatprep.mubr.f32.mxu0 0.0
    %1165 = vmatmul.mubr.f32.gmra.mrb[0].mxu0 %v999
    %v1166 = vpop.f32.mrb[0].mxu0
    %v1167 = vadd.f32 %v987, %v1166
    %v1168 = vpop.f32.mrb[0].mxu0
    %1169 = vmatprep.mubr.f32.mxu0 0.0
    %1170 = vmatmul.mubr.f32.gmra.mrb[0].mxu0 %v1002
    %v1171 = vpop.f32.mrb[0].mxu0
    %v1172 = vadd.f32 %v987, %v1171
    %v1173 = vpop.f32.mrb[0].mxu0
    %1174 = vmatprep.mubr.f32.mxu0 0.0
    %1175 = vmatmul.mubr.f32.gmra.mrb[0].mxu0 %v1005
    %v1176 = vpop.f32.mrb[0].mxu0
    %v1177 = vadd.f32 %v987, %v1176
    %v1178 = vpop.f32.mrb[0].mxu0
    %1179 = vmatprep.mubr.f32.mxu0 0.0
    %1180 = vmatmul.mubr.f32.gmra.mrb[0].mxu0 %v1008
    %v1181 = vpop.f32.mrb[0].mxu0
    %v1182 = vadd.f32 %v987, %v1181
    %v1183 = vpop.f32.mrb[0].mxu0
    %1184 = vmatprep.mubr.f32.mxu0 0.0
    %1185 = vmatmul.mubr.f32.gmra.mrb[0].mxu0 %v1011
    %v1186 = vpop.f32.mrb[0].mxu0
    %v1187 = vadd.f32 %v987, %v1186
    %v1188 = vpop.f32.mrb[0].mxu0
    %1189 = vmatprep.mubr.f32.mxu0 0.0
    %1190 = vmatmul.mubr.f32.gmra.mrb[0].mxu0 %v1014
    %v1191 = vpop.f32.mrb[0].mxu0
    %v1192 = vadd.f32 %v987, %v1191
    %v1193 = vpop.f32.mrb[0].mxu0
    %1194 = vmatprep.mubr.f32.mxu0 0.0
    %1195 = vmatmul.mubr.f32.gmra.mrb[0].mxu0 %v1017
    %v1196 = vpop.f32.mrb[0].mxu0
    %v1197 = vadd.f32 %v987, %v1196
    %v1198 = vpop.f32.mrb[0].mxu0
    %1199 = vmatprep.mubr.f32.mxu0 0.0
    %1200 = vmatmul.mubr.f32.gmra.mrb[0].mxu0 %v1020
    %v1201 = vpop.f32.mrb[0].mxu0
    %v1202 = vadd.f32 %v987, %v1201
    %v1203 = vpop.f32.mrb[0].mxu0
    %1204 = vmatprep.mubr.f32.mxu0 0.0
    %1205 = vmatmul.mubr.f32.gmra.mrb[0].mxu0 %v1023
    %v1206 = vpop.f32.mrb[0].mxu0
    %v1207 = vadd.f32 %v987, %v1206
    %v1208 = vpop.f32.mrb[0].mxu0
    %1209 = vmatprep.mubr.f32.mxu0 0.0
    %1210 = vmatmul.mubr.f32.gmra.mrb[0].mxu0 %v1026
    %v1211 = vpop.f32.mrb[0].mxu0
    %v1212 = vadd.f32 %v987, %v1211
    %v1213 = vpop.f32.mrb[0].mxu0
    %1214 = vmatprep.mubr.f32.mxu0 0.0
    %1215 = vmatmul.mubr.f32.gmra.mrb[0].mxu0 %v1029
    %v1216 = vpop.f32.mrb[0].mxu0
    %v1217 = vadd.f32 %v987, %v1216
    %v1218 = vpop.f32.mrb[0].mxu0
    %1219 = vmatprep.mubr.f32.mxu0 0.0
    %1220 = vmatmul.mubr.f32.gmra.mrb[0].mxu0 %v1032
    %v1221 = vpop.f32.mrb[0].mxu0
    %v1222 = vadd.f32 %v987, %v1221
    %v1223 = vpop.f32.mrb[0].mxu0
    %1224 = vmatprep.mubr.f32.mxu0 0.0
    %1225 = vmatmul.mubr.f32.gmra.mrb[0].mxu0 %v1035
    %v1226 = vpop.f32.mrb[0].mxu0
    %v1227 = vadd.f32 %v987, %v1226
    %v1228 = vpop.f32.mrb[0].mxu0
    %1229 = vmatprep.mubr.f32.mxu0 0.0
    %1230 = vmatmul.mubr.f32.gmra.mrb[0].mxu0 %v1038
    %v1231 = vpop.f32.mrb[0].mxu0
    %v1232 = vadd.f32 %v987, %v1231
    %v1233 = vpop.f32.mrb[0].mxu0
    %1234 = vmatprep.mubr.f32.mxu0 0.0
    %1235 = vmatmul.mubr.f32.gmra.mrb[0].mxu0 %v1041
    %v1236 = vpop.f32.mrb[0].mxu0
    %v1237 = vadd.f32 %v987, %v1236
    %v1238 = vpop.f32.mrb[0].mxu0
    %1239 = vmatprep.mubr.f32.mxu0 0.0
    %1240 = vmatmul.mubr.f32.gmra.mrb[0].mxu0 %v1044
    %v1241 = vpop.f32.mrb[0].mxu0
    %v1242 = vadd.f32 %v987, %v1241
    %v1243 = vpop.f32.mrb[0].mxu0
    %1244 = vmatprep.mubr.f32.mxu0 0.0
    %1245 = vmatmul.mubr.f32.gmra.mrb[0].mxu0 %v1047
    %v1246 = vpop.f32.mrb[0].mxu0
    %v1247 = vadd.f32 %v987, %v1246
    %v1248 = vpop.f32.mrb[0].mxu0
    %1249 = vmatprep.mubr.f32.mxu0 0.0
    %1250 = vmatmul.mubr.f32.gmra.mrb[0].mxu0 %v1050
    %v1251 = vpop.f32.mrb[0].mxu0
    %v1252 = vadd.f32 %v987, %v1251
    %v1253 = vpop.f32.mrb[0].mxu0
    %1254 = vmatprep.mubr.f32.mxu0 0.0
    %1255 = vmatmul.mubr.f32.gmra.mrb[0].mxu0 %v1053
    %v1256 = vpop.f32.mrb[0].mxu0
    %v1257 = vadd.f32 %v987, %v1256
    %v1258 = vpop.f32.mrb[0].mxu0
    %1259 = vmatprep.mubr.f32.mxu0 0.0
    %1260 = vmatmul.mubr.f32.gmra.mrb[0].mxu0 %v1056
    %v1261 = vpop.f32.mrb[0].mxu0
    %v1262 = vadd.f32 %v987, %v1261
    %v1263 = vpop.f32.mrb[0].mxu0
    %1264 = vmatprep.mubr.f32.mxu0 0.0
    %1265 = vmatmul.mubr.f32.gmra.mrb[0].mxu0 %v1059
    %v1266 = vpop.f32.mrb[0].mxu0
    %v1267 = vadd.f32 %v987, %v1266
    %v1268 = vpop.f32.mrb[0].mxu0
    %1269 = vmatprep.mubr.f32.mxu0 0.0
    %1270 = vmatmul.mubr.f32.gmra.mrb[0].mxu0 %v1062
    %v1271 = vpop.f32.mrb[0].mxu0
    %v1272 = vadd.f32 %v987, %v1271
    %v1273 = vpop.f32.mrb[0].mxu0
    %1274 = vmatprep.mubr.f32.mxu0 0.0
    %1275 = vmatmul.mubr.f32.gmra.mrb[0].mxu0 %v1065
    %v1276 = vpop.f32.mrb[0].mxu0
    %v1277 = vadd.f32 %v987, %v1276
    %v1278 = vpop.f32.mrb[0].mxu0
    %1279 = vmatprep.mubr.f32.mxu0 0.0
    %1280 = vmatmul.mubr.f32.gmra.mrb[0].mxu0 %v1068
    %v1281 = vpop.f32.mrb[0].mxu0
    %v1282 = vadd.f32 %v987, %v1281
    %v1283 = vpop.f32.mrb[0].mxu0
    %1284 = vmatprep.mubr.f32.mxu0 0.0
    %1285 = vmatmul.mubr.f32.gmra.mrb[0].mxu0 %v1071
    %v1286 = vpop.f32.mrb[0].mxu0
    %v1287 = vadd.f32 %v987, %v1286
    %v1288 = vpop.f32.mrb[0].mxu0
    %1289 = vmatprep.mubr.f32.mxu0 0.0
    %1290 = vmatmul.mubr.f32.gmra.mrb[0].mxu0 %v1074
    %v1291 = vpop.f32.mrb[0].mxu0
    %v1292 = vadd.f32 %v987, %v1291
    %v1293 = vpop.f32.mrb[0].mxu0
    %1294 = vmatprep.mubr.f32.mxu0 0.0
    %1295 = vmatmul.mubr.f32.gmra.mrb[0].mxu0 %v1077
    %v1296 = vpop.f32.mrb[0].mxu0
    %v1297 = vadd.f32 %v987, %v1296
    %v1298 = vpop.f32.mrb[0].mxu0
    %1299 = vmatprep.mubr.f32.mxu0 0.0
    %1300 = vmatmul.mubr.f32.gmra.mrb[0].mxu0 %v1080
    %v1301 = vpop.f32.mrb[0].mxu0
    %v1302 = vadd.f32 %v987, %v1301
    %v1303 = vpop.f32.mrb[0].mxu0
    %1304 = vmatprep.mubr.f32.mxu0 0.0
    %1305 = vmatmul.mubr.f32.gmra.mrb[0].mxu0 %v1083
    %v1306 = vpop.f32.mrb[0].mxu0
    %v1307 = vadd.f32 %v987, %v1306
    %v1308 = vpop.f32.mrb[0].mxu0
    %1309 = vdwg.mxu0
    %v1310 = vld [vmem:[%s9] sm:$0x1]
    %v1311 = vld [vmem:[%s10] sm:$0x1]
    %1312 = vadd.xlane.f32.xlu0 %v1152
    %v1313 = vpop.xlane.xlu0 %1312
    %1314 = vadd.xlane.f32.xlu0 %v1157
    %v1315 = vpop.xlane.xlu0 %1314
    %1316 = vadd.xlane.f32.xlu0 %v1162
    %v1317 = vpop.xlane.xlu0 %1316
    %1318 = vadd.xlane.f32.xlu0 %v1167
    %v1319 = vpop.xlane.xlu0 %1318
    %1320 = vadd.xlane.f32.xlu0 %v1172
    %v1321 = vpop.xlane.xlu0 %1320
    %1322 = vadd.xlane.f32.xlu0 %v1177
    %v1323 = vpop.xlane.xlu0 %1322
    %1324 = vadd.xlane.f32.xlu0 %v1182
    %v1325 = vpop.xlane.xlu0 %1324
    %1326 = vadd.xlane.f32.xlu0 %v1187
    %v1327 = vpop.xlane.xlu0 %1326
    %1328 = vadd.xlane.f32.xlu0 %v1192
    %v1329 = vpop.xlane.xlu0 %1328
    %1330 = vadd.xlane.f32.xlu0 %v1197
    %v1331 = vpop.xlane.xlu0 %1330
    %1332 = vadd.xlane.f32.xlu0 %v1202
    %v1333 = vpop.xlane.xlu0 %1332
    %1334 = vadd.xlane.f32.xlu0 %v1207
    %v1335 = vpop.xlane.xlu0 %1334
    %1336 = vadd.xlane.f32.xlu0 %v1212
    %v1337 = vpop.xlane.xlu0 %1336
    %1338 = vadd.xlane.f32.xlu0 %v1217
    %v1339 = vpop.xlane.xlu0 %1338
    %1340 = vadd.xlane.f32.xlu0 %v1222
    %v1341 = vpop.xlane.xlu0 %1340
    %1342 = vadd.xlane.f32.xlu0 %v1227
    %v1343 = vpop.xlane.xlu0 %1342
    %1344 = vadd.xlane.f32.xlu0 %v1232
    %v1345 = vpop.xlane.xlu0 %1344
    %1346 = vadd.xlane.f32.xlu0 %v1237
    %v1347 = vpop.xlane.xlu0 %1346
    %1348 = vadd.xlane.f32.xlu0 %v1242
    %v1349 = vpop.xlane.xlu0 %1348
    %1350 = vadd.xlane.f32.xlu0 %v1247
    %v1351 = vpop.xlane.xlu0 %1350
    %1352 = vadd.xlane.f32.xlu0 %v1252
    %v1353 = vpop.xlane.xlu0 %1352
    %1354 = vadd.xlane.f32.xlu0 %v1257
    %v1355 = vpop.xlane.xlu0 %1354
    %1356 = vadd.xlane.f32.xlu0 %v1262
    %v1357 = vpop.xlane.xlu0 %1356
    %1358 = vadd.xlane.f32.xlu0 %v1267
    %v1359 = vpop.xlane.xlu0 %1358
    %1360 = vadd.xlane.f32.xlu0 %v1272
    %v1361 = vpop.xlane.xlu0 %1360
    %1362 = vadd.xlane.f32.xlu0 %v1277
    %v1363 = vpop.xlane.xlu0 %1362
    %1364 = vadd.xlane.f32.xlu0 %v1282
    %v1365 = vpop.xlane.xlu0 %1364
    %1366 = vadd.xlane.f32.xlu0 %v1287
    %v1367 = vpop.xlane.xlu0 %1366
    %1368 = vadd.xlane.f32.xlu0 %v1292
    %v1369 = vpop.xlane.xlu0 %1368
    %1370 = vadd.xlane.f32.xlu0 %v1297
    %v1371 = vpop.xlane.xlu0 %1370
    %1372 = vadd.xlane.f32.xlu0 %v1302
    %v1373 = vpop.xlane.xlu0 %1372
    %1374 = vadd.xlane.f32.xlu0 %v1307
    %v1375 = vpop.xlane.xlu0 %1374
    %v1376 = vrcp.pop 128.0
    %v1377 = vmul.f32 %v1313, %v1376
    %v1378 = vmul.f32 %v1315, %v1376
    %v1379 = vmul.f32 %v1317, %v1376
    %v1380 = vmul.f32 %v1319, %v1376
    %v1381 = vmul.f32 %v1321, %v1376
    %v1382 = vmul.f32 %v1323, %v1376
    %v1383 = vmul.f32 %v1325, %v1376
    %v1384 = vmul.f32 %v1327, %v1376
    %v1385 = vmul.f32 %v1329, %v1376
    %v1386 = vmul.f32 %v1331, %v1376
    %v1387 = vmul.f32 %v1333, %v1376
    %v1388 = vmul.f32 %v1335, %v1376
    %v1389 = vmul.f32 %v1337, %v1376
    %v1390 = vmul.f32 %v1339, %v1376
    %v1391 = vmul.f32 %v1341, %v1376
    %v1392 = vmul.f32 %v1343, %v1376
    %v1393 = vmul.f32 %v1345, %v1376
    %v1394 = vmul.f32 %v1347, %v1376
    %v1395 = vmul.f32 %v1349, %v1376
    %v1396 = vmul.f32 %v1351, %v1376
    %v1397 = vmul.f32 %v1353, %v1376
    %v1398 = vmul.f32 %v1355, %v1376
    %v1399 = vmul.f32 %v1357, %v1376
    %v1400 = vmul.f32 %v1359, %v1376
    %v1401 = vmul.f32 %v1361, %v1376
    %v1402 = vmul.f32 %v1363, %v1376
    %v1403 = vmul.f32 %v1365, %v1376
    %v1404 = vmul.f32 %v1367, %v1376
    %v1405 = vmul.f32 %v1369, %v1376
    %v1406 = vmul.f32 %v1371, %v1376
    %v1407 = vmul.f32 %v1373, %v1376
    %v1408 = vmul.f32 %v1375, %v1376
    %v1409 = vsub.f32 %v1152, %v1377
    %v1410 = vsub.f32 %v1157, %v1378
    %v1411 = vsub.f32 %v1162, %v1379
    %v1412 = vsub.f32 %v1167, %v1380
    %v1413 = vsub.f32 %v1172, %v1381
    %v1414 = vsub.f32 %v1177, %v1382
    %v1415 = vsub.f32 %v1182, %v1383
    %v1416 = vsub.f32 %v1187, %v1384
    %v1417 = vsub.f32 %v1192, %v1385
    %v1418 = vsub.f32 %v1197, %v1386
    %v1419 = vsub.f32 %v1202, %v1387
    %v1420 = vsub.f32 %v1207, %v1388
    %v1421 = vsub.f32 %v1212, %v1389
    %v1422 = vsub.f32 %v1217, %v1390
    %v1423 = vsub.f32 %v1222, %v1391
    %v1424 = vsub.f32 %v1227, %v1392
    %v1425 = vsub.f32 %v1232, %v1393
    %v1426 = vsub.f32 %v1237, %v1394
    %v1427 = vsub.f32 %v1242, %v1395
    %v1428 = vsub.f32 %v1247, %v1396
    %v1429 = vsub.f32 %v1252, %v1397
    %v1430 = vsub.f32 %v1257, %v1398
    %v1431 = vsub.f32 %v1262, %v1399
    %v1432 = vsub.f32 %v1267, %v1400
    %v1433 = vsub.f32 %v1272, %v1401
    %v1434 = vsub.f32 %v1277, %v1402
    %v1435 = vsub.f32 %v1282, %v1403
    %v1436 = vsub.f32 %v1287, %v1404
    %v1437 = vsub.f32 %v1292, %v1405
    %v1438 = vsub.f32 %v1297, %v1406
    %v1439 = vsub.f32 %v1302, %v1407
    %v1440 = vsub.f32 %v1307, %v1408
    %v1441 = vmul.f32 %v1409, %v1409
    %v1442 = vmul.f32 %v1410, %v1410
    %v1443 = vmul.f32 %v1411, %v1411
    %v1444 = vmul.f32 %v1412, %v1412
    %v1445 = vmul.f32 %v1413, %v1413
    %v1446 = vmul.f32 %v1414, %v1414
    %v1447 = vmul.f32 %v1415, %v1415
    %v1448 = vmul.f32 %v1416, %v1416
    %v1449 = vmul.f32 %v1417, %v1417
    %v1450 = vmul.f32 %v1418, %v1418
    %v1451 = vmul.f32 %v1419, %v1419
    %v1452 = vmul.f32 %v1420, %v1420
    %v1453 = vmul.f32 %v1421, %v1421
    %v1454 = vmul.f32 %v1422, %v1422
    %v1455 = vmul.f32 %v1423, %v1423
    %v1456 = vmul.f32 %v1424, %v1424
    %v1457 = vmul.f32 %v1425, %v1425
    %v1458 = vmul.f32 %v1426, %v1426
    %v1459 = vmul.f32 %v1427, %v1427
    %v1460 = vmul.f32 %v1428, %v1428
    %v1461 = vmul.f32 %v1429, %v1429
    %v1462 = vmul.f32 %v1430, %v1430
    %v1463 = vmul.f32 %v1431, %v1431
    %v1464 = vmul.f32 %v1432, %v1432
    %v1465 = vmul.f32 %v1433, %v1433
    %v1466 = vmul.f32 %v1434, %v1434
    %v1467 = vmul.f32 %v1435, %v1435
    %v1468 = vmul.f32 %v1436, %v1436
    %v1469 = vmul.f32 %v1437, %v1437
    %v1470 = vmul.f32 %v1438, %v1438
    %v1471 = vmul.f32 %v1439, %v1439
    %v1472 = vmul.f32 %v1440, %v1440
    %1473 = vadd.xlane.f32.xlu0 %v1441
    %v1474 = vpop.xlane.xlu0 %1473
    %1475 = vadd.xlane.f32.xlu0 %v1442
    %v1476 = vpop.xlane.xlu0 %1475
    %1477 = vadd.xlane.f32.xlu0 %v1443
    %v1478 = vpop.xlane.xlu0 %1477
    %1479 = vadd.xlane.f32.xlu0 %v1444
    %v1480 = vpop.xlane.xlu0 %1479
    %1481 = vadd.xlane.f32.xlu0 %v1445
    %v1482 = vpop.xlane.xlu0 %1481
    %1483 = vadd.xlane.f32.xlu0 %v1446
    %v1484 = vpop.xlane.xlu0 %1483
    %1485 = vadd.xlane.f32.xlu0 %v1447
    %v1486 = vpop.xlane.xlu0 %1485
    %1487 = vadd.xlane.f32.xlu0 %v1448
    %v1488 = vpop.xlane.xlu0 %1487
    %1489 = vadd.xlane.f32.xlu0 %v1449
    %v1490 = vpop.xlane.xlu0 %1489
    %1491 = vadd.xlane.f32.xlu0 %v1450
    %v1492 = vpop.xlane.xlu0 %1491
    %1493 = vadd.xlane.f32.xlu0 %v1451
    %v1494 = vpop.xlane.xlu0 %1493
    %1495 = vadd.xlane.f32.xlu0 %v1452
    %v1496 = vpop.xlane.xlu0 %1495
    %1497 = vadd.xlane.f32.xlu0 %v1453
    %v1498 = vpop.xlane.xlu0 %1497
    %1499 = vadd.xlane.f32.xlu0 %v1454
    %v1500 = vpop.xlane.xlu0 %1499
    %1501 = vadd.xlane.f32.xlu0 %v1455
    %v1502 = vpop.xlane.xlu0 %1501
    %1503 = vadd.xlane.f32.xlu0 %v1456
    %v1504 = vpop.xlane.xlu0 %1503
    %1505 = vadd.xlane.f32.xlu0 %v1457
    %v1506 = vpop.xlane.xlu0 %1505
    %1507 = vadd.xlane.f32.xlu0 %v1458
    %v1508 = vpop.xlane.xlu0 %1507
    %1509 = vadd.xlane.f32.xlu0 %v1459
    %v1510 = vpop.xlane.xlu0 %1509
    %1511 = vadd.xlane.f32.xlu0 %v1460
    %v1512 = vpop.xlane.xlu0 %1511
    %1513 = vadd.xlane.f32.xlu0 %v1461
    %v1514 = vpop.xlane.xlu0 %1513
    %1515 = vadd.xlane.f32.xlu0 %v1462
    %v1516 = vpop.xlane.xlu0 %1515
    %1517 = vadd.xlane.f32.xlu0 %v1463
    %v1518 = vpop.xlane.xlu0 %1517
    %1519 = vadd.xlane.f32.xlu0 %v1464
    %v1520 = vpop.xlane.xlu0 %1519
    %1521 = vadd.xlane.f32.xlu0 %v1465
    %v1522 = vpop.xlane.xlu0 %1521
    %1523 = vadd.xlane.f32.xlu0 %v1466
    %v1524 = vpop.xlane.xlu0 %1523
    %1525 = vadd.xlane.f32.xlu0 %v1467
    %v1526 = vpop.xlane.xlu0 %1525
    %1527 = vadd.xlane.f32.xlu0 %v1468
    %v1528 = vpop.xlane.xlu0 %1527
    %1529 = vadd.xlane.f32.xlu0 %v1469
    %v1530 = vpop.xlane.xlu0 %1529
    %1531 = vadd.xlane.f32.xlu0 %v1470
    %v1532 = vpop.xlane.xlu0 %1531
    %1533 = vadd.xlane.f32.xlu0 %v1471
    %v1534 = vpop.xlane.xlu0 %1533
    %1535 = vadd.xlane.f32.xlu0 %v1472
    %v1536 = vpop.xlane.xlu0 %1535
    %v1537 = vmul.f32 %v1474, %v1376
    %v1538 = vmul.f32 %v1476, %v1376
    %v1539 = vmul.f32 %v1478, %v1376
    %v1540 = vmul.f32 %v1480, %v1376
    %v1541 = vmul.f32 %v1482, %v1376
    %v1542 = vmul.f32 %v1484, %v1376
    %v1543 = vmul.f32 %v1486, %v1376
    %v1544 = vmul.f32 %v1488, %v1376
    %v1545 = vmul.f32 %v1490, %v1376
    %v1546 = vmul.f32 %v1492, %v1376
    %v1547 = vmul.f32 %v1494, %v1376
    %v1548 = vmul.f32 %v1496, %v1376
    %v1549 = vmul.f32 %v1498, %v1376
    %v1550 = vmul.f32 %v1500, %v1376
    %v1551 = vmul.f32 %v1502, %v1376
    %v1552 = vmul.f32 %v1504, %v1376
    %v1553 = vmul.f32 %v1506, %v1376
    %v1554 = vmul.f32 %v1508, %v1376
    %v1555 = vmul.f32 %v1510, %v1376
    %v1556 = vmul.f32 %v1512, %v1376
    %v1557 = vmul.f32 %v1514, %v1376
    %v1558 = vmul.f32 %v1516, %v1376
    %v1559 = vmul.f32 %v1518, %v1376
    %v1560 = vmul.f32 %v1520, %v1376
    %v1561 = vmul.f32 %v1522, %v1376
    %v1562 = vmul.f32 %v1524, %v1376
    %v1563 = vmul.f32 %v1526, %v1376
    %v1564 = vmul.f32 %v1528, %v1376
    %v1565 = vmul.f32 %v1530, %v1376
    %v1566 = vmul.f32 %v1532, %v1376
    %v1567 = vmul.f32 %v1534, %v1376
    %v1568 = vmul.f32 %v1536, %v1376
    %v1569 = vadd.f32 %v1537, 1e-05
    %v1570 = vadd.f32 %v1538, 1e-05
    %v1571 = vadd.f32 %v1539, 1e-05
    %v1572 = vadd.f32 %v1540, 1e-05
    %v1573 = vadd.f32 %v1541, 1e-05
    %v1574 = vadd.f32 %v1542, 1e-05
    %v1575 = vadd.f32 %v1543, 1e-05
    %v1576 = vadd.f32 %v1544, 1e-05
    %v1577 = vadd.f32 %v1545, 1e-05
    %v1578 = vadd.f32 %v1546, 1e-05
    %v1579 = vadd.f32 %v1547, 1e-05
    %v1580 = vadd.f32 %v1548, 1e-05
    %v1581 = vadd.f32 %v1549, 1e-05
    %v1582 = vadd.f32 %v1550, 1e-05
    %v1583 = vadd.f32 %v1551, 1e-05
    %v1584 = vadd.f32 %v1552, 1e-05
    %v1585 = vadd.f32 %v1553, 1e-05
    %v1586 = vadd.f32 %v1554, 1e-05
    %v1587 = vadd.f32 %v1555, 1e-05
    %v1588 = vadd.f32 %v1556, 1e-05
    %v1589 = vadd.f32 %v1557, 1e-05
    %v1590 = vadd.f32 %v1558, 1e-05
    %v1591 = vadd.f32 %v1559, 1e-05
    %v1592 = vadd.f32 %v1560, 1e-05
    %v1593 = vadd.f32 %v1561, 1e-05
    %v1594 = vadd.f32 %v1562, 1e-05
    %v1595 = vadd.f32 %v1563, 1e-05
    %v1596 = vadd.f32 %v1564, 1e-05
    %v1597 = vadd.f32 %v1565, 1e-05
    %v1598 = vadd.f32 %v1566, 1e-05
    %v1599 = vadd.f32 %v1567, 1e-05
    %v1600 = vadd.f32 %v1568, 1e-05
    %v1601 = vrsqrt.pop %v1569
    %v1602 = vrsqrt.pop %v1570
    %v1603 = vrsqrt.pop %v1571
    %v1604 = vrsqrt.pop %v1572
    %v1605 = vrsqrt.pop %v1573
    %v1606 = vrsqrt.pop %v1574
    %v1607 = vrsqrt.pop %v1575
    %v1608 = vrsqrt.pop %v1576
    %v1609 = vrsqrt.pop %v1577
    %v1610 = vrsqrt.pop %v1578
    %v1611 = vrsqrt.pop %v1579
    %v1612 = vrsqrt.pop %v1580
    %v1613 = vrsqrt.pop %v1581
    %v1614 = vrsqrt.pop %v1582
    %v1615 = vrsqrt.pop %v1583
    %v1616 = vrsqrt.pop %v1584
    %v1617 = vrsqrt.pop %v1585
    %v1618 = vrsqrt.pop %v1586
    %v1619 = vrsqrt.pop %v1587
    %v1620 = vrsqrt.pop %v1588
    %v1621 = vrsqrt.pop %v1589
    %v1622 = vrsqrt.pop %v1590
    %v1623 = vrsqrt.pop %v1591
    %v1624 = vrsqrt.pop %v1592
    %v1625 = vrsqrt.pop %v1593
    %v1626 = vrsqrt.pop %v1594
    %v1627 = vrsqrt.pop %v1595
    %v1628 = vrsqrt.pop %v1596
    %v1629 = vrsqrt.pop %v1597
    %v1630 = vrsqrt.pop %v1598
    %v1631 = vrsqrt.pop %v1599
    %v1632 = vrsqrt.pop %v1600
    %v1633 = vmul.f32 %v1409, %v1601
    %v1634 = vmul.f32 %v1410, %v1602
    %v1635 = vmul.f32 %v1411, %v1603
    %v1636 = vmul.f32 %v1412, %v1604
    %v1637 = vmul.f32 %v1413, %v1605
    %v1638 = vmul.f32 %v1414, %v1606
    %v1639 = vmul.f32 %v1415, %v1607
    %v1640 = vmul.f32 %v1416, %v1608
    %v1641 = vmul.f32 %v1417, %v1609
    %v1642 = vmul.f32 %v1418, %v1610
    %v1643 = vmul.f32 %v1419, %v1611
    %v1644 = vmul.f32 %v1420, %v1612
    %v1645 = vmul.f32 %v1421, %v1613
    %v1646 = vmul.f32 %v1422, %v1614
    %v1647 = vmul.f32 %v1423, %v1615
    %v1648 = vmul.f32 %v1424, %v1616
    %v1649 = vmul.f32 %v1425, %v1617
    %v1650 = vmul.f32 %v1426, %v1618
    %v1651 = vmul.f32 %v1427, %v1619
    %v1652 = vmul.f32 %v1428, %v1620
    %v1653 = vmul.f32 %v1429, %v1621
    %v1654 = vmul.f32 %v1430, %v1622
    %v1655 = vmul.f32 %v1431, %v1623
    %v1656 = vmul.f32 %v1432, %v1624
    %v1657 = vmul.f32 %v1433, %v1625
    %v1658 = vmul.f32 %v1434, %v1626
    %v1659 = vmul.f32 %v1435, %v1627
    %v1660 = vmul.f32 %v1436, %v1628
    %v1661 = vmul.f32 %v1437, %v1629
    %v1662 = vmul.f32 %v1438, %v1630
    %v1663 = vmul.f32 %v1439, %v1631
    %v1664 = vmul.f32 %v1440, %v1632
    %v1666 = vlaneseq
    %v1667 = vshrl.u32 %v1666, 7
    %v1668 = vsub.s32 0, %v1667
    %v1669 = vrot.slane %v1310, %v1668
    %v1671 = vmul.f32 %v1633, %v1669
    %v1672 = vmul.f32 %v1634, %v1669
    %v1673 = vmul.f32 %v1635, %v1669
    %v1674 = vmul.f32 %v1636, %v1669
    %v1675 = vmul.f32 %v1637, %v1669
    %v1676 = vmul.f32 %v1638, %v1669
    %v1677 = vmul.f32 %v1639, %v1669
    %v1678 = vmul.f32 %v1640, %v1669
    %v1679 = vmul.f32 %v1641, %v1669
    %v1680 = vmul.f32 %v1642, %v1669
    %v1681 = vmul.f32 %v1643, %v1669
    %v1682 = vmul.f32 %v1644, %v1669
    %v1683 = vmul.f32 %v1645, %v1669
    %v1684 = vmul.f32 %v1646, %v1669
    %v1685 = vmul.f32 %v1647, %v1669
    %v1686 = vmul.f32 %v1648, %v1669
    %v1687 = vmul.f32 %v1649, %v1669
    %v1688 = vmul.f32 %v1650, %v1669
    %v1689 = vmul.f32 %v1651, %v1669
    %v1690 = vmul.f32 %v1652, %v1669
    %v1691 = vmul.f32 %v1653, %v1669
    %v1692 = vmul.f32 %v1654, %v1669
    %v1693 = vmul.f32 %v1655, %v1669
    %v1694 = vmul.f32 %v1656, %v1669
    %v1695 = vmul.f32 %v1657, %v1669
    %v1696 = vmul.f32 %v1658, %v1669
    %v1697 = vmul.f32 %v1659, %v1669
    %v1698 = vmul.f32 %v1660, %v1669
    %v1699 = vmul.f32 %v1661, %v1669
    %v1700 = vmul.f32 %v1662, %v1669
    %v1701 = vmul.f32 %v1663, %v1669
    %v1702 = vmul.f32 %v1664, %v1669
    %v1704 = vlaneseq
    %v1705 = vshrl.u32 %v1704, 7
    %v1706 = vsub.s32 0, %v1705
    %v1707 = vrot.slane %v1311, %v1706
    %v1709 = vadd.f32 %v1671, %v1707
    %v1710 = vadd.f32 %v1672, %v1707
    %v1711 = vadd.f32 %v1673, %v1707
    %v1712 = vadd.f32 %v1674, %v1707
    %v1713 = vadd.f32 %v1675, %v1707
    %v1714 = vadd.f32 %v1676, %v1707
    %v1715 = vadd.f32 %v1677, %v1707
    %v1716 = vadd.f32 %v1678, %v1707
    %v1717 = vadd.f32 %v1679, %v1707
    %v1718 = vadd.f32 %v1680, %v1707
    %v1719 = vadd.f32 %v1681, %v1707
    %v1720 = vadd.f32 %v1682, %v1707
    %v1721 = vadd.f32 %v1683, %v1707
    %v1722 = vadd.f32 %v1684, %v1707
    %v1723 = vadd.f32 %v1685, %v1707
    %v1724 = vadd.f32 %v1686, %v1707
    %v1725 = vadd.f32 %v1687, %v1707
    %v1726 = vadd.f32 %v1688, %v1707
    %v1727 = vadd.f32 %v1689, %v1707
    %v1728 = vadd.f32 %v1690, %v1707
    %v1729 = vadd.f32 %v1691, %v1707
    %v1730 = vadd.f32 %v1692, %v1707
    %v1731 = vadd.f32 %v1693, %v1707
    %v1732 = vadd.f32 %v1694, %v1707
    %v1733 = vadd.f32 %v1695, %v1707
    %v1734 = vadd.f32 %v1696, %v1707
    %v1735 = vadd.f32 %v1697, %v1707
    %v1736 = vadd.f32 %v1698, %v1707
    %v1737 = vadd.f32 %v1699, %v1707
    %v1738 = vadd.f32 %v1700, %v1707
    %v1739 = vadd.f32 %v1701, %v1707
    %v1740 = vadd.f32 %v1702, %v1707
    %v1741 = vmax.f32 %v1709, 0.0
    %v1742 = vmax.f32 %v1710, 0.0
    %v1743 = vmax.f32 %v1711, 0.0
    %v1744 = vmax.f32 %v1712, 0.0
    %v1745 = vmax.f32 %v1713, 0.0
    %v1746 = vmax.f32 %v1714, 0.0
    %v1747 = vmax.f32 %v1715, 0.0
    %v1748 = vmax.f32 %v1716, 0.0
    %v1749 = vmax.f32 %v1717, 0.0
    %v1750 = vmax.f32 %v1718, 0.0
    %v1751 = vmax.f32 %v1719, 0.0
    %v1752 = vmax.f32 %v1720, 0.0
    %v1753 = vmax.f32 %v1721, 0.0
    %v1754 = vmax.f32 %v1722, 0.0
    %v1755 = vmax.f32 %v1723, 0.0
    %v1756 = vmax.f32 %v1724, 0.0
    %v1757 = vmax.f32 %v1725, 0.0
    %v1758 = vmax.f32 %v1726, 0.0
    %v1759 = vmax.f32 %v1727, 0.0
    %v1760 = vmax.f32 %v1728, 0.0
    %v1761 = vmax.f32 %v1729, 0.0
    %v1762 = vmax.f32 %v1730, 0.0
    %v1763 = vmax.f32 %v1731, 0.0
    %v1764 = vmax.f32 %v1732, 0.0
    %v1765 = vmax.f32 %v1733, 0.0
    %v1766 = vmax.f32 %v1734, 0.0
    %v1767 = vmax.f32 %v1735, 0.0
    %v1768 = vmax.f32 %v1736, 0.0
    %v1769 = vmax.f32 %v1737, 0.0
    %v1770 = vmax.f32 %v1738, 0.0
    %v1771 = vmax.f32 %v1739, 0.0
    %v1772 = vmax.f32 %v1740, 0.0
    %v1773 = vld [vmem:[%s11] sm:$0xff]
    %v1774 = vld [vmem:[%s11 + $0x8] sm:$0xff]
    %v1775 = vld [vmem:[%s11 + $0x10] sm:$0xff]
    %v1776 = vld [vmem:[%s11 + $0x18] sm:$0xff]
    %v1777 = vld [vmem:[%s11 + $0x20] sm:$0xff]
    %v1778 = vld [vmem:[%s11 + $0x28] sm:$0xff]
    %v1779 = vld [vmem:[%s11 + $0x30] sm:$0xff]
    %v1780 = vld [vmem:[%s11 + $0x38] sm:$0xff]
    %v1781 = vld [vmem:[%s11 + $0x40] sm:$0xff]
    %v1782 = vld [vmem:[%s11 + $0x48] sm:$0xff]
    %v1783 = vld [vmem:[%s11 + $0x50] sm:$0xff]
    %v1784 = vld [vmem:[%s11 + $0x58] sm:$0xff]
    %v1785 = vld [vmem:[%s11 + $0x60] sm:$0xff]
    %v1786 = vld [vmem:[%s11 + $0x68] sm:$0xff]
    %v1787 = vld [vmem:[%s11 + $0x70] sm:$0xff]
    %v1788 = vld [vmem:[%s11 + $0x78] sm:$0xff]
    %v1789 = vld [vmem:[%s11 + $0x80] sm:$0xff]
    %v1790 = vld [vmem:[%s11 + $0x88] sm:$0xff]
    %v1791 = vld [vmem:[%s11 + $0x90] sm:$0xff]
    %v1792 = vld [vmem:[%s11 + $0x98] sm:$0xff]
    %v1793 = vld [vmem:[%s11 + $0xa0] sm:$0xff]
    %v1794 = vld [vmem:[%s11 + $0xa8] sm:$0xff]
    %v1795 = vld [vmem:[%s11 + $0xb0] sm:$0xff]
    %v1796 = vld [vmem:[%s11 + $0xb8] sm:$0xff]
    %v1797 = vld [vmem:[%s11 + $0xc0] sm:$0xff]
    %v1798 = vld [vmem:[%s11 + $0xc8] sm:$0xff]
    %v1799 = vld [vmem:[%s11 + $0xd0] sm:$0xff]
    %v1800 = vld [vmem:[%s11 + $0xd8] sm:$0xff]
    %v1801 = vld [vmem:[%s11 + $0xe0] sm:$0xff]
    %v1802 = vld [vmem:[%s11 + $0xe8] sm:$0xff]
    %v1803 = vld [vmem:[%s11 + $0xf0] sm:$0xff]
    %v1804 = vld [vmem:[%s11 + $0xf8] sm:$0xff]
    %v1805 = vld [vmem:[%s12] sm:$0x3]
    %v1807 = vlaneseq
    %v1808 = vshrl.u32 %v1807, 7
    %v1809 = vsub.s32 0, %v1808
    %v1810 = vrot.slane %v1805, %v1809
    %v1811 = vlaneseq
    %v1812 = vshrl.u32 %v1811, 7
    %v1813 = vsub.s32 1, %v1812
    %v1814 = vrot.slane %v1805, %v1813
    %1817 = vmatprep.subr.mxu0 %v1774
    %1818 = vmatpush1.msra.mxu0 %v1773
    %1819 = vmatprep.subr.mxu0 %v1776
    %1820 = vmatpush1.msra.mxu0 %v1775
    %1821 = vmatprep.subr.mxu0 %v1778
    %1822 = vmatpush1.msra.mxu0 %v1777
    %1823 = vmatprep.subr.mxu0 %v1780
    %1824 = vmatpush1.msra.mxu0 %v1779
    %1825 = vmatprep.subr.mxu0 %v1782
    %1826 = vmatpush1.msra.mxu0 %v1781
    %1827 = vmatprep.subr.mxu0 %v1784
    %1828 = vmatpush1.msra.mxu0 %v1783
    %1829 = vmatprep.subr.mxu0 %v1786
    %1830 = vmatpush1.msra.mxu0 %v1785
    %1831 = vmatprep.subr.mxu0 %v1788
    %1832 = vmatpush1.msra.mxu0 %v1787
    %1833 = vmatprep.subr.mxu0 %v1790
    %1834 = vmatpush1.msra.mxu0 %v1789
    %1835 = vmatprep.subr.mxu0 %v1792
    %1836 = vmatpush1.msra.mxu0 %v1791
    %1837 = vmatprep.subr.mxu0 %v1794
    %1838 = vmatpush1.msra.mxu0 %v1793
    %1839 = vmatprep.subr.mxu0 %v1796
    %1840 = vmatpush1.msra.mxu0 %v1795
    %1841 = vmatprep.subr.mxu0 %v1798
    %1842 = vmatpush1.msra.mxu0 %v1797
    %1843 = vmatprep.subr.mxu0 %v1800
    %1844 = vmatpush1.msra.mxu0 %v1799
    %1845 = vmatprep.subr.mxu0 %v1802
    %1846 = vmatpush1.msra.mxu0 %v1801
    %1847 = vmatprep.subr.mxu0 %v1804
    %1848 = vmatpush1.msra.mxu0 %v1803
    %1849 = vmatprep.subr.mxu0 0.0
    %1850 = vmatpush1.msra.mxu0 0.0
    %1851 = vmatprep.subr.mxu0 0.0
    %1852 = vmatpush1.msra.mxu0 0.0
    %1853 = vmatprep.subr.mxu0 0.0
    %1854 = vmatpush1.msra.mxu0 0.0
    %1855 = vmatprep.subr.mxu0 0.0
    %1856 = vmatpush1.msra.mxu0 0.0
    %1857 = vmatprep.subr.mxu0 0.0
    %1858 = vmatpush1.msra.mxu0 0.0
    %1859 = vmatprep.subr.mxu0 0.0
    %1860 = vmatpush1.msra.mxu0 0.0
    %1861 = vmatprep.subr.mxu0 0.0
    %1862 = vmatpush1.msra.mxu0 0.0
    %1863 = vmatprep.subr.mxu0 0.0
    %1864 = vmatpush1.msra.mxu0 0.0
    %1865 = vmatprep.subr.mxu0 0.0
    %1866 = vmatpush1.msra.mxu0 0.0
    %1867 = vmatprep.subr.mxu0 0.0
    %1868 = vmatpush1.msra.mxu0 0.0
    %1869 = vmatprep.subr.mxu0 0.0
    %1870 = vmatpush1.msra.mxu0 0.0
    %1871 = vmatprep.subr.mxu0 0.0
    %1872 = vmatpush1.msra.mxu0 0.0
    %1873 = vmatprep.subr.mxu0 0.0
    %1874 = vmatpush1.msra.mxu0 0.0
    %1875 = vmatprep.subr.mxu0 0.0
    %1876 = vmatpush1.msra.mxu0 0.0
    %1877 = vmatprep.subr.mxu0 0.0
    %1878 = vmatpush1.msra.mxu0 0.0
    %1879 = vmatprep.subr.mxu0 0.0
    %1880 = vmatpush1.msra.mxu0 0.0
    %1881 = vmatprep.mubr.f32.mxu0 0.0
    %1882 = vmatmul.mubr.f32.gmra.mrb[0].mxu0 %v1741
    %v1883 = vpop.f32.mrb[0].mxu0
    %v1884 = vadd.f32 %v1810, %v1883
    %v1885 = vpop.f32.mrb[0].mxu0
    %v1886 = vadd.f32 %v1814, %v1885
    %1887 = vmatprep.mubr.f32.mxu0 0.0
    %1888 = vmatmul.mubr.f32.gmra.mrb[0].mxu0 %v1742
    %v1889 = vpop.f32.mrb[0].mxu0
    %v1890 = vadd.f32 %v1810, %v1889
    %v1891 = vpop.f32.mrb[0].mxu0
    %v1892 = vadd.f32 %v1814, %v1891
    %1893 = vmatprep.mubr.f32.mxu0 0.0
    %1894 = vmatmul.mubr.f32.gmra.mrb[0].mxu0 %v1743
    %v1895 = vpop.f32.mrb[0].mxu0
    %v1896 = vadd.f32 %v1810, %v1895
    %v1897 = vpop.f32.mrb[0].mxu0
    %v1898 = vadd.f32 %v1814, %v1897
    %1899 = vmatprep.mubr.f32.mxu0 0.0
    %1900 = vmatmul.mubr.f32.gmra.mrb[0].mxu0 %v1744
    %v1901 = vpop.f32.mrb[0].mxu0
    %v1902 = vadd.f32 %v1810, %v1901
    %v1903 = vpop.f32.mrb[0].mxu0
    %v1904 = vadd.f32 %v1814, %v1903
    %1905 = vmatprep.mubr.f32.mxu0 0.0
    %1906 = vmatmul.mubr.f32.gmra.mrb[0].mxu0 %v1745
    %v1907 = vpop.f32.mrb[0].mxu0
    %v1908 = vadd.f32 %v1810, %v1907
    %v1909 = vpop.f32.mrb[0].mxu0
    %v1910 = vadd.f32 %v1814, %v1909
    %1911 = vmatprep.mubr.f32.mxu0 0.0
    %1912 = vmatmul.mubr.f32.gmra.mrb[0].mxu0 %v1746
    %v1913 = vpop.f32.mrb[0].mxu0
    %v1914 = vadd.f32 %v1810, %v1913
    %v1915 = vpop.f32.mrb[0].mxu0
    %v1916 = vadd.f32 %v1814, %v1915
    %1917 = vmatprep.mubr.f32.mxu0 0.0
    %1918 = vmatmul.mubr.f32.gmra.mrb[0].mxu0 %v1747
    %v1919 = vpop.f32.mrb[0].mxu0
    %v1920 = vadd.f32 %v1810, %v1919
    %v1921 = vpop.f32.mrb[0].mxu0
    %v1922 = vadd.f32 %v1814, %v1921
    %1923 = vmatprep.mubr.f32.mxu0 0.0
    %1924 = vmatmul.mubr.f32.gmra.mrb[0].mxu0 %v1748
    %v1925 = vpop.f32.mrb[0].mxu0
    %v1926 = vadd.f32 %v1810, %v1925
    %v1927 = vpop.f32.mrb[0].mxu0
    %v1928 = vadd.f32 %v1814, %v1927
    %1929 = vmatprep.mubr.f32.mxu0 0.0
    %1930 = vmatmul.mubr.f32.gmra.mrb[0].mxu0 %v1749
    %v1931 = vpop.f32.mrb[0].mxu0
    %v1932 = vadd.f32 %v1810, %v1931
    %v1933 = vpop.f32.mrb[0].mxu0
    %v1934 = vadd.f32 %v1814, %v1933
    %1935 = vmatprep.mubr.f32.mxu0 0.0
    %1936 = vmatmul.mubr.f32.gmra.mrb[0].mxu0 %v1750
    %v1937 = vpop.f32.mrb[0].mxu0
    %v1938 = vadd.f32 %v1810, %v1937
    %v1939 = vpop.f32.mrb[0].mxu0
    %v1940 = vadd.f32 %v1814, %v1939
    %1941 = vmatprep.mubr.f32.mxu0 0.0
    %1942 = vmatmul.mubr.f32.gmra.mrb[0].mxu0 %v1751
    %v1943 = vpop.f32.mrb[0].mxu0
    %v1944 = vadd.f32 %v1810, %v1943
    %v1945 = vpop.f32.mrb[0].mxu0
    %v1946 = vadd.f32 %v1814, %v1945
    %1947 = vmatprep.mubr.f32.mxu0 0.0
    %1948 = vmatmul.mubr.f32.gmra.mrb[0].mxu0 %v1752
    %v1949 = vpop.f32.mrb[0].mxu0
    %v1950 = vadd.f32 %v1810, %v1949
    %v1951 = vpop.f32.mrb[0].mxu0
    %v1952 = vadd.f32 %v1814, %v1951
    %1953 = vmatprep.mubr.f32.mxu0 0.0
    %1954 = vmatmul.mubr.f32.gmra.mrb[0].mxu0 %v1753
    %v1955 = vpop.f32.mrb[0].mxu0
    %v1956 = vadd.f32 %v1810, %v1955
    %v1957 = vpop.f32.mrb[0].mxu0
    %v1958 = vadd.f32 %v1814, %v1957
    %1959 = vmatprep.mubr.f32.mxu0 0.0
    %1960 = vmatmul.mubr.f32.gmra.mrb[0].mxu0 %v1754
    %v1961 = vpop.f32.mrb[0].mxu0
    %v1962 = vadd.f32 %v1810, %v1961
    %v1963 = vpop.f32.mrb[0].mxu0
    %v1964 = vadd.f32 %v1814, %v1963
    %1965 = vmatprep.mubr.f32.mxu0 0.0
    %1966 = vmatmul.mubr.f32.gmra.mrb[0].mxu0 %v1755
    %v1967 = vpop.f32.mrb[0].mxu0
    %v1968 = vadd.f32 %v1810, %v1967
    %v1969 = vpop.f32.mrb[0].mxu0
    %v1970 = vadd.f32 %v1814, %v1969
    %1971 = vmatprep.mubr.f32.mxu0 0.0
    %1972 = vmatmul.mubr.f32.gmra.mrb[0].mxu0 %v1756
    %v1973 = vpop.f32.mrb[0].mxu0
    %v1974 = vadd.f32 %v1810, %v1973
    %v1975 = vpop.f32.mrb[0].mxu0
    %v1976 = vadd.f32 %v1814, %v1975
    %1977 = vmatprep.mubr.f32.mxu0 0.0
    %1978 = vmatmul.mubr.f32.gmra.mrb[0].mxu0 %v1757
    %v1979 = vpop.f32.mrb[0].mxu0
    %v1980 = vadd.f32 %v1810, %v1979
    %v1981 = vpop.f32.mrb[0].mxu0
    %v1982 = vadd.f32 %v1814, %v1981
    %1983 = vmatprep.mubr.f32.mxu0 0.0
    %1984 = vmatmul.mubr.f32.gmra.mrb[0].mxu0 %v1758
    %v1985 = vpop.f32.mrb[0].mxu0
    %v1986 = vadd.f32 %v1810, %v1985
    %v1987 = vpop.f32.mrb[0].mxu0
    %v1988 = vadd.f32 %v1814, %v1987
    %1989 = vmatprep.mubr.f32.mxu0 0.0
    %1990 = vmatmul.mubr.f32.gmra.mrb[0].mxu0 %v1759
    %v1991 = vpop.f32.mrb[0].mxu0
    %v1992 = vadd.f32 %v1810, %v1991
    %v1993 = vpop.f32.mrb[0].mxu0
    %v1994 = vadd.f32 %v1814, %v1993
    %1995 = vmatprep.mubr.f32.mxu0 0.0
    %1996 = vmatmul.mubr.f32.gmra.mrb[0].mxu0 %v1760
    %v1997 = vpop.f32.mrb[0].mxu0
    %v1998 = vadd.f32 %v1810, %v1997
    %v1999 = vpop.f32.mrb[0].mxu0
    %v2000 = vadd.f32 %v1814, %v1999
    %2001 = vmatprep.mubr.f32.mxu0 0.0
    %2002 = vmatmul.mubr.f32.gmra.mrb[0].mxu0 %v1761
    %v2003 = vpop.f32.mrb[0].mxu0
    %v2004 = vadd.f32 %v1810, %v2003
    %v2005 = vpop.f32.mrb[0].mxu0
    %v2006 = vadd.f32 %v1814, %v2005
    %2007 = vmatprep.mubr.f32.mxu0 0.0
    %2008 = vmatmul.mubr.f32.gmra.mrb[0].mxu0 %v1762
    %v2009 = vpop.f32.mrb[0].mxu0
    %v2010 = vadd.f32 %v1810, %v2009
    %v2011 = vpop.f32.mrb[0].mxu0
    %v2012 = vadd.f32 %v1814, %v2011
    %2013 = vmatprep.mubr.f32.mxu0 0.0
    %2014 = vmatmul.mubr.f32.gmra.mrb[0].mxu0 %v1763
    %v2015 = vpop.f32.mrb[0].mxu0
    %v2016 = vadd.f32 %v1810, %v2015
    %v2017 = vpop.f32.mrb[0].mxu0
    %v2018 = vadd.f32 %v1814, %v2017
    %2019 = vmatprep.mubr.f32.mxu0 0.0
    %2020 = vmatmul.mubr.f32.gmra.mrb[0].mxu0 %v1764
    %v2021 = vpop.f32.mrb[0].mxu0
    %v2022 = vadd.f32 %v1810, %v2021
    %v2023 = vpop.f32.mrb[0].mxu0
    %v2024 = vadd.f32 %v1814, %v2023
    %2025 = vmatprep.mubr.f32.mxu0 0.0
    %2026 = vmatmul.mubr.f32.gmra.mrb[0].mxu0 %v1765
    %v2027 = vpop.f32.mrb[0].mxu0
    %v2028 = vadd.f32 %v1810, %v2027
    %v2029 = vpop.f32.mrb[0].mxu0
    %v2030 = vadd.f32 %v1814, %v2029
    %2031 = vmatprep.mubr.f32.mxu0 0.0
    %2032 = vmatmul.mubr.f32.gmra.mrb[0].mxu0 %v1766
    %v2033 = vpop.f32.mrb[0].mxu0
    %v2034 = vadd.f32 %v1810, %v2033
    %v2035 = vpop.f32.mrb[0].mxu0
    %v2036 = vadd.f32 %v1814, %v2035
    %2037 = vmatprep.mubr.f32.mxu0 0.0
    %2038 = vmatmul.mubr.f32.gmra.mrb[0].mxu0 %v1767
    %v2039 = vpop.f32.mrb[0].mxu0
    %v2040 = vadd.f32 %v1810, %v2039
    %v2041 = vpop.f32.mrb[0].mxu0
    %v2042 = vadd.f32 %v1814, %v2041
    %2043 = vmatprep.mubr.f32.mxu0 0.0
    %2044 = vmatmul.mubr.f32.gmra.mrb[0].mxu0 %v1768
    %v2045 = vpop.f32.mrb[0].mxu0
    %v2046 = vadd.f32 %v1810, %v2045
    %v2047 = vpop.f32.mrb[0].mxu0
    %v2048 = vadd.f32 %v1814, %v2047
    %2049 = vmatprep.mubr.f32.mxu0 0.0
    %2050 = vmatmul.mubr.f32.gmra.mrb[0].mxu0 %v1769
    %v2051 = vpop.f32.mrb[0].mxu0
    %v2052 = vadd.f32 %v1810, %v2051
    %v2053 = vpop.f32.mrb[0].mxu0
    %v2054 = vadd.f32 %v1814, %v2053
    %2055 = vmatprep.mubr.f32.mxu0 0.0
    %2056 = vmatmul.mubr.f32.gmra.mrb[0].mxu0 %v1770
    %v2057 = vpop.f32.mrb[0].mxu0
    %v2058 = vadd.f32 %v1810, %v2057
    %v2059 = vpop.f32.mrb[0].mxu0
    %v2060 = vadd.f32 %v1814, %v2059
    %2061 = vmatprep.mubr.f32.mxu0 0.0
    %2062 = vmatmul.mubr.f32.gmra.mrb[0].mxu0 %v1771
    %v2063 = vpop.f32.mrb[0].mxu0
    %v2064 = vadd.f32 %v1810, %v2063
    %v2065 = vpop.f32.mrb[0].mxu0
    %v2066 = vadd.f32 %v1814, %v2065
    %2067 = vmatprep.mubr.f32.mxu0 0.0
    %2068 = vmatmul.mubr.f32.gmra.mrb[0].mxu0 %v1772
    %v2069 = vpop.f32.mrb[0].mxu0
    %v2070 = vadd.f32 %v1810, %v2069
    %v2071 = vpop.f32.mrb[0].mxu0
    %v2072 = vadd.f32 %v1814, %v2071
    %2073 = vdwg.mxu0
    %v2074 = vld [vmem:[%s13] sm:$0x3]
    %v2075 = vld [vmem:[%s14] sm:$0x3]
    %v2076 = vadd.f32 %v1884, %v1886
    %2077 = vadd.xlane.f32.xlu0 %v2076
    %v2078 = vpop.xlane.xlu0 %2077
    %v2079 = vadd.f32 %v1890, %v1892
    %2080 = vadd.xlane.f32.xlu0 %v2079
    %v2081 = vpop.xlane.xlu0 %2080
    %v2082 = vadd.f32 %v1896, %v1898
    %2083 = vadd.xlane.f32.xlu0 %v2082
    %v2084 = vpop.xlane.xlu0 %2083
    %v2085 = vadd.f32 %v1902, %v1904
    %2086 = vadd.xlane.f32.xlu0 %v2085
    %v2087 = vpop.xlane.xlu0 %2086
    %v2088 = vadd.f32 %v1908, %v1910
    %2089 = vadd.xlane.f32.xlu0 %v2088
    %v2090 = vpop.xlane.xlu0 %2089
    %v2091 = vadd.f32 %v1914, %v1916
    %2092 = vadd.xlane.f32.xlu0 %v2091
    %v2093 = vpop.xlane.xlu0 %2092
    %v2094 = vadd.f32 %v1920, %v1922
    %2095 = vadd.xlane.f32.xlu0 %v2094
    %v2096 = vpop.xlane.xlu0 %2095
    %v2097 = vadd.f32 %v1926, %v1928
    %2098 = vadd.xlane.f32.xlu0 %v2097
    %v2099 = vpop.xlane.xlu0 %2098
    %v2100 = vadd.f32 %v1932, %v1934
    %2101 = vadd.xlane.f32.xlu0 %v2100
    %v2102 = vpop.xlane.xlu0 %2101
    %v2103 = vadd.f32 %v1938, %v1940
    %2104 = vadd.xlane.f32.xlu0 %v2103
    %v2105 = vpop.xlane.xlu0 %2104
    %v2106 = vadd.f32 %v1944, %v1946
    %2107 = vadd.xlane.f32.xlu0 %v2106
    %v2108 = vpop.xlane.xlu0 %2107
    %v2109 = vadd.f32 %v1950, %v1952
    %2110 = vadd.xlane.f32.xlu0 %v2109
    %v2111 = vpop.xlane.xlu0 %2110
    %v2112 = vadd.f32 %v1956, %v1958
    %2113 = vadd.xlane.f32.xlu0 %v2112
    %v2114 = vpop.xlane.xlu0 %2113
    %v2115 = vadd.f32 %v1962, %v1964
    %2116 = vadd.xlane.f32.xlu0 %v2115
    %v2117 = vpop.xlane.xlu0 %2116
    %v2118 = vadd.f32 %v1968, %v1970
    %2119 = vadd.xlane.f32.xlu0 %v2118
    %v2120 = vpop.xlane.xlu0 %2119
    %v2121 = vadd.f32 %v1974, %v1976
    %2122 = vadd.xlane.f32.xlu0 %v2121
    %v2123 = vpop.xlane.xlu0 %2122
    %v2124 = vadd.f32 %v1980, %v1982
    %2125 = vadd.xlane.f32.xlu0 %v2124
    %v2126 = vpop.xlane.xlu0 %2125
    %v2127 = vadd.f32 %v1986, %v1988
    %2128 = vadd.xlane.f32.xlu0 %v2127
    %v2129 = vpop.xlane.xlu0 %2128
    %v2130 = vadd.f32 %v1992, %v1994
    %2131 = vadd.xlane.f32.xlu0 %v2130
    %v2132 = vpop.xlane.xlu0 %2131
    %v2133 = vadd.f32 %v1998, %v2000
    %2134 = vadd.xlane.f32.xlu0 %v2133
    %v2135 = vpop.xlane.xlu0 %2134
    %v2136 = vadd.f32 %v2004, %v2006
    %2137 = vadd.xlane.f32.xlu0 %v2136
    %v2138 = vpop.xlane.xlu0 %2137
    %v2139 = vadd.f32 %v2010, %v2012
    %2140 = vadd.xlane.f32.xlu0 %v2139
    %v2141 = vpop.xlane.xlu0 %2140
    %v2142 = vadd.f32 %v2016, %v2018
    %2143 = vadd.xlane.f32.xlu0 %v2142
    %v2144 = vpop.xlane.xlu0 %2143
    %v2145 = vadd.f32 %v2022, %v2024
    %2146 = vadd.xlane.f32.xlu0 %v2145
    %v2147 = vpop.xlane.xlu0 %2146
    %v2148 = vadd.f32 %v2028, %v2030
    %2149 = vadd.xlane.f32.xlu0 %v2148
    %v2150 = vpop.xlane.xlu0 %2149
    %v2151 = vadd.f32 %v2034, %v2036
    %2152 = vadd.xlane.f32.xlu0 %v2151
    %v2153 = vpop.xlane.xlu0 %2152
    %v2154 = vadd.f32 %v2040, %v2042
    %2155 = vadd.xlane.f32.xlu0 %v2154
    %v2156 = vpop.xlane.xlu0 %2155
    %v2157 = vadd.f32 %v2046, %v2048
    %2158 = vadd.xlane.f32.xlu0 %v2157
    %v2159 = vpop.xlane.xlu0 %2158
    %v2160 = vadd.f32 %v2052, %v2054
    %2161 = vadd.xlane.f32.xlu0 %v2160
    %v2162 = vpop.xlane.xlu0 %2161
    %v2163 = vadd.f32 %v2058, %v2060
    %2164 = vadd.xlane.f32.xlu0 %v2163
    %v2165 = vpop.xlane.xlu0 %2164
    %v2166 = vadd.f32 %v2064, %v2066
    %2167 = vadd.xlane.f32.xlu0 %v2166
    %v2168 = vpop.xlane.xlu0 %2167
    %v2169 = vadd.f32 %v2070, %v2072
    %2170 = vadd.xlane.f32.xlu0 %v2169
    %v2171 = vpop.xlane.xlu0 %2170
    %v2172 = vrcp.pop 256.0
    %v2173 = vmul.f32 %v2078, %v2172
    %v2174 = vmul.f32 %v2081, %v2172
    %v2175 = vmul.f32 %v2084, %v2172
    %v2176 = vmul.f32 %v2087, %v2172
    %v2177 = vmul.f32 %v2090, %v2172
    %v2178 = vmul.f32 %v2093, %v2172
    %v2179 = vmul.f32 %v2096, %v2172
    %v2180 = vmul.f32 %v2099, %v2172
    %v2181 = vmul.f32 %v2102, %v2172
    %v2182 = vmul.f32 %v2105, %v2172
    %v2183 = vmul.f32 %v2108, %v2172
    %v2184 = vmul.f32 %v2111, %v2172
    %v2185 = vmul.f32 %v2114, %v2172
    %v2186 = vmul.f32 %v2117, %v2172
    %v2187 = vmul.f32 %v2120, %v2172
    %v2188 = vmul.f32 %v2123, %v2172
    %v2189 = vmul.f32 %v2126, %v2172
    %v2190 = vmul.f32 %v2129, %v2172
    %v2191 = vmul.f32 %v2132, %v2172
    %v2192 = vmul.f32 %v2135, %v2172
    %v2193 = vmul.f32 %v2138, %v2172
    %v2194 = vmul.f32 %v2141, %v2172
    %v2195 = vmul.f32 %v2144, %v2172
    %v2196 = vmul.f32 %v2147, %v2172
    %v2197 = vmul.f32 %v2150, %v2172
    %v2198 = vmul.f32 %v2153, %v2172
    %v2199 = vmul.f32 %v2156, %v2172
    %v2200 = vmul.f32 %v2159, %v2172
    %v2201 = vmul.f32 %v2162, %v2172
    %v2202 = vmul.f32 %v2165, %v2172
    %v2203 = vmul.f32 %v2168, %v2172
    %v2204 = vmul.f32 %v2171, %v2172
    %v2205 = vsub.f32 %v1884, %v2173
    %v2206 = vsub.f32 %v1886, %v2173
    %v2207 = vsub.f32 %v1890, %v2174
    %v2208 = vsub.f32 %v1892, %v2174
    %v2209 = vsub.f32 %v1896, %v2175
    %v2210 = vsub.f32 %v1898, %v2175
    %v2211 = vsub.f32 %v1902, %v2176
    %v2212 = vsub.f32 %v1904, %v2176
    %v2213 = vsub.f32 %v1908, %v2177
    %v2214 = vsub.f32 %v1910, %v2177
    %v2215 = vsub.f32 %v1914, %v2178
    %v2216 = vsub.f32 %v1916, %v2178
    %v2217 = vsub.f32 %v1920, %v2179
    %v2218 = vsub.f32 %v1922, %v2179
    %v2219 = vsub.f32 %v1926, %v2180
    %v2220 = vsub.f32 %v1928, %v2180
    %v2221 = vsub.f32 %v1932, %v2181
    %v2222 = vsub.f32 %v1934, %v2181
    %v2223 = vsub.f32 %v1938, %v2182
    %v2224 = vsub.f32 %v1940, %v2182
    %v2225 = vsub.f32 %v1944, %v2183
    %v2226 = vsub.f32 %v1946, %v2183
    %v2227 = vsub.f32 %v1950, %v2184
    %v2228 = vsub.f32 %v1952, %v2184
    %v2229 = vsub.f32 %v1956, %v2185
    %v2230 = vsub.f32 %v1958, %v2185
    %v2231 = vsub.f32 %v1962, %v2186
    %v2232 = vsub.f32 %v1964, %v2186
    %v2233 = vsub.f32 %v1968, %v2187
    %v2234 = vsub.f32 %v1970, %v2187
    %v2235 = vsub.f32 %v1974, %v2188
    %v2236 = vsub.f32 %v1976, %v2188
    %v2237 = vsub.f32 %v1980, %v2189
    %v2238 = vsub.f32 %v1982, %v2189
    %v2239 = vsub.f32 %v1986, %v2190
    %v2240 = vsub.f32 %v1988, %v2190
    %v2241 = vsub.f32 %v1992, %v2191
    %v2242 = vsub.f32 %v1994, %v2191
    %v2243 = vsub.f32 %v1998, %v2192
    %v2244 = vsub.f32 %v2000, %v2192
    %v2245 = vsub.f32 %v2004, %v2193
    %v2246 = vsub.f32 %v2006, %v2193
    %v2247 = vsub.f32 %v2010, %v2194
    %v2248 = vsub.f32 %v2012, %v2194
    %v2249 = vsub.f32 %v2016, %v2195
    %v2250 = vsub.f32 %v2018, %v2195
    %v2251 = vsub.f32 %v2022, %v2196
    %v2252 = vsub.f32 %v2024, %v2196
    %v2253 = vsub.f32 %v2028, %v2197
    %v2254 = vsub.f32 %v2030, %v2197
    %v2255 = vsub.f32 %v2034, %v2198
    %v2256 = vsub.f32 %v2036, %v2198
    %v2257 = vsub.f32 %v2040, %v2199
    %v2258 = vsub.f32 %v2042, %v2199
    %v2259 = vsub.f32 %v2046, %v2200
    %v2260 = vsub.f32 %v2048, %v2200
    %v2261 = vsub.f32 %v2052, %v2201
    %v2262 = vsub.f32 %v2054, %v2201
    %v2263 = vsub.f32 %v2058, %v2202
    %v2264 = vsub.f32 %v2060, %v2202
    %v2265 = vsub.f32 %v2064, %v2203
    %v2266 = vsub.f32 %v2066, %v2203
    %v2267 = vsub.f32 %v2070, %v2204
    %v2268 = vsub.f32 %v2072, %v2204
    %v2269 = vmul.f32 %v2205, %v2205
    %v2270 = vmul.f32 %v2206, %v2206
    %v2271 = vmul.f32 %v2207, %v2207
    %v2272 = vmul.f32 %v2208, %v2208
    %v2273 = vmul.f32 %v2209, %v2209
    %v2274 = vmul.f32 %v2210, %v2210
    %v2275 = vmul.f32 %v2211, %v2211
    %v2276 = vmul.f32 %v2212, %v2212
    %v2277 = vmul.f32 %v2213, %v2213
    %v2278 = vmul.f32 %v2214, %v2214
    %v2279 = vmul.f32 %v2215, %v2215
    %v2280 = vmul.f32 %v2216, %v2216
    %v2281 = vmul.f32 %v2217, %v2217
    %v2282 = vmul.f32 %v2218, %v2218
    %v2283 = vmul.f32 %v2219, %v2219
    %v2284 = vmul.f32 %v2220, %v2220
    %v2285 = vmul.f32 %v2221, %v2221
    %v2286 = vmul.f32 %v2222, %v2222
    %v2287 = vmul.f32 %v2223, %v2223
    %v2288 = vmul.f32 %v2224, %v2224
    %v2289 = vmul.f32 %v2225, %v2225
    %v2290 = vmul.f32 %v2226, %v2226
    %v2291 = vmul.f32 %v2227, %v2227
    %v2292 = vmul.f32 %v2228, %v2228
    %v2293 = vmul.f32 %v2229, %v2229
    %v2294 = vmul.f32 %v2230, %v2230
    %v2295 = vmul.f32 %v2231, %v2231
    %v2296 = vmul.f32 %v2232, %v2232
    %v2297 = vmul.f32 %v2233, %v2233
    %v2298 = vmul.f32 %v2234, %v2234
    %v2299 = vmul.f32 %v2235, %v2235
    %v2300 = vmul.f32 %v2236, %v2236
    %v2301 = vmul.f32 %v2237, %v2237
    %v2302 = vmul.f32 %v2238, %v2238
    %v2303 = vmul.f32 %v2239, %v2239
    %v2304 = vmul.f32 %v2240, %v2240
    %v2305 = vmul.f32 %v2241, %v2241
    %v2306 = vmul.f32 %v2242, %v2242
    %v2307 = vmul.f32 %v2243, %v2243
    %v2308 = vmul.f32 %v2244, %v2244
    %v2309 = vmul.f32 %v2245, %v2245
    %v2310 = vmul.f32 %v2246, %v2246
    %v2311 = vmul.f32 %v2247, %v2247
    %v2312 = vmul.f32 %v2248, %v2248
    %v2313 = vmul.f32 %v2249, %v2249
    %v2314 = vmul.f32 %v2250, %v2250
    %v2315 = vmul.f32 %v2251, %v2251
    %v2316 = vmul.f32 %v2252, %v2252
    %v2317 = vmul.f32 %v2253, %v2253
    %v2318 = vmul.f32 %v2254, %v2254
    %v2319 = vmul.f32 %v2255, %v2255
    %v2320 = vmul.f32 %v2256, %v2256
    %v2321 = vmul.f32 %v2257, %v2257
    %v2322 = vmul.f32 %v2258, %v2258
    %v2323 = vmul.f32 %v2259, %v2259
    %v2324 = vmul.f32 %v2260, %v2260
    %v2325 = vmul.f32 %v2261, %v2261
    %v2326 = vmul.f32 %v2262, %v2262
    %v2327 = vmul.f32 %v2263, %v2263
    %v2328 = vmul.f32 %v2264, %v2264
    %v2329 = vmul.f32 %v2265, %v2265
    %v2330 = vmul.f32 %v2266, %v2266
    %v2331 = vmul.f32 %v2267, %v2267
    %v2332 = vmul.f32 %v2268, %v2268
    %v2333 = vadd.f32 %v2269, %v2270
    %2334 = vadd.xlane.f32.xlu0 %v2333
    %v2335 = vpop.xlane.xlu0 %2334
    %v2336 = vadd.f32 %v2271, %v2272
    %2337 = vadd.xlane.f32.xlu0 %v2336
    %v2338 = vpop.xlane.xlu0 %2337
    %v2339 = vadd.f32 %v2273, %v2274
    %2340 = vadd.xlane.f32.xlu0 %v2339
    %v2341 = vpop.xlane.xlu0 %2340
    %v2342 = vadd.f32 %v2275, %v2276
    %2343 = vadd.xlane.f32.xlu0 %v2342
    %v2344 = vpop.xlane.xlu0 %2343
    %v2345 = vadd.f32 %v2277, %v2278
    %2346 = vadd.xlane.f32.xlu0 %v2345
    %v2347 = vpop.xlane.xlu0 %2346
    %v2348 = vadd.f32 %v2279, %v2280
    %2349 = vadd.xlane.f32.xlu0 %v2348
    %v2350 = vpop.xlane.xlu0 %2349
    %v2351 = vadd.f32 %v2281, %v2282
    %2352 = vadd.xlane.f32.xlu0 %v2351
    %v2353 = vpop.xlane.xlu0 %2352
    %v2354 = vadd.f32 %v2283, %v2284
    %2355 = vadd.xlane.f32.xlu0 %v2354
    %v2356 = vpop.xlane.xlu0 %2355
    %v2357 = vadd.f32 %v2285, %v2286
    %2358 = vadd.xlane.f32.xlu0 %v2357
    %v2359 = vpop.xlane.xlu0 %2358
    %v2360 = vadd.f32 %v2287, %v2288
    %2361 = vadd.xlane.f32.xlu0 %v2360
    %v2362 = vpop.xlane.xlu0 %2361
    %v2363 = vadd.f32 %v2289, %v2290
    %2364 = vadd.xlane.f32.xlu0 %v2363
    %v2365 = vpop.xlane.xlu0 %2364
    %v2366 = vadd.f32 %v2291, %v2292
    %2367 = vadd.xlane.f32.xlu0 %v2366
    %v2368 = vpop.xlane.xlu0 %2367
    %v2369 = vadd.f32 %v2293, %v2294
    %2370 = vadd.xlane.f32.xlu0 %v2369
    %v2371 = vpop.xlane.xlu0 %2370
    %v2372 = vadd.f32 %v2295, %v2296
    %2373 = vadd.xlane.f32.xlu0 %v2372
    %v2374 = vpop.xlane.xlu0 %2373
    %v2375 = vadd.f32 %v2297, %v2298
    %2376 = vadd.xlane.f32.xlu0 %v2375
    %v2377 = vpop.xlane.xlu0 %2376
    %v2378 = vadd.f32 %v2299, %v2300
    %2379 = vadd.xlane.f32.xlu0 %v2378
    %v2380 = vpop.xlane.xlu0 %2379
    %v2381 = vadd.f32 %v2301, %v2302
    %2382 = vadd.xlane.f32.xlu0 %v2381
    %v2383 = vpop.xlane.xlu0 %2382
    %v2384 = vadd.f32 %v2303, %v2304
    %2385 = vadd.xlane.f32.xlu0 %v2384
    %v2386 = vpop.xlane.xlu0 %2385
    %v2387 = vadd.f32 %v2305, %v2306
    %2388 = vadd.xlane.f32.xlu0 %v2387
    %v2389 = vpop.xlane.xlu0 %2388
    %v2390 = vadd.f32 %v2307, %v2308
    %2391 = vadd.xlane.f32.xlu0 %v2390
    %v2392 = vpop.xlane.xlu0 %2391
    %v2393 = vadd.f32 %v2309, %v2310
    %2394 = vadd.xlane.f32.xlu0 %v2393
    %v2395 = vpop.xlane.xlu0 %2394
    %v2396 = vadd.f32 %v2311, %v2312
    %2397 = vadd.xlane.f32.xlu0 %v2396
    %v2398 = vpop.xlane.xlu0 %2397
    %v2399 = vadd.f32 %v2313, %v2314
    %2400 = vadd.xlane.f32.xlu0 %v2399
    %v2401 = vpop.xlane.xlu0 %2400
    %v2402 = vadd.f32 %v2315, %v2316
    %2403 = vadd.xlane.f32.xlu0 %v2402
    %v2404 = vpop.xlane.xlu0 %2403
    %v2405 = vadd.f32 %v2317, %v2318
    %2406 = vadd.xlane.f32.xlu0 %v2405
    %v2407 = vpop.xlane.xlu0 %2406
    %v2408 = vadd.f32 %v2319, %v2320
    %2409 = vadd.xlane.f32.xlu0 %v2408
    %v2410 = vpop.xlane.xlu0 %2409
    %v2411 = vadd.f32 %v2321, %v2322
    %2412 = vadd.xlane.f32.xlu0 %v2411
    %v2413 = vpop.xlane.xlu0 %2412
    %v2414 = vadd.f32 %v2323, %v2324
    %2415 = vadd.xlane.f32.xlu0 %v2414
    %v2416 = vpop.xlane.xlu0 %2415
    %v2417 = vadd.f32 %v2325, %v2326
    %2418 = vadd.xlane.f32.xlu0 %v2417
    %v2419 = vpop.xlane.xlu0 %2418
    %v2420 = vadd.f32 %v2327, %v2328
    %2421 = vadd.xlane.f32.xlu0 %v2420
    %v2422 = vpop.xlane.xlu0 %2421
    %v2423 = vadd.f32 %v2329, %v2330
    %2424 = vadd.xlane.f32.xlu0 %v2423
    %v2425 = vpop.xlane.xlu0 %2424
    %v2426 = vadd.f32 %v2331, %v2332
    %2427 = vadd.xlane.f32.xlu0 %v2426
    %v2428 = vpop.xlane.xlu0 %2427
    %v2429 = vmul.f32 %v2335, %v2172
    %v2430 = vmul.f32 %v2338, %v2172
    %v2431 = vmul.f32 %v2341, %v2172
    %v2432 = vmul.f32 %v2344, %v2172
    %v2433 = vmul.f32 %v2347, %v2172
    %v2434 = vmul.f32 %v2350, %v2172
    %v2435 = vmul.f32 %v2353, %v2172
    %v2436 = vmul.f32 %v2356, %v2172
    %v2437 = vmul.f32 %v2359, %v2172
    %v2438 = vmul.f32 %v2362, %v2172
    %v2439 = vmul.f32 %v2365, %v2172
    %v2440 = vmul.f32 %v2368, %v2172
    %v2441 = vmul.f32 %v2371, %v2172
    %v2442 = vmul.f32 %v2374, %v2172
    %v2443 = vmul.f32 %v2377, %v2172
    %v2444 = vmul.f32 %v2380, %v2172
    %v2445 = vmul.f32 %v2383, %v2172
    %v2446 = vmul.f32 %v2386, %v2172
    %v2447 = vmul.f32 %v2389, %v2172
    %v2448 = vmul.f32 %v2392, %v2172
    %v2449 = vmul.f32 %v2395, %v2172
    %v2450 = vmul.f32 %v2398, %v2172
    %v2451 = vmul.f32 %v2401, %v2172
    %v2452 = vmul.f32 %v2404, %v2172
    %v2453 = vmul.f32 %v2407, %v2172
    %v2454 = vmul.f32 %v2410, %v2172
    %v2455 = vmul.f32 %v2413, %v2172
    %v2456 = vmul.f32 %v2416, %v2172
    %v2457 = vmul.f32 %v2419, %v2172
    %v2458 = vmul.f32 %v2422, %v2172
    %v2459 = vmul.f32 %v2425, %v2172
    %v2460 = vmul.f32 %v2428, %v2172
    %v2461 = vadd.f32 %v2429, 1e-05
    %v2462 = vadd.f32 %v2430, 1e-05
    %v2463 = vadd.f32 %v2431, 1e-05
    %v2464 = vadd.f32 %v2432, 1e-05
    %v2465 = vadd.f32 %v2433, 1e-05
    %v2466 = vadd.f32 %v2434, 1e-05
    %v2467 = vadd.f32 %v2435, 1e-05
    %v2468 = vadd.f32 %v2436, 1e-05
    %v2469 = vadd.f32 %v2437, 1e-05
    %v2470 = vadd.f32 %v2438, 1e-05
    %v2471 = vadd.f32 %v2439, 1e-05
    %v2472 = vadd.f32 %v2440, 1e-05
    %v2473 = vadd.f32 %v2441, 1e-05
    %v2474 = vadd.f32 %v2442, 1e-05
    %v2475 = vadd.f32 %v2443, 1e-05
    %v2476 = vadd.f32 %v2444, 1e-05
    %v2477 = vadd.f32 %v2445, 1e-05
    %v2478 = vadd.f32 %v2446, 1e-05
    %v2479 = vadd.f32 %v2447, 1e-05
    %v2480 = vadd.f32 %v2448, 1e-05
    %v2481 = vadd.f32 %v2449, 1e-05
    %v2482 = vadd.f32 %v2450, 1e-05
    %v2483 = vadd.f32 %v2451, 1e-05
    %v2484 = vadd.f32 %v2452, 1e-05
    %v2485 = vadd.f32 %v2453, 1e-05
    %v2486 = vadd.f32 %v2454, 1e-05
    %v2487 = vadd.f32 %v2455, 1e-05
    %v2488 = vadd.f32 %v2456, 1e-05
    %v2489 = vadd.f32 %v2457, 1e-05
    %v2490 = vadd.f32 %v2458, 1e-05
    %v2491 = vadd.f32 %v2459, 1e-05
    %v2492 = vadd.f32 %v2460, 1e-05
    %v2493 = vrsqrt.pop %v2461
    %v2494 = vrsqrt.pop %v2462
    %v2495 = vrsqrt.pop %v2463
    %v2496 = vrsqrt.pop %v2464
    %v2497 = vrsqrt.pop %v2465
    %v2498 = vrsqrt.pop %v2466
    %v2499 = vrsqrt.pop %v2467
    %v2500 = vrsqrt.pop %v2468
    %v2501 = vrsqrt.pop %v2469
    %v2502 = vrsqrt.pop %v2470
    %v2503 = vrsqrt.pop %v2471
    %v2504 = vrsqrt.pop %v2472
    %v2505 = vrsqrt.pop %v2473
    %v2506 = vrsqrt.pop %v2474
    %v2507 = vrsqrt.pop %v2475
    %v2508 = vrsqrt.pop %v2476
    %v2509 = vrsqrt.pop %v2477
    %v2510 = vrsqrt.pop %v2478
    %v2511 = vrsqrt.pop %v2479
    %v2512 = vrsqrt.pop %v2480
    %v2513 = vrsqrt.pop %v2481
    %v2514 = vrsqrt.pop %v2482
    %v2515 = vrsqrt.pop %v2483
    %v2516 = vrsqrt.pop %v2484
    %v2517 = vrsqrt.pop %v2485
    %v2518 = vrsqrt.pop %v2486
    %v2519 = vrsqrt.pop %v2487
    %v2520 = vrsqrt.pop %v2488
    %v2521 = vrsqrt.pop %v2489
    %v2522 = vrsqrt.pop %v2490
    %v2523 = vrsqrt.pop %v2491
    %v2524 = vrsqrt.pop %v2492
    %v2525 = vmul.f32 %v2205, %v2493
    %v2526 = vmul.f32 %v2206, %v2493
    %v2527 = vmul.f32 %v2207, %v2494
    %v2528 = vmul.f32 %v2208, %v2494
    %v2529 = vmul.f32 %v2209, %v2495
    %v2530 = vmul.f32 %v2210, %v2495
    %v2531 = vmul.f32 %v2211, %v2496
    %v2532 = vmul.f32 %v2212, %v2496
    %v2533 = vmul.f32 %v2213, %v2497
    %v2534 = vmul.f32 %v2214, %v2497
    %v2535 = vmul.f32 %v2215, %v2498
    %v2536 = vmul.f32 %v2216, %v2498
    %v2537 = vmul.f32 %v2217, %v2499
    %v2538 = vmul.f32 %v2218, %v2499
    %v2539 = vmul.f32 %v2219, %v2500
    %v2540 = vmul.f32 %v2220, %v2500
    %v2541 = vmul.f32 %v2221, %v2501
    %v2542 = vmul.f32 %v2222, %v2501
    %v2543 = vmul.f32 %v2223, %v2502
    %v2544 = vmul.f32 %v2224, %v2502
    %v2545 = vmul.f32 %v2225, %v2503
    %v2546 = vmul.f32 %v2226, %v2503
    %v2547 = vmul.f32 %v2227, %v2504
    %v2548 = vmul.f32 %v2228, %v2504
    %v2549 = vmul.f32 %v2229, %v2505
    %v2550 = vmul.f32 %v2230, %v2505
    %v2551 = vmul.f32 %v2231, %v2506
    %v2552 = vmul.f32 %v2232, %v2506
    %v2553 = vmul.f32 %v2233, %v2507
    %v2554 = vmul.f32 %v2234, %v2507
    %v2555 = vmul.f32 %v2235, %v2508
    %v2556 = vmul.f32 %v2236, %v2508
    %v2557 = vmul.f32 %v2237, %v2509
    %v2558 = vmul.f32 %v2238, %v2509
    %v2559 = vmul.f32 %v2239, %v2510
    %v2560 = vmul.f32 %v2240, %v2510
    %v2561 = vmul.f32 %v2241, %v2511
    %v2562 = vmul.f32 %v2242, %v2511
    %v2563 = vmul.f32 %v2243, %v2512
    %v2564 = vmul.f32 %v2244, %v2512
    %v2565 = vmul.f32 %v2245, %v2513
    %v2566 = vmul.f32 %v2246, %v2513
    %v2567 = vmul.f32 %v2247, %v2514
    %v2568 = vmul.f32 %v2248, %v2514
    %v2569 = vmul.f32 %v2249, %v2515
    %v2570 = vmul.f32 %v2250, %v2515
    %v2571 = vmul.f32 %v2251, %v2516
    %v2572 = vmul.f32 %v2252, %v2516
    %v2573 = vmul.f32 %v2253, %v2517
    %v2574 = vmul.f32 %v2254, %v2517
    %v2575 = vmul.f32 %v2255, %v2518
    %v2576 = vmul.f32 %v2256, %v2518
    %v2577 = vmul.f32 %v2257, %v2519
    %v2578 = vmul.f32 %v2258, %v2519
    %v2579 = vmul.f32 %v2259, %v2520
    %v2580 = vmul.f32 %v2260, %v2520
    %v2581 = vmul.f32 %v2261, %v2521
    %v2582 = vmul.f32 %v2262, %v2521
    %v2583 = vmul.f32 %v2263, %v2522
    %v2584 = vmul.f32 %v2264, %v2522
    %v2585 = vmul.f32 %v2265, %v2523
    %v2586 = vmul.f32 %v2266, %v2523
    %v2587 = vmul.f32 %v2267, %v2524
    %v2588 = vmul.f32 %v2268, %v2524
    %v2590 = vlaneseq
    %v2591 = vshrl.u32 %v2590, 7
    %v2592 = vsub.s32 0, %v2591
    %v2593 = vrot.slane %v2074, %v2592
    %v2594 = vlaneseq
    %v2595 = vshrl.u32 %v2594, 7
    %v2596 = vsub.s32 1, %v2595
    %v2597 = vrot.slane %v2074, %v2596
    %v2600 = vmul.f32 %v2525, %v2593
    %v2601 = vmul.f32 %v2526, %v2597
    %v2602 = vmul.f32 %v2527, %v2593
    %v2603 = vmul.f32 %v2528, %v2597
    %v2604 = vmul.f32 %v2529, %v2593
    %v2605 = vmul.f32 %v2530, %v2597
    %v2606 = vmul.f32 %v2531, %v2593
    %v2607 = vmul.f32 %v2532, %v2597
    %v2608 = vmul.f32 %v2533, %v2593
    %v2609 = vmul.f32 %v2534, %v2597
    %v2610 = vmul.f32 %v2535, %v2593
    %v2611 = vmul.f32 %v2536, %v2597
    %v2612 = vmul.f32 %v2537, %v2593
    %v2613 = vmul.f32 %v2538, %v2597
    %v2614 = vmul.f32 %v2539, %v2593
    %v2615 = vmul.f32 %v2540, %v2597
    %v2616 = vmul.f32 %v2541, %v2593
    %v2617 = vmul.f32 %v2542, %v2597
    %v2618 = vmul.f32 %v2543, %v2593
    %v2619 = vmul.f32 %v2544, %v2597
    %v2620 = vmul.f32 %v2545, %v2593
    %v2621 = vmul.f32 %v2546, %v2597
    %v2622 = vmul.f32 %v2547, %v2593
    %v2623 = vmul.f32 %v2548, %v2597
    %v2624 = vmul.f32 %v2549, %v2593
    %v2625 = vmul.f32 %v2550, %v2597
    %v2626 = vmul.f32 %v2551, %v2593
    %v2627 = vmul.f32 %v2552, %v2597
    %v2628 = vmul.f32 %v2553, %v2593
    %v2629 = vmul.f32 %v2554, %v2597
    %v2630 = vmul.f32 %v2555, %v2593
    %v2631 = vmul.f32 %v2556, %v2597
    %v2632 = vmul.f32 %v2557, %v2593
    %v2633 = vmul.f32 %v2558, %v2597
    %v2634 = vmul.f32 %v2559, %v2593
    %v2635 = vmul.f32 %v2560, %v2597
    %v2636 = vmul.f32 %v2561, %v2593
    %v2637 = vmul.f32 %v2562, %v2597
    %v2638 = vmul.f32 %v2563, %v2593
    %v2639 = vmul.f32 %v2564, %v2597
    %v2640 = vmul.f32 %v2565, %v2593
    %v2641 = vmul.f32 %v2566, %v2597
    %v2642 = vmul.f32 %v2567, %v2593
    %v2643 = vmul.f32 %v2568, %v2597
    %v2644 = vmul.f32 %v2569, %v2593
    %v2645 = vmul.f32 %v2570, %v2597
    %v2646 = vmul.f32 %v2571, %v2593
    %v2647 = vmul.f32 %v2572, %v2597
    %v2648 = vmul.f32 %v2573, %v2593
    %v2649 = vmul.f32 %v2574, %v2597
    %v2650 = vmul.f32 %v2575, %v2593
    %v2651 = vmul.f32 %v2576, %v2597
    %v2652 = vmul.f32 %v2577, %v2593
    %v2653 = vmul.f32 %v2578, %v2597
    %v2654 = vmul.f32 %v2579, %v2593
    %v2655 = vmul.f32 %v2580, %v2597
    %v2656 = vmul.f32 %v2581, %v2593
    %v2657 = vmul.f32 %v2582, %v2597
    %v2658 = vmul.f32 %v2583, %v2593
    %v2659 = vmul.f32 %v2584, %v2597
    %v2660 = vmul.f32 %v2585, %v2593
    %v2661 = vmul.f32 %v2586, %v2597
    %v2662 = vmul.f32 %v2587, %v2593
    %v2663 = vmul.f32 %v2588, %v2597
    %v2665 = vlaneseq
    %v2666 = vshrl.u32 %v2665, 7
    %v2667 = vsub.s32 0, %v2666
    %v2668 = vrot.slane %v2075, %v2667
    %v2669 = vlaneseq
    %v2670 = vshrl.u32 %v2669, 7
    %v2671 = vsub.s32 1, %v2670
    %v2672 = vrot.slane %v2075, %v2671
    %v2675 = vadd.f32 %v2600, %v2668
    %v2676 = vadd.f32 %v2601, %v2672
    %v2677 = vadd.f32 %v2602, %v2668
    %v2678 = vadd.f32 %v2603, %v2672
    %v2679 = vadd.f32 %v2604, %v2668
    %v2680 = vadd.f32 %v2605, %v2672
    %v2681 = vadd.f32 %v2606, %v2668
    %v2682 = vadd.f32 %v2607, %v2672
    %v2683 = vadd.f32 %v2608, %v2668
    %v2684 = vadd.f32 %v2609, %v2672
    %v2685 = vadd.f32 %v2610, %v2668
    %v2686 = vadd.f32 %v2611, %v2672
    %v2687 = vadd.f32 %v2612, %v2668
    %v2688 = vadd.f32 %v2613, %v2672
    %v2689 = vadd.f32 %v2614, %v2668
    %v2690 = vadd.f32 %v2615, %v2672
    %v2691 = vadd.f32 %v2616, %v2668
    %v2692 = vadd.f32 %v2617, %v2672
    %v2693 = vadd.f32 %v2618, %v2668
    %v2694 = vadd.f32 %v2619, %v2672
    %v2695 = vadd.f32 %v2620, %v2668
    %v2696 = vadd.f32 %v2621, %v2672
    %v2697 = vadd.f32 %v2622, %v2668
    %v2698 = vadd.f32 %v2623, %v2672
    %v2699 = vadd.f32 %v2624, %v2668
    %v2700 = vadd.f32 %v2625, %v2672
    %v2701 = vadd.f32 %v2626, %v2668
    %v2702 = vadd.f32 %v2627, %v2672
    %v2703 = vadd.f32 %v2628, %v2668
    %v2704 = vadd.f32 %v2629, %v2672
    %v2705 = vadd.f32 %v2630, %v2668
    %v2706 = vadd.f32 %v2631, %v2672
    %v2707 = vadd.f32 %v2632, %v2668
    %v2708 = vadd.f32 %v2633, %v2672
    %v2709 = vadd.f32 %v2634, %v2668
    %v2710 = vadd.f32 %v2635, %v2672
    %v2711 = vadd.f32 %v2636, %v2668
    %v2712 = vadd.f32 %v2637, %v2672
    %v2713 = vadd.f32 %v2638, %v2668
    %v2714 = vadd.f32 %v2639, %v2672
    %v2715 = vadd.f32 %v2640, %v2668
    %v2716 = vadd.f32 %v2641, %v2672
    %v2717 = vadd.f32 %v2642, %v2668
    %v2718 = vadd.f32 %v2643, %v2672
    %v2719 = vadd.f32 %v2644, %v2668
    %v2720 = vadd.f32 %v2645, %v2672
    %v2721 = vadd.f32 %v2646, %v2668
    %v2722 = vadd.f32 %v2647, %v2672
    %v2723 = vadd.f32 %v2648, %v2668
    %v2724 = vadd.f32 %v2649, %v2672
    %v2725 = vadd.f32 %v2650, %v2668
    %v2726 = vadd.f32 %v2651, %v2672
    %v2727 = vadd.f32 %v2652, %v2668
    %v2728 = vadd.f32 %v2653, %v2672
    %v2729 = vadd.f32 %v2654, %v2668
    %v2730 = vadd.f32 %v2655, %v2672
    %v2731 = vadd.f32 %v2656, %v2668
    %v2732 = vadd.f32 %v2657, %v2672
    %v2733 = vadd.f32 %v2658, %v2668
    %v2734 = vadd.f32 %v2659, %v2672
    %v2735 = vadd.f32 %v2660, %v2668
    %v2736 = vadd.f32 %v2661, %v2672
    %v2737 = vadd.f32 %v2662, %v2668
    %v2738 = vadd.f32 %v2663, %v2672
    %v2739 = vmax.f32 %v2675, 0.0
    %v2740 = vmax.f32 %v2676, 0.0
    %v2741 = vmax.f32 %v2677, 0.0
    %v2742 = vmax.f32 %v2678, 0.0
    %v2743 = vmax.f32 %v2679, 0.0
    %v2744 = vmax.f32 %v2680, 0.0
    %v2745 = vmax.f32 %v2681, 0.0
    %v2746 = vmax.f32 %v2682, 0.0
    %v2747 = vmax.f32 %v2683, 0.0
    %v2748 = vmax.f32 %v2684, 0.0
    %v2749 = vmax.f32 %v2685, 0.0
    %v2750 = vmax.f32 %v2686, 0.0
    %v2751 = vmax.f32 %v2687, 0.0
    %v2752 = vmax.f32 %v2688, 0.0
    %v2753 = vmax.f32 %v2689, 0.0
    %v2754 = vmax.f32 %v2690, 0.0
    %v2755 = vmax.f32 %v2691, 0.0
    %v2756 = vmax.f32 %v2692, 0.0
    %v2757 = vmax.f32 %v2693, 0.0
    %v2758 = vmax.f32 %v2694, 0.0
    %v2759 = vmax.f32 %v2695, 0.0
    %v2760 = vmax.f32 %v2696, 0.0
    %v2761 = vmax.f32 %v2697, 0.0
    %v2762 = vmax.f32 %v2698, 0.0
    %v2763 = vmax.f32 %v2699, 0.0
    %v2764 = vmax.f32 %v2700, 0.0
    %v2765 = vmax.f32 %v2701, 0.0
    %v2766 = vmax.f32 %v2702, 0.0
    %v2767 = vmax.f32 %v2703, 0.0
    %v2768 = vmax.f32 %v2704, 0.0
    %v2769 = vmax.f32 %v2705, 0.0
    %v2770 = vmax.f32 %v2706, 0.0
    %v2771 = vmax.f32 %v2707, 0.0
    %v2772 = vmax.f32 %v2708, 0.0
    %v2773 = vmax.f32 %v2709, 0.0
    %v2774 = vmax.f32 %v2710, 0.0
    %v2775 = vmax.f32 %v2711, 0.0
    %v2776 = vmax.f32 %v2712, 0.0
    %v2777 = vmax.f32 %v2713, 0.0
    %v2778 = vmax.f32 %v2714, 0.0
    %v2779 = vmax.f32 %v2715, 0.0
    %v2780 = vmax.f32 %v2716, 0.0
    %v2781 = vmax.f32 %v2717, 0.0
    %v2782 = vmax.f32 %v2718, 0.0
    %v2783 = vmax.f32 %v2719, 0.0
    %v2784 = vmax.f32 %v2720, 0.0
    %v2785 = vmax.f32 %v2721, 0.0
    %v2786 = vmax.f32 %v2722, 0.0
    %v2787 = vmax.f32 %v2723, 0.0
    %v2788 = vmax.f32 %v2724, 0.0
    %v2789 = vmax.f32 %v2725, 0.0
    %v2790 = vmax.f32 %v2726, 0.0
    %v2791 = vmax.f32 %v2727, 0.0
    %v2792 = vmax.f32 %v2728, 0.0
    %v2793 = vmax.f32 %v2729, 0.0
    %v2794 = vmax.f32 %v2730, 0.0
    %v2795 = vmax.f32 %v2731, 0.0
    %v2796 = vmax.f32 %v2732, 0.0
    %v2797 = vmax.f32 %v2733, 0.0
    %v2798 = vmax.f32 %v2734, 0.0
    %v2799 = vmax.f32 %v2735, 0.0
    %v2800 = vmax.f32 %v2736, 0.0
    %v2801 = vmax.f32 %v2737, 0.0
    %v2802 = vmax.f32 %v2738, 0.0
    %v2803 = vmax.f32 %v2739, %v2741
    %v2804 = vmax.f32 %v2803, %v2743
    %v2805 = vmax.f32 %v2804, %v2745
    %v2806 = vmax.f32 %v2805, %v2747
    %v2807 = vmax.f32 %v2806, %v2749
    %v2808 = vmax.f32 %v2807, %v2751
    %v2809 = vmax.f32 %v2808, %v2753
    %v2810 = vmax.f32 %v2809, %v2755
    %v2811 = vmax.f32 %v2810, %v2757
    %v2812 = vmax.f32 %v2811, %v2759
    %v2813 = vmax.f32 %v2812, %v2761
    %v2814 = vmax.f32 %v2813, %v2763
    %v2815 = vmax.f32 %v2814, %v2765
    %v2816 = vmax.f32 %v2815, %v2767
    %v2817 = vmax.f32 %v2816, %v2769
    %v2818 = vrot.slane %v2817, 4
    %v2819 = vmax.f32 %v2817, %v2818
    %v2820 = vrot.slane %v2819, 2
    %v2821 = vmax.f32 %v2819, %v2820
    %v2822 = vrot.slane %v2821, 1
    %v2823 = vmax.f32 %v2821, %v2822
    %v2824 = vmax.f32 %v2740, %v2742
    %v2825 = vmax.f32 %v2824, %v2744
    %v2826 = vmax.f32 %v2825, %v2746
    %v2827 = vmax.f32 %v2826, %v2748
    %v2828 = vmax.f32 %v2827, %v2750
    %v2829 = vmax.f32 %v2828, %v2752
    %v2830 = vmax.f32 %v2829, %v2754
    %v2831 = vmax.f32 %v2830, %v2756
    %v2832 = vmax.f32 %v2831, %v2758
    %v2833 = vmax.f32 %v2832, %v2760
    %v2834 = vmax.f32 %v2833, %v2762
    %v2835 = vmax.f32 %v2834, %v2764
    %v2836 = vmax.f32 %v2835, %v2766
    %v2837 = vmax.f32 %v2836, %v2768
    %v2838 = vmax.f32 %v2837, %v2770
    %v2839 = vrot.slane %v2838, 4
    %v2840 = vmax.f32 %v2838, %v2839
    %v2841 = vrot.slane %v2840, 2
    %v2842 = vmax.f32 %v2840, %v2841
    %v2843 = vrot.slane %v2842, 1
    %v2844 = vmax.f32 %v2842, %v2843
    %v2845 = vmax.f32 %v2771, %v2773
    %v2846 = vmax.f32 %v2845, %v2775
    %v2847 = vmax.f32 %v2846, %v2777
    %v2848 = vmax.f32 %v2847, %v2779
    %v2849 = vmax.f32 %v2848, %v2781
    %v2850 = vmax.f32 %v2849, %v2783
    %v2851 = vmax.f32 %v2850, %v2785
    %v2852 = vmax.f32 %v2851, %v2787
    %v2853 = vmax.f32 %v2852, %v2789
    %v2854 = vmax.f32 %v2853, %v2791
    %v2855 = vmax.f32 %v2854, %v2793
    %v2856 = vmax.f32 %v2855, %v2795
    %v2857 = vmax.f32 %v2856, %v2797
    %v2858 = vmax.f32 %v2857, %v2799
    %v2859 = vmax.f32 %v2858, %v2801
    %v2860 = vrot.slane %v2859, 4
    %v2861 = vmax.f32 %v2859, %v2860
    %v2862 = vrot.slane %v2861, 2
    %v2863 = vmax.f32 %v2861, %v2862
    %v2864 = vrot.slane %v2863, 1
    %v2865 = vmax.f32 %v2863, %v2864
    %v2866 = vmax.f32 %v2772, %v2774
    %v2867 = vmax.f32 %v2866, %v2776
    %v2868 = vmax.f32 %v2867, %v2778
    %v2869 = vmax.f32 %v2868, %v2780
    %v2870 = vmax.f32 %v2869, %v2782
    %v2871 = vmax.f32 %v2870, %v2784
    %v2872 = vmax.f32 %v2871, %v2786
    %v2873 = vmax.f32 %v2872, %v2788
    %v2874 = vmax.f32 %v2873, %v2790
    %v2875 = vmax.f32 %v2874, %v2792
    %v2876 = vmax.f32 %v2875, %v2794
    %v2877 = vmax.f32 %v2876, %v2796
    %v2878 = vmax.f32 %v2877, %v2798
    %v2879 = vmax.f32 %v2878, %v2800
    %v2880 = vmax.f32 %v2879, %v2802
    %v2881 = vrot.slane %v2880, 4
    %v2882 = vmax.f32 %v2880, %v2881
    %v2883 = vrot.slane %v2882, 2
    %v2884 = vmax.f32 %v2882, %v2883
    %v2885 = vrot.slane %v2884, 1
    %v2886 = vmax.f32 %v2884, %v2885
    %v2887 = vld [vmem:[%s15] sm:$0xff]
    %v2888 = vld [vmem:[%s15 + $0x8] sm:$0xff]
    %v2889 = vld [vmem:[%s15 + $0x10] sm:$0xff]
    %v2890 = vld [vmem:[%s15 + $0x18] sm:$0xff]
    %v2891 = vld [vmem:[%s15 + $0x20] sm:$0xff]
    %v2892 = vld [vmem:[%s15 + $0x28] sm:$0xff]
    %v2893 = vld [vmem:[%s15 + $0x30] sm:$0xff]
    %v2894 = vld [vmem:[%s15 + $0x38] sm:$0xff]
    %v2895 = vld [vmem:[%s15 + $0x40] sm:$0xff]
    %v2896 = vld [vmem:[%s15 + $0x48] sm:$0xff]
    %v2897 = vld [vmem:[%s15 + $0x50] sm:$0xff]
    %v2898 = vld [vmem:[%s15 + $0x58] sm:$0xff]
    %v2899 = vld [vmem:[%s15 + $0x60] sm:$0xff]
    %v2900 = vld [vmem:[%s15 + $0x68] sm:$0xff]
    %v2901 = vld [vmem:[%s15 + $0x70] sm:$0xff]
    %v2902 = vld [vmem:[%s15 + $0x78] sm:$0xff]
    %v2903 = vld [vmem:[%s15 + $0x80] sm:$0xff]
    %v2904 = vld [vmem:[%s15 + $0x88] sm:$0xff]
    %v2905 = vld [vmem:[%s15 + $0x90] sm:$0xff]
    %v2906 = vld [vmem:[%s15 + $0x98] sm:$0xff]
    %v2907 = vld [vmem:[%s15 + $0xa0] sm:$0xff]
    %v2908 = vld [vmem:[%s15 + $0xa8] sm:$0xff]
    %v2909 = vld [vmem:[%s15 + $0xb0] sm:$0xff]
    %v2910 = vld [vmem:[%s15 + $0xb8] sm:$0xff]
    %v2911 = vld [vmem:[%s15 + $0xc0] sm:$0xff]
    %v2912 = vld [vmem:[%s15 + $0xc8] sm:$0xff]
    %v2913 = vld [vmem:[%s15 + $0xd0] sm:$0xff]
    %v2914 = vld [vmem:[%s15 + $0xd8] sm:$0xff]
    %v2915 = vld [vmem:[%s15 + $0xe0] sm:$0xff]
    %v2916 = vld [vmem:[%s15 + $0xe8] sm:$0xff]
    %v2917 = vld [vmem:[%s15 + $0xf0] sm:$0xff]
    %v2918 = vld [vmem:[%s15 + $0xf8] sm:$0xff]
    %v2919 = vld [vmem:[%s16] sm:$0x1]
    %v2921 = vlaneseq
    %v2922 = vshrl.u32 %v2921, 7
    %v2923 = vsub.s32 0, %v2922
    %v2924 = vrot.slane %v2919, %v2923
    %vm2930 = vcmask 1041409
    %v2931 = vsel %vm2930, %v2865, %v2823
    %v2932 = vsel %vm2930, %v2886, %v2844
    %2935 = vmatprep.subr.mxu0 0.0
    %2936 = vmatpush1.msra.mxu0 %v2887
    %2937 = vmatprep.subr.mxu0 0.0
    %2938 = vmatpush1.msra.mxu0 %v2888
    %2939 = vmatprep.subr.mxu0 0.0
    %2940 = vmatpush1.msra.mxu0 %v2889
    %2941 = vmatprep.subr.mxu0 0.0
    %2942 = vmatpush1.msra.mxu0 %v2890
    %2943 = vmatprep.subr.mxu0 0.0
    %2944 = vmatpush1.msra.mxu0 %v2891
    %2945 = vmatprep.subr.mxu0 0.0
    %2946 = vmatpush1.msra.mxu0 %v2892
    %2947 = vmatprep.subr.mxu0 0.0
    %2948 = vmatpush1.msra.mxu0 %v2893
    %2949 = vmatprep.subr.mxu0 0.0
    %2950 = vmatpush1.msra.mxu0 %v2894
    %2951 = vmatprep.subr.mxu0 0.0
    %2952 = vmatpush1.msra.mxu0 %v2895
    %2953 = vmatprep.subr.mxu0 0.0
    %2954 = vmatpush1.msra.mxu0 %v2896
    %2955 = vmatprep.subr.mxu0 0.0
    %2956 = vmatpush1.msra.mxu0 %v2897
    %2957 = vmatprep.subr.mxu0 0.0
    %2958 = vmatpush1.msra.mxu0 %v2898
    %2959 = vmatprep.subr.mxu0 0.0
    %2960 = vmatpush1.msra.mxu0 %v2899
    %2961 = vmatprep.subr.mxu0 0.0
    %2962 = vmatpush1.msra.mxu0 %v2900
    %2963 = vmatprep.subr.mxu0 0.0
    %2964 = vmatpush1.msra.mxu0 %v2901
    %2965 = vmatprep.subr.mxu0 0.0
    %2966 = vmatpush1.msra.mxu0 %v2902
    %2967 = vmatprep.subr.mxu0 0.0
    %2968 = vmatpush1.msra.mxu0 %v2903
    %2969 = vmatprep.subr.mxu0 0.0
    %2970 = vmatpush1.msra.mxu0 %v2904
    %2971 = vmatprep.subr.mxu0 0.0
    %2972 = vmatpush1.msra.mxu0 %v2905
    %2973 = vmatprep.subr.mxu0 0.0
    %2974 = vmatpush1.msra.mxu0 %v2906
    %2975 = vmatprep.subr.mxu0 0.0
    %2976 = vmatpush1.msra.mxu0 %v2907
    %2977 = vmatprep.subr.mxu0 0.0
    %2978 = vmatpush1.msra.mxu0 %v2908
    %2979 = vmatprep.subr.mxu0 0.0
    %2980 = vmatpush1.msra.mxu0 %v2909
    %2981 = vmatprep.subr.mxu0 0.0
    %2982 = vmatpush1.msra.mxu0 %v2910
    %2983 = vmatprep.subr.mxu0 0.0
    %2984 = vmatpush1.msra.mxu0 %v2911
    %2985 = vmatprep.subr.mxu0 0.0
    %2986 = vmatpush1.msra.mxu0 %v2912
    %2987 = vmatprep.subr.mxu0 0.0
    %2988 = vmatpush1.msra.mxu0 %v2913
    %2989 = vmatprep.subr.mxu0 0.0
    %2990 = vmatpush1.msra.mxu0 %v2914
    %2991 = vmatprep.subr.mxu0 0.0
    %2992 = vmatpush1.msra.mxu0 %v2915
    %2993 = vmatprep.subr.mxu0 0.0
    %2994 = vmatpush1.msra.mxu0 %v2916
    %2995 = vmatprep.subr.mxu0 0.0
    %2996 = vmatpush1.msra.mxu0 %v2917
    %2997 = vmatprep.subr.mxu0 0.0
    %2998 = vmatpush1.msra.mxu0 %v2918
    %2999 = vmatprep.mubr.f32.mxu0 %v2932
    %3000 = vmatmul.mubr.f32.gmra.mrb[0].mxu0 %v2931
    %v3001 = vpop.f32.mrb[0].mxu0
    %v3002 = vadd.f32 %v2924, %v3001
    %v3003 = vpop.f32.mrb[0].mxu0
    %3004 = vdwg.mxu0
    %v3005 = vld [vmem:[%s17] sm:$0x1]
    %v3006 = vld [vmem:[%s18] sm:$0x1]
    %vm3007 = vcmask 517120
    %v3008 = vsel %vm3007, %v3002, 0.0
    %3009 = vadd.xlane.f32.xlu0 %v3008
    %v3010 = vpop.xlane.xlu0 %3009
    %v3011 = vmul.f32 %v3010, %v545
    %v3012 = vsub.f32 %v3002, %v3011
    %v3013 = vmul.f32 %v3012, %v3012
    %v3014 = vsel %vm3007, %v3013, 0.0
    %3015 = vadd.xlane.f32.xlu0 %v3014
    %v3016 = vpop.xlane.xlu0 %3015
    %v3017 = vmul.f32 %v3016, %v545
    %v3018 = vadd.f32 %v3017, 1e-05
    %v3019 = vrsqrt.pop %v3018
    %v3020 = vmul.f32 %v3012, %v3019
    %v3022 = vlaneseq
    %v3023 = vshrl.u32 %v3022, 7
    %v3024 = vsub.s32 0, %v3023
    %v3025 = vrot.slane %v3005, %v3024
    %v3027 = vmul.f32 %v3020, %v3025
    %v3029 = vlaneseq
    %v3030 = vshrl.u32 %v3029, 7
    %v3031 = vsub.s32 0, %v3030
    %v3032 = vrot.slane %v3006, %v3031
    %v3034 = vadd.f32 %v3027, %v3032
    %v3035 = vld [vmem:[%s19] sm:$0xff]
    %v3036 = vld [vmem:[%s19 + $0x8] sm:$0xff]
    %v3037 = vld [vmem:[%s19 + $0x10] sm:$0xff]
    %v3038 = vld [vmem:[%s19 + $0x18] sm:$0xff]
    %v3039 = vld [vmem:[%s19 + $0x20] sm:$0xff]
    %v3040 = vld [vmem:[%s19 + $0x28] sm:$0xff]
    %v3041 = vld [vmem:[%s19 + $0x30] sm:$0xff]
    %v3042 = vld [vmem:[%s19 + $0x38] sm:$0xff]
    %v3043 = vld [vmem:[%s19 + $0x40] sm:$0xff]
    %v3044 = vld [vmem:[%s19 + $0x48] sm:$0xff]
    %v3045 = vld [vmem:[%s19 + $0x50] sm:$0xff]
    %v3046 = vld [vmem:[%s19 + $0x58] sm:$0xff]
    %v3047 = vld [vmem:[%s1] sm:$0x3]
    %v3049 = vsel %vm448, %v3034, 0
    %3051 = vmatprep.subr.mxu0 0.0
    %3052 = vmatpush1.msra.mxu0 %v3039
    %3053 = vmatprep.subr.mxu0 0.0
    %3054 = vmatpush1.msra.mxu0 %v3040
    %3055 = vmatprep.subr.mxu0 0.0
    %3056 = vmatpush1.msra.mxu0 %v3041
    %3057 = vmatprep.subr.mxu0 0.0
    %3058 = vmatpush1.msra.mxu0 %v3042
    %3059 = vmatprep.subr.mxu0 0.0
    %3060 = vmatpush1.msra.mxu0 %v3043
    %3061 = vmatprep.subr.mxu0 0.0
    %3062 = vmatpush1.msra.mxu0 %v3044
    %3063 = vmatprep.subr.mxu0 0.0
    %3064 = vmatpush1.msra.mxu0 %v3045
    %3065 = vmatprep.subr.mxu0 0.0
    %3066 = vmatpush1.msra.mxu0 %v3046
    %3067 = vmatprep.subr.mxu0 0.0
    %3068 = vmatpush1.msra.mxu0 0.0
    %3069 = vmatprep.subr.mxu0 0.0
    %3070 = vmatpush1.msra.mxu0 0.0
    %3071 = vmatprep.subr.mxu0 0.0
    %3072 = vmatpush1.msra.mxu0 0.0
    %3073 = vmatprep.subr.mxu0 0.0
    %3074 = vmatpush1.msra.mxu0 0.0
    %3075 = vmatprep.subr.mxu0 0.0
    %3076 = vmatpush1.msra.mxu0 0.0
    %3077 = vmatprep.subr.mxu0 0.0
    %3078 = vmatpush1.msra.mxu0 0.0
    %3079 = vmatprep.subr.mxu0 0.0
    %3080 = vmatpush1.msra.mxu0 0.0
    %3081 = vmatprep.subr.mxu0 0.0
    %3082 = vmatpush1.msra.mxu0 0.0
    %3083 = vmatprep.subr.mxu0 0.0
    %3084 = vmatpush1.msra.mxu0 0.0
    %3085 = vmatprep.subr.mxu0 0.0
    %3086 = vmatpush1.msra.mxu0 0.0
    %3087 = vmatprep.subr.mxu0 0.0
    %3088 = vmatpush1.msra.mxu0 0.0
    %3089 = vmatprep.subr.mxu0 0.0
    %3090 = vmatpush1.msra.mxu0 0.0
    %3091 = vmatprep.subr.mxu0 0.0
    %3092 = vmatpush1.msra.mxu0 0.0
    %3093 = vmatprep.subr.mxu0 0.0
    %3094 = vmatpush1.msra.mxu0 0.0
    %3095 = vmatprep.subr.mxu0 0.0
    %3096 = vmatpush1.msra.mxu0 0.0
    %3097 = vmatprep.subr.mxu0 0.0
    %3098 = vmatpush1.msra.mxu0 0.0
    %3099 = vmatprep.subr.mxu0 0.0
    %3100 = vmatpush1.msra.mxu0 0.0
    %3101 = vmatprep.subr.mxu0 0.0
    %3102 = vmatpush1.msra.mxu0 0.0
    %3103 = vmatprep.subr.mxu0 0.0
    %3104 = vmatpush1.msra.mxu0 0.0
    %3105 = vmatprep.subr.mxu0 0.0
    %3106 = vmatpush1.msra.mxu0 0.0
    %3107 = vmatprep.subr.mxu0 0.0
    %3108 = vmatpush1.msra.mxu0 0.0
    %3109 = vmatprep.subr.mxu0 0.0
    %3110 = vmatpush1.msra.mxu0 0.0
    %3111 = vmatprep.subr.mxu0 0.0
    %3112 = vmatpush1.msra.mxu0 0.0
    %3113 = vmatprep.subr.mxu0 0.0
    %3114 = vmatpush1.msra.mxu0 0.0
    %3115 = vmatprep.mubr.f32.mxu0 0.0
    %3116 = vmatmul.mubr.f32.gmra.mrb[0].mxu0 %v3049
    %v3117 = vpop.f32.mrb[0].mxu0
    %v3118 = vadd.f32 0.0, %v3117
    %v3119 = vpop.f32.mrb[0].mxu0
    %3120 = vdwg.mxu0
    %vm3121 = vcmask 261120
    %v3123 = vsel %vm3121, %v3047, 0
    %3125 = vmatprep.subr.mxu0 0.0
    %3126 = vmatpush1.msra.mxu0 %v3035
    %3127 = vmatprep.subr.mxu0 0.0
    %3128 = vmatpush1.msra.mxu0 %v3036
    %3129 = vmatprep.subr.mxu0 0.0
    %3130 = vmatpush1.msra.mxu0 %v3037
    %3131 = vmatprep.subr.mxu0 0.0
    %3132 = vmatpush1.msra.mxu0 %v3038
    %3133 = vmatprep.subr.mxu0 0.0
    %3134 = vmatpush1.msra.mxu0 0.0
    %3135 = vmatprep.subr.mxu0 0.0
    %3136 = vmatpush1.msra.mxu0 0.0
    %3137 = vmatprep.subr.mxu0 0.0
    %3138 = vmatpush1.msra.mxu0 0.0
    %3139 = vmatprep.subr.mxu0 0.0
    %3140 = vmatpush1.msra.mxu0 0.0
    %3141 = vmatprep.subr.mxu0 0.0
    %3142 = vmatpush1.msra.mxu0 0.0
    %3143 = vmatprep.subr.mxu0 0.0
    %3144 = vmatpush1.msra.mxu0 0.0
    %3145 = vmatprep.subr.mxu0 0.0
    %3146 = vmatpush1.msra.mxu0 0.0
    %3147 = vmatprep.subr.mxu0 0.0
    %3148 = vmatpush1.msra.mxu0 0.0
    %3149 = vmatprep.subr.mxu0 0.0
    %3150 = vmatpush1.msra.mxu0 0.0
    %3151 = vmatprep.subr.mxu0 0.0
    %3152 = vmatpush1.msra.mxu0 0.0
    %3153 = vmatprep.subr.mxu0 0.0
    %3154 = vmatpush1.msra.mxu0 0.0
    %3155 = vmatprep.subr.mxu0 0.0
    %3156 = vmatpush1.msra.mxu0 0.0
    %3157 = vmatprep.subr.mxu0 0.0
    %3158 = vmatpush1.msra.mxu0 0.0
    %3159 = vmatprep.subr.mxu0 0.0
    %3160 = vmatpush1.msra.mxu0 0.0
    %3161 = vmatprep.subr.mxu0 0.0
    %3162 = vmatpush1.msra.mxu0 0.0
    %3163 = vmatprep.subr.mxu0 0.0
    %3164 = vmatpush1.msra.mxu0 0.0
    %3165 = vmatprep.subr.mxu0 0.0
    %3166 = vmatpush1.msra.mxu0 0.0
    %3167 = vmatprep.subr.mxu0 0.0
    %3168 = vmatpush1.msra.mxu0 0.0
    %3169 = vmatprep.subr.mxu0 0.0
    %3170 = vmatpush1.msra.mxu0 0.0
    %3171 = vmatprep.subr.mxu0 0.0
    %3172 = vmatpush1.msra.mxu0 0.0
    %3173 = vmatprep.subr.mxu0 0.0
    %3174 = vmatpush1.msra.mxu0 0.0
    %3175 = vmatprep.subr.mxu0 0.0
    %3176 = vmatpush1.msra.mxu0 0.0
    %3177 = vmatprep.subr.mxu0 0.0
    %3178 = vmatpush1.msra.mxu0 0.0
    %3179 = vmatprep.subr.mxu0 0.0
    %3180 = vmatpush1.msra.mxu0 0.0
    %3181 = vmatprep.subr.mxu0 0.0
    %3182 = vmatpush1.msra.mxu0 0.0
    %3183 = vmatprep.subr.mxu0 0.0
    %3184 = vmatpush1.msra.mxu0 0.0
    %3185 = vmatprep.subr.mxu0 0.0
    %3186 = vmatpush1.msra.mxu0 0.0
    %3187 = vmatprep.subr.mxu0 0.0
    %3188 = vmatpush1.msra.mxu0 0.0
    %3189 = vmatprep.mubr.f32.mxu0 0.0
    %3190 = vmatmul.mubr.f32.gmra.mrb[0].mxu0 %v3123
    %v3191 = vpop.f32.mrb[0].mxu0
    %v3192 = vadd.f32 %v3118, %v3191
    %v3193 = vpop.f32.mrb[0].mxu0
    %3194 = vdwg.mxu0
    %v3195 = vld [vmem:[%s20] sm:$0x1]
    %v3197 = vlaneseq
    %v3198 = vshrl.u32 %v3197, 7
    %v3199 = vsub.s32 0, %v3198
    %v3200 = vrot.slane %v3195, %v3199
    %v3202 = vadd.f32 %v3192, %v3200
    %v3203 = vmax.f32 %v3202, 0.0
    %v3204 = vld [vmem:[%s21] sm:$0xff]
    %v3205 = vld [vmem:[%s21 + $0x8] sm:$0xff]
    %v3206 = vld [vmem:[%s21 + $0x10] sm:$0xff]
    %v3207 = vld [vmem:[%s21 + $0x18] sm:$0xff]
    %v3208 = vld [vmem:[%s21 + $0x20] sm:$0xff]
    %v3209 = vld [vmem:[%s21 + $0x28] sm:$0xff]
    %v3210 = vld [vmem:[%s21 + $0x30] sm:$0xff]
    %v3211 = vld [vmem:[%s21 + $0x38] sm:$0xff]
    %v3212 = vld [vmem:[%s21 + $0x40] sm:$0xff]
    %v3213 = vld [vmem:[%s21 + $0x48] sm:$0xff]
    %v3214 = vld [vmem:[%s21 + $0x50] sm:$0xff]
    %v3215 = vld [vmem:[%s21 + $0x58] sm:$0xff]
    %v3216 = vld [vmem:[%s21 + $0x60] sm:$0xff]
    %v3217 = vld [vmem:[%s21 + $0x68] sm:$0xff]
    %v3218 = vld [vmem:[%s21 + $0x70] sm:$0xff]
    %v3219 = vld [vmem:[%s21 + $0x78] sm:$0xff]
    %v3220 = vld [vmem:[%s22] sm:$0x1]
    %v3222 = vlaneseq
    %v3223 = vshrl.u32 %v3222, 7
    %v3224 = vsub.s32 0, %v3223
    %v3225 = vrot.slane %v3220, %v3224
    %3227 = vmatprep.subr.mxu0 0.0
    %3228 = vmatpush1.msra.mxu0 %v3204
    %3229 = vmatprep.subr.mxu0 0.0
    %3230 = vmatpush1.msra.mxu0 %v3205
    %3231 = vmatprep.subr.mxu0 0.0
    %3232 = vmatpush1.msra.mxu0 %v3206
    %3233 = vmatprep.subr.mxu0 0.0
    %3234 = vmatpush1.msra.mxu0 %v3207
    %3235 = vmatprep.subr.mxu0 0.0
    %3236 = vmatpush1.msra.mxu0 %v3208
    %3237 = vmatprep.subr.mxu0 0.0
    %3238 = vmatpush1.msra.mxu0 %v3209
    %3239 = vmatprep.subr.mxu0 0.0
    %3240 = vmatpush1.msra.mxu0 %v3210
    %3241 = vmatprep.subr.mxu0 0.0
    %3242 = vmatpush1.msra.mxu0 %v3211
    %3243 = vmatprep.subr.mxu0 0.0
    %3244 = vmatpush1.msra.mxu0 %v3212
    %3245 = vmatprep.subr.mxu0 0.0
    %3246 = vmatpush1.msra.mxu0 %v3213
    %3247 = vmatprep.subr.mxu0 0.0
    %3248 = vmatpush1.msra.mxu0 %v3214
    %3249 = vmatprep.subr.mxu0 0.0
    %3250 = vmatpush1.msra.mxu0 %v3215
    %3251 = vmatprep.subr.mxu0 0.0
    %3252 = vmatpush1.msra.mxu0 %v3216
    %3253 = vmatprep.subr.mxu0 0.0
    %3254 = vmatpush1.msra.mxu0 %v3217
    %3255 = vmatprep.subr.mxu0 0.0
    %3256 = vmatpush1.msra.mxu0 %v3218
    %3257 = vmatprep.subr.mxu0 0.0
    %3258 = vmatpush1.msra.mxu0 %v3219
    %3259 = vmatprep.subr.mxu0 0.0
    %3260 = vmatpush1.msra.mxu0 0.0
    %3261 = vmatprep.subr.mxu0 0.0
    %3262 = vmatpush1.msra.mxu0 0.0
    %3263 = vmatprep.subr.mxu0 0.0
    %3264 = vmatpush1.msra.mxu0 0.0
    %3265 = vmatprep.subr.mxu0 0.0
    %3266 = vmatpush1.msra.mxu0 0.0
    %3267 = vmatprep.subr.mxu0 0.0
    %3268 = vmatpush1.msra.mxu0 0.0
    %3269 = vmatprep.subr.mxu0 0.0
    %3270 = vmatpush1.msra.mxu0 0.0
    %3271 = vmatprep.subr.mxu0 0.0
    %3272 = vmatpush1.msra.mxu0 0.0
    %3273 = vmatprep.subr.mxu0 0.0
    %3274 = vmatpush1.msra.mxu0 0.0
    %3275 = vmatprep.subr.mxu0 0.0
    %3276 = vmatpush1.msra.mxu0 0.0
    %3277 = vmatprep.subr.mxu0 0.0
    %3278 = vmatpush1.msra.mxu0 0.0
    %3279 = vmatprep.subr.mxu0 0.0
    %3280 = vmatpush1.msra.mxu0 0.0
    %3281 = vmatprep.subr.mxu0 0.0
    %3282 = vmatpush1.msra.mxu0 0.0
    %3283 = vmatprep.subr.mxu0 0.0
    %3284 = vmatpush1.msra.mxu0 0.0
    %3285 = vmatprep.subr.mxu0 0.0
    %3286 = vmatpush1.msra.mxu0 0.0
    %3287 = vmatprep.subr.mxu0 0.0
    %3288 = vmatpush1.msra.mxu0 0.0
    %3289 = vmatprep.subr.mxu0 0.0
    %3290 = vmatpush1.msra.mxu0 0.0
    %3291 = vmatprep.mubr.f32.mxu0 0.0
    %3292 = vmatmul.mubr.f32.gmra.mrb[0].mxu0 %v3203
    %v3293 = vpop.f32.mrb[0].mxu0
    %v3294 = vadd.f32 %v3225, %v3293
    %v3295 = vpop.f32.mrb[0].mxu0
    %3296 = vdwg.mxu0
    %v3297 = vmax.f32 %v3294, 0.0
    %v3298 = vld [vmem:[%s23] sm:$0xff]
    %v3299 = vld [vmem:[%s23 + $0x8] sm:$0xff]
    %v3300 = vld [vmem:[%s23 + $0x10] sm:$0xff]
    %v3301 = vld [vmem:[%s23 + $0x18] sm:$0xff]
    %v3302 = vld [vmem:[%s23 + $0x20] sm:$0xff]
    %v3303 = vld [vmem:[%s23 + $0x28] sm:$0xff]
    %v3304 = vld [vmem:[%s23 + $0x30] sm:$0xff]
    %v3305 = vld [vmem:[%s23 + $0x38] sm:$0xff]
    %v3306 = vld [vmem:[%s23 + $0x40] sm:$0xff]
    %v3307 = vld [vmem:[%s23 + $0x48] sm:$0xff]
    %v3308 = vld [vmem:[%s23 + $0x50] sm:$0xff]
    %v3309 = vld [vmem:[%s23 + $0x58] sm:$0xff]
    %v3310 = vld [vmem:[%s23 + $0x60] sm:$0xff]
    %v3311 = vld [vmem:[%s23 + $0x68] sm:$0xff]
    %v3312 = vld [vmem:[%s23 + $0x70] sm:$0xff]
    %v3313 = vld [vmem:[%s23 + $0x78] sm:$0xff]
    %v3314 = vld [vmem:[%s24] sm:$0x1]
    %v3316 = vlaneseq
    %v3317 = vshrl.u32 %v3316, 7
    %v3318 = vsub.s32 0, %v3317
    %v3319 = vrot.slane %v3314, %v3318
    %3321 = vmatprep.subr.mxu0 0.0
    %3322 = vmatpush1.msra.mxu0 %v3298
    %3323 = vmatprep.subr.mxu0 0.0
    %3324 = vmatpush1.msra.mxu0 %v3299
    %3325 = vmatprep.subr.mxu0 0.0
    %3326 = vmatpush1.msra.mxu0 %v3300
    %3327 = vmatprep.subr.mxu0 0.0
    %3328 = vmatpush1.msra.mxu0 %v3301
    %3329 = vmatprep.subr.mxu0 0.0
    %3330 = vmatpush1.msra.mxu0 %v3302
    %3331 = vmatprep.subr.mxu0 0.0
    %3332 = vmatpush1.msra.mxu0 %v3303
    %3333 = vmatprep.subr.mxu0 0.0
    %3334 = vmatpush1.msra.mxu0 %v3304
    %3335 = vmatprep.subr.mxu0 0.0
    %3336 = vmatpush1.msra.mxu0 %v3305
    %3337 = vmatprep.subr.mxu0 0.0
    %3338 = vmatpush1.msra.mxu0 %v3306
    %3339 = vmatprep.subr.mxu0 0.0
    %3340 = vmatpush1.msra.mxu0 %v3307
    %3341 = vmatprep.subr.mxu0 0.0
    %3342 = vmatpush1.msra.mxu0 %v3308
    %3343 = vmatprep.subr.mxu0 0.0
    %3344 = vmatpush1.msra.mxu0 %v3309
    %3345 = vmatprep.subr.mxu0 0.0
    %3346 = vmatpush1.msra.mxu0 %v3310
    %3347 = vmatprep.subr.mxu0 0.0
    %3348 = vmatpush1.msra.mxu0 %v3311
    %3349 = vmatprep.subr.mxu0 0.0
    %3350 = vmatpush1.msra.mxu0 %v3312
    %3351 = vmatprep.subr.mxu0 0.0
    %3352 = vmatpush1.msra.mxu0 %v3313
    %3353 = vmatprep.subr.mxu0 0.0
    %3354 = vmatpush1.msra.mxu0 0.0
    %3355 = vmatprep.subr.mxu0 0.0
    %3356 = vmatpush1.msra.mxu0 0.0
    %3357 = vmatprep.subr.mxu0 0.0
    %3358 = vmatpush1.msra.mxu0 0.0
    %3359 = vmatprep.subr.mxu0 0.0
    %3360 = vmatpush1.msra.mxu0 0.0
    %3361 = vmatprep.subr.mxu0 0.0
    %3362 = vmatpush1.msra.mxu0 0.0
    %3363 = vmatprep.subr.mxu0 0.0
    %3364 = vmatpush1.msra.mxu0 0.0
    %3365 = vmatprep.subr.mxu0 0.0
    %3366 = vmatpush1.msra.mxu0 0.0
    %3367 = vmatprep.subr.mxu0 0.0
    %3368 = vmatpush1.msra.mxu0 0.0
    %3369 = vmatprep.subr.mxu0 0.0
    %3370 = vmatpush1.msra.mxu0 0.0
    %3371 = vmatprep.subr.mxu0 0.0
    %3372 = vmatpush1.msra.mxu0 0.0
    %3373 = vmatprep.subr.mxu0 0.0
    %3374 = vmatpush1.msra.mxu0 0.0
    %3375 = vmatprep.subr.mxu0 0.0
    %3376 = vmatpush1.msra.mxu0 0.0
    %3377 = vmatprep.subr.mxu0 0.0
    %3378 = vmatpush1.msra.mxu0 0.0
    %3379 = vmatprep.subr.mxu0 0.0
    %3380 = vmatpush1.msra.mxu0 0.0
    %3381 = vmatprep.subr.mxu0 0.0
    %3382 = vmatpush1.msra.mxu0 0.0
    %3383 = vmatprep.subr.mxu0 0.0
    %3384 = vmatpush1.msra.mxu0 0.0
    %3385 = vmatprep.mubr.f32.mxu0 0.0
    %3386 = vmatmul.mubr.f32.gmra.mrb[0].mxu0 %v3297
    %v3387 = vpop.f32.mrb[0].mxu0
    %v3388 = vadd.f32 %v3319, %v3387
    %v3389 = vpop.f32.mrb[0].mxu0
    %3390 = vdwg.mxu0
    %v3391 = vld [vmem:[%s25] sm:$0x1]
    %v3392 = vmul.f32 %v3391, 1.442695
    %v3393 = vpow.pop %v3392
    %v3394 = vld [vmem:[%s2] sm:$0x3]
    %v3396 = vlaneseq
    %v3397 = vshrl.u32 %v3396, 7
    %v3398 = vsub.s32 0, %v3397
    %v3399 = vrot.slane %v3393, %v3398
    %v3401 = vmul.f32 %v3399, %v3394
    %v3402 = vadd.f32 %v3388, %v3401
    %vm3403 = vcmask 58368
    %3404 = vst.msk [vmem:[#allocation2] sm:$0x3] %vm3403, %v3402
    // Predicated region
    $region106: #{tpu_custom_call.1} parent=1 // pred_check
      _
    $region107: #{tpu_custom_call.1} parent=1 // pred_check_branch
      %3406 = sbr.rel (0) target = $region109
    $region108: #{tpu_custom_call.1} parent=1 // pred_region
      %s3408 = ssub.s32 32, 32
      %3409 = vsyncadd [#allocation3], %s3408
      %s3411 = sshll.u32 [#allocation2], 4
      %s3412 = int_to_ptr.vmem [resolvable:$true] %s3411
      %3414 = dma.vmem_to_hbm [thread:$0]  %s3412, 32, %s26, [#allocation3]
    $region109: #{tpu_custom_call.1} parent=1 // pred_fallthru
      _
    // Predicated region
    $region110: #{tpu_custom_call.1} parent=1 // pred_check
      _
    $region111: #{tpu_custom_call.1} parent=1 // pred_check_branch
      %3416 = sbr.rel (0) target = $region113
    $region112: #{tpu_custom_call.1} parent=1 // pred_region
      %3417 = dma.done [#allocation3], 32
    $region113: #{tpu_custom_call.1} parent=1 // pred_fallthru
      _
    %3418 = vsyncpa [#allocation3], 1

</llo_original>
